<compile_context>
chip_gen: v7x
topology: tpu7x:2x2x1
jax: 0.10.0
libtpu: 0.0.40
codegen_flags: <defaults>
</compile_context>

<pallas_src>
import functools

import jax
import jax.numpy as jnp
from jax.experimental import pallas as pl
from jax.experimental.pallas import tpu as pltpu

IN_DIM = 1695
IN_PAD = 1792          # 14 * 128, lane-aligned contraction dim
HID_DIM = 512
LAT_DIM = 128
DROP_P = 0.1
MAX_TB = 256           # batch tile size for large B


def vae_encoder_kernel(x_ref, w1_ref, b1_ref, wh_ref, bh_ref, mask_ref, eps_ref,
                       o_ref, zm_ref, zlv_ref):
    # Dense(1695->512) + ReLU. bf16 operands, f32 accumulation on the MXU.
    h = jnp.dot(x_ref[...], w1_ref[...], preferred_element_type=jnp.float32)
    h = jnp.maximum(h + b1_ref[...], 0.0)

    # Dropout: mask is {0,1}; the 1/(1-p) inverted scale is pre-folded into wh.
    h = h * mask_ref[...]

    # Fused heads: one 512->256 matmul, then split into z_mean / z_log_var.
    zz = jnp.dot(h.astype(wh_ref.dtype), wh_ref[...],
                 preferred_element_type=jnp.float32) + bh_ref[...]
    zm = zz[:, :LAT_DIM]
    zlv = zz[:, LAT_DIM:]

    zm_ref[...] = zm
    zlv_ref[...] = zlv
    # reparametrize: z = z_mean + exp(z_log_var / 2) * eps
    o_ref[...] = zm + jnp.exp(zlv * 0.5) * eps_ref[...]


@functools.partial(jax.jit, static_argnames=("training",))
def vae_encoder(x, w1t, b1, wmt, bm, wvt, bv, eps, dropout_key, training=True):
    B = x.shape[0]
    f32 = jnp.float32

    # Dropout mask generated host-side (in-kernel TPU hardware PRNG is not
    # available under CPU interpret).
    # TODO(synk): RNG stream differs from torch.nn.Dropout; keep-prob 0.9 and
    # 1/0.9 inverted scaling semantics match.
    if training:
        keep = jax.random.bernoulli(dropout_key, 1.0 - DROP_P, (B, HID_DIM))
        mask = keep.astype(f32)
        scale = 1.0 / (1.0 - DROP_P)
    else:
        mask = jnp.ones((B, HID_DIM), f32)
        scale = 1.0

    # Weight prep: lane-align K, fuse heads, fold dropout scale, cast to bf16.
    w1p = jnp.pad(w1t, ((0, IN_PAD - IN_DIM), (0, 0))).astype(jnp.bfloat16)
    wh = (jnp.concatenate([wmt, wvt], axis=1) * scale).astype(jnp.bfloat16)
    bh = jnp.concatenate([bm, bv], axis=1).astype(f32)
    b1f = b1.astype(f32)

    xp = jnp.pad(x, ((0, 0), (0, IN_PAD - IN_DIM))).astype(jnp.bfloat16)
    eps_p = eps.astype(f32)

    # Batch tiling: TB = B for small batches (block == full dim is always legal),
    # otherwise 256-row tiles with zero-padding to a multiple of TB.
    if B <= MAX_TB:
        TB, Bp = B, B
    else:
        TB = MAX_TB
        Bp = ((B + TB - 1) // TB) * TB
    if Bp != B:
        pad_rows = ((0, Bp - B), (0, 0))
        xp = jnp.pad(xp, pad_rows)
        mask = jnp.pad(mask, pad_rows)
        eps_p = jnp.pad(eps_p, pad_rows)

    grid = (Bp // TB,)

    def row_spec(dim):
        return pl.BlockSpec((TB, dim), lambda i: (i, 0))

    def const_spec(shape):
        return pl.BlockSpec(shape, lambda i: (0, 0))

    out_shapes = tuple(jax.ShapeDtypeStruct((Bp, LAT_DIM), f32) for _ in range(3))

    o, zm, zlv = pl.pallas_call(
        vae_encoder_kernel,
        out_shape=out_shapes,
        grid=grid,
        in_specs=[
            row_spec(IN_PAD),                     # x tile
            const_spec((IN_PAD, HID_DIM)),        # W1 (resident across grid)
            const_spec((1, HID_DIM)),             # b1
            const_spec((HID_DIM, 2 * LAT_DIM)),   # fused head weights
            const_spec((1, 2 * LAT_DIM)),         # fused head bias
            row_spec(HID_DIM),                    # dropout mask tile
            row_spec(LAT_DIM),                    # eps tile
        ],
        out_specs=(row_spec(LAT_DIM), row_spec(LAT_DIM), row_spec(LAT_DIM)),
        compiler_params=pltpu.CompilerParams(
            dimension_semantics=("parallel",),
            vmem_limit_bytes=32 << 20,
        ),
    )(xp, w1p, b1f, wh, bh, mask, eps_p)

    if Bp != B:
        o, zm, zlv = o[:B], zm[:B], zlv[:B]
    return o, zm, zlv


def init_params(key):
    """Deterministic init mimicking torch.nn.Linear (uniform +-1/sqrt(fan_in))."""
    k1, k2, k3, k4, k5, k6 = jax.random.split(key, 6)

    def lin(kw, kb, fan_in, fan_out):
        bound = 1.0 / jnp.sqrt(float(fan_in))
        w = jax.random.uniform(kw, (fan_out, fan_in), jnp.float32, -bound, bound)
        b = jax.random.uniform(kb, (fan_out,), jnp.float32, -bound, bound)
        return w, b

    w1, b1 = lin(k1, k2, IN_DIM, HID_DIM)
    wm, bm = lin(k3, k4, HID_DIM, LAT_DIM)
    wv, bv = lin(k5, k6, HID_DIM, LAT_DIM)
    # Pre-transpose weights to (in, out) and make biases (1, out) for the kernel.
    return (w1.T, b1[None, :], wm.T, bm[None, :], wv.T, bv[None, :])


if __name__ == "__main__":
    B = 8
    key = jax.random.PRNGKey(0)
    k_x, k_p, k_eps, k_drop = jax.random.split(key, 4)

    x = jax.random.normal(k_x, (B, IN_DIM), dtype=jnp.float32)
    w1t, b1, wmt, bm, wvt, bv = init_params(k_p)
    eps = jax.random.normal(k_eps, (B, LAT_DIM), dtype=jnp.float32)

    o, z_mean, z_log_var = vae_encoder(x, w1t, b1, wmt, bm, wvt, bv, eps, k_drop)
    jax.block_until_ready((o, z_mean, z_log_var))

    assert o.shape == (B, LAT_DIM)
    assert z_mean.shape == (B, LAT_DIM)
    assert z_log_var.shape == (B, LAT_DIM)
    assert bool(jnp.all(jnp.isfinite(o)))
    assert bool(jnp.all(jnp.isfinite(z_mean)))
    assert bool(jnp.all(jnp.isfinite(z_log_var)))
    print("KERNEL_OK")
</pallas_src>

<mosaic_0001>
module attributes {stable_mosaic.version = 11 : i64} {
  func.func @vae_encoder_kernel(%arg0: i32, %arg1: memref<8x1792xbf16, #tpu.memory_space<vmem>>, %arg2: memref<1792x512xbf16, #tpu.memory_space<vmem>>, %arg3: memref<1x512xf32, #tpu.memory_space<vmem>>, %arg4: memref<512x256xbf16, #tpu.memory_space<vmem>>, %arg5: memref<1x256xf32, #tpu.memory_space<vmem>>, %arg6: memref<8x512xf32, #tpu.memory_space<vmem>>, %arg7: memref<8x128xf32, #tpu.memory_space<vmem>>, %arg8: memref<8x128xf32, #tpu.memory_space<vmem>>, %arg9: memref<8x128xf32, #tpu.memory_space<vmem>>, %arg10: memref<8x128xf32, #tpu.memory_space<vmem>>) attributes {dimension_semantics = [#tpu.dimension_semantics<parallel>], iteration_bounds = array<i64: 1>, scalar_prefetch = 0 : i64, scratch_operands = 0 : i64, tpu.core_type = #tpu.core_type<tc>, window_params = [{transform_indices = @transform_0, window_bounds = array<i64: 8, 1792>}, {pipeline_mode = #tpu.pipeline_mode<synchronous>, transform_indices = @transform_1, window_bounds = array<i64: 1792, 512>}, {pipeline_mode = #tpu.pipeline_mode<synchronous>, transform_indices = @transform_2, window_bounds = array<i64: 1, 512>}, {pipeline_mode = #tpu.pipeline_mode<synchronous>, transform_indices = @transform_3, window_bounds = array<i64: 512, 256>}, {pipeline_mode = #tpu.pipeline_mode<synchronous>, transform_indices = @transform_4, window_bounds = array<i64: 1, 256>}, {transform_indices = @transform_5, window_bounds = array<i64: 8, 512>}, {transform_indices = @transform_6, window_bounds = array<i64: 8, 128>}, {transform_indices = @transform_7, window_bounds = array<i64: 8, 128>}, {transform_indices = @transform_8, window_bounds = array<i64: 8, 128>}, {transform_indices = @transform_9, window_bounds = array<i64: 8, 128>}]} {
    %c0 = arith.constant 0 : index
    %c0_0 = arith.constant 0 : index
    %0 = vector.load %arg1[%c0, %c0_0] : memref<8x1792xbf16, #tpu.memory_space<vmem>>, vector<8x1792xbf16>
    %c0_1 = arith.constant 0 : index
    %c0_2 = arith.constant 0 : index
    %1 = vector.load %arg2[%c0_1, %c0_2] : memref<1792x512xbf16, #tpu.memory_space<vmem>>, vector<1792x512xbf16>
    %cst = arith.constant dense<0.000000e+00> : vector<8x512xf32>
    %2 = tpu.matmul %0, %1, %cst {dimension_numbers = #tpu.dot_dimension_numbers<[1], [0], [0], [1], [0, 0, 1, 1], [], []>} : vector<8x1792xbf16>, vector<1792x512xbf16>, vector<8x512xf32> -> vector<8x512xf32>
    %c0_3 = arith.constant 0 : index
    %c0_4 = arith.constant 0 : index
    %3 = vector.load %arg3[%c0_3, %c0_4] : memref<1x512xf32, #tpu.memory_space<vmem>>, vector<1x512xf32>
    %4 = vector.broadcast %3 : vector<1x512xf32> to vector<8x512xf32>
    %5 = arith.addf %2, %4 : vector<8x512xf32>
    %cst_5 = arith.constant 0.000000e+00 : f32
    %6 = vector.broadcast %cst_5 : f32 to vector<8x512xf32>
    %7 = arith.maximumf %5, %6 : vector<8x512xf32>
    %c0_6 = arith.constant 0 : index
    %c0_7 = arith.constant 0 : index
    %8 = vector.load %arg6[%c0_6, %c0_7] : memref<8x512xf32, #tpu.memory_space<vmem>>, vector<8x512xf32>
    %9 = arith.mulf %7, %8 : vector<8x512xf32>
    %10 = arith.truncf %9 : vector<8x512xf32> to vector<8x512xbf16>
    %c0_8 = arith.constant 0 : index
    %c0_9 = arith.constant 0 : index
    %11 = vector.load %arg4[%c0_8, %c0_9] : memref<512x256xbf16, #tpu.memory_space<vmem>>, vector<512x256xbf16>
    %cst_10 = arith.constant dense<0.000000e+00> : vector<8x256xf32>
    %12 = tpu.matmul %10, %11, %cst_10 {dimension_numbers = #tpu.dot_dimension_numbers<[1], [0], [0], [1], [0, 0, 1, 1], [], []>} : vector<8x512xbf16>, vector<512x256xbf16>, vector<8x256xf32> -> vector<8x256xf32>
    %c0_11 = arith.constant 0 : index
    %c0_12 = arith.constant 0 : index
    %13 = vector.load %arg5[%c0_11, %c0_12] : memref<1x256xf32, #tpu.memory_space<vmem>>, vector<1x256xf32>
    %14 = vector.broadcast %13 : vector<1x256xf32> to vector<8x256xf32>
    %15 = arith.addf %12, %14 : vector<8x256xf32>
    %16 = vector.extract_strided_slice %15 {offsets = [0, 0], sizes = [8, 128], strides = [1, 1]} : vector<8x256xf32> to vector<8x128xf32>
    %17 = vector.extract_strided_slice %15 {offsets = [0, 128], sizes = [8, 128], strides = [1, 1]} : vector<8x256xf32> to vector<8x128xf32>
    %c0_13 = arith.constant 0 : index
    %c0_14 = arith.constant 0 : index
    %18 = vector.load %arg9[%c0_13, %c0_14] : memref<8x128xf32, #tpu.memory_space<vmem>>, vector<8x128xf32>
    tpu.vector_store %arg9[%c0_13, %c0_14], %16 {strides = array<i32>} : memref<8x128xf32, #tpu.memory_space<vmem>>, vector<8x128xf32>,
    %c0_15 = arith.constant 0 : index
    %c0_16 = arith.constant 0 : index
    %19 = vector.load %arg10[%c0_15, %c0_16] : memref<8x128xf32, #tpu.memory_space<vmem>>, vector<8x128xf32>
    tpu.vector_store %arg10[%c0_15, %c0_16], %17 {strides = array<i32>} : memref<8x128xf32, #tpu.memory_space<vmem>>, vector<8x128xf32>,
    %cst_17 = arith.constant 5.000000e-01 : f32
    %20 = vector.broadcast %cst_17 : f32 to vector<8x128xf32>
    %21 = arith.mulf %17, %20 : vector<8x128xf32>
    %22 = math.exp %21 : vector<8x128xf32>
    %c0_18 = arith.constant 0 : index
    %c0_19 = arith.constant 0 : index
    %23 = vector.load %arg7[%c0_18, %c0_19] : memref<8x128xf32, #tpu.memory_space<vmem>>, vector<8x128xf32>
    %24 = arith.mulf %22, %23 : vector<8x128xf32>
    %25 = arith.addf %16, %24 : vector<8x128xf32>
    %c0_20 = arith.constant 0 : index
    %c0_21 = arith.constant 0 : index
    %26 = vector.load %arg8[%c0_20, %c0_21] : memref<8x128xf32, #tpu.memory_space<vmem>>, vector<8x128xf32>
    tpu.vector_store %arg8[%c0_20, %c0_21], %25 {strides = array<i32>} : memref<8x128xf32, #tpu.memory_space<vmem>>, vector<8x128xf32>,
    return
  }
  func.func @transform_0(%arg0: i32) -> (i32, i32) {
    %c0_i32 = arith.constant 0 : i32
    %c0_i32_0 = arith.constant 0 : i32
    return %arg0, %c0_i32 : i32, i32
  }
  func.func @transform_1(%arg0: i32) -> (i32, i32) {
    %c0_i32 = arith.constant 0 : i32
    %c0_i32_0 = arith.constant 0 : i32
    %c0_i32_1 = arith.constant 0 : i32
    return %c0_i32, %c0_i32_0 : i32, i32
  }
  func.func @transform_2(%arg0: i32) -> (i32, i32) {
    %c0_i32 = arith.constant 0 : i32
    %c0_i32_0 = arith.constant 0 : i32
    %c0_i32_1 = arith.constant 0 : i32
    return %c0_i32, %c0_i32_0 : i32, i32
  }
  func.func @transform_3(%arg0: i32) -> (i32, i32) {
    %c0_i32 = arith.constant 0 : i32
    %c0_i32_0 = arith.constant 0 : i32
    %c0_i32_1 = arith.constant 0 : i32
    return %c0_i32, %c0_i32_0 : i32, i32
  }
  func.func @transform_4(%arg0: i32) -> (i32, i32) {
    %c0_i32 = arith.constant 0 : i32
    %c0_i32_0 = arith.constant 0 : i32
    %c0_i32_1 = arith.constant 0 : i32
    return %c0_i32, %c0_i32_0 : i32, i32
  }
  func.func @transform_5(%arg0: i32) -> (i32, i32) {
    %c0_i32 = arith.constant 0 : i32
    %c0_i32_0 = arith.constant 0 : i32
    return %arg0, %c0_i32 : i32, i32
  }
  func.func @transform_6(%arg0: i32) -> (i32, i32) {
    %c0_i32 = arith.constant 0 : i32
    %c0_i32_0 = arith.constant 0 : i32
    return %arg0, %c0_i32 : i32, i32
  }
  func.func @transform_7(%arg0: i32) -> (i32, i32) {
    %c0_i32 = arith.constant 0 : i32
    %c0_i32_0 = arith.constant 0 : i32
    return %arg0, %c0_i32 : i32, i32
  }
  func.func @transform_8(%arg0: i32) -> (i32, i32) {
    %c0_i32 = arith.constant 0 : i32
    %c0_i32_0 = arith.constant 0 : i32
    return %arg0, %c0_i32 : i32, i32
  }
  func.func @transform_9(%arg0: i32) -> (i32, i32) {
    %c0_i32 = arith.constant 0 : i32
    %c0_i32_0 = arith.constant 0 : i32
    return %arg0, %c0_i32 : i32, i32
  }
}

</mosaic_0001>

<llo_original>
// kernel: vae_encoder.1
$region0: #{vae_encoder.1}
  #allocation0 [shape = 'u32[]', space=smem, size = 0x4, offset = 0x4, fixed_abs, tag = 'smem constant byte address 0x4 - core index']
  #allocation1 [shape = 'u32[144,128]{1,0:T(1,128)}', space=vmem, size = 0x12000, scoped, tag = 'internal scratch']
  %s0 = inlined_call_operand.vmem [shape: bf16[8,1792], index: 0, kind: input, shape index: {}]
  %s1 = inlined_call_operand.vmem [shape: bf16[1792,512], index: 1, kind: input, shape index: {}]
  %s2 = inlined_call_operand.vmem [shape: f32[1,512], index: 2, kind: input, shape index: {}]
  %s3 = inlined_call_operand.vmem [shape: bf16[512,256], index: 3, kind: input, shape index: {}]
  %s4 = inlined_call_operand.vmem [shape: f32[1,256], index: 4, kind: input, shape index: {}]
  %s5 = inlined_call_operand.vmem [shape: f32[8,512], index: 5, kind: input, shape index: {}]
  %s6 = inlined_call_operand.vmem [shape: f32[8,128], index: 6, kind: input, shape index: {}]
  %s7 = inlined_call_operand.hbm [shape: f32[8,128], index: 7, kind: output, shape index: {0}]
  %s8 = inlined_call_operand.hbm [shape: f32[8,128], index: 8, kind: output, shape index: {1}]
  %s9 = inlined_call_operand.hbm [shape: f32[8,128], index: 9, kind: output, shape index: {2}]
  %10 = xla_tuple %s7, %s8, %s9
  %s11 = sld [smem:[#allocation0]]
  $region54: #{vae_encoder.1} parent=0
    _
  %s13 = ssub.s32 1, %s11
  %s14 = scalar_select 0, %s13, %s11
  $region1: #{vae_encoder.1} parent=0
    #allocation2 [shape = 'u8[4096]{0}', space=vmem, size = 0x1000, scoped, tag = 'output window, operand 0, single buffered']
    #allocation3 [shape = 's32[1]{0}', space=sflag, size = 0x4, scoped, tag = 'scoped memory for vae_encoder.1']
    #allocation4 [shape = 'u8[4096]{0}', space=vmem, size = 0x1000, scoped, tag = 'output window, operand 1, single buffered']
    #allocation5 [shape = 's32[1]{0}', space=sflag, size = 0x4, scoped, tag = 'scoped memory for vae_encoder.1']
    #allocation6 [shape = 'u8[4096]{0}', space=vmem, size = 0x1000, scoped, tag = 'output window, operand 2, single buffered']
    %15 = vsyncpa [#allocation3], 0
    %16 = vsyncpa [#allocation5], 0
    // Predicated region
    $region2: #{vae_encoder.1} parent=1 // pred_check
      _
    $region3: #{vae_encoder.1} parent=1 // pred_check_branch
      %18 = sbr.rel (0) target = $region5
    $region4: #{vae_encoder.1} parent=1 // pred_region
      _
    $region5: #{vae_encoder.1} parent=1 // pred_fallthru
      _
    // Predicated region
    $region6: #{vae_encoder.1} parent=1 // pred_check
      _
    $region7: #{vae_encoder.1} parent=1 // pred_check_branch
      %20 = sbr.rel (0) target = $region9
    $region8: #{vae_encoder.1} parent=1 // pred_region
      _
    $region9: #{vae_encoder.1} parent=1 // pred_fallthru
      _
    // Predicated region
    $region10: #{vae_encoder.1} parent=1 // pred_check
      _
    $region11: #{vae_encoder.1} parent=1 // pred_check_branch
      %22 = sbr.rel (0) target = $region13
    $region12: #{vae_encoder.1} parent=1 // pred_region
      _
    $region13: #{vae_encoder.1} parent=1 // pred_fallthru
      _
    // Predicated region
    $region14: #{vae_encoder.1} parent=1 // pred_check
      _
    $region15: #{vae_encoder.1} parent=1 // pred_check_branch
      %24 = sbr.rel (0) target = $region17
    $region16: #{vae_encoder.1} parent=1 // pred_region
      _
    $region17: #{vae_encoder.1} parent=1 // pred_fallthru
      _
    // Predicated region
    $region18: #{vae_encoder.1} parent=1 // pred_check
      _
    $region19: #{vae_encoder.1} parent=1 // pred_check_branch
      %26 = sbr.rel (0) target = $region21
    $region20: #{vae_encoder.1} parent=1 // pred_region
      _
    $region21: #{vae_encoder.1} parent=1 // pred_fallthru
      _
    // Predicated region
    $region22: #{vae_encoder.1} parent=1 // pred_check
      _
    $region23: #{vae_encoder.1} parent=1 // pred_check_branch
      %28 = sbr.rel (0) target = $region25
    $region24: #{vae_encoder.1} parent=1 // pred_region
      _
    $region25: #{vae_encoder.1} parent=1 // pred_fallthru
      _
    // Predicated region
    $region26: #{vae_encoder.1} parent=1 // pred_check
      _
    $region27: #{vae_encoder.1} parent=1 // pred_check_branch
      %30 = sbr.rel (0) target = $region29
    $region28: #{vae_encoder.1} parent=1 // pred_region
      _
    $region29: #{vae_encoder.1} parent=1 // pred_fallthru
      _
    %v31 = vld [vmem:[%s0] sm:$0xff]
    %v32 = vld [vmem:[%s0 + $0x8] sm:$0xff]
    %v33 = vld [vmem:[%s0 + $0x10] sm:$0xff]
    %v34 = vld [vmem:[%s0 + $0x18] sm:$0xff]
    %v35 = vld [vmem:[%s0 + $0x20] sm:$0xff]
    %v36 = vld [vmem:[%s0 + $0x28] sm:$0xff]
    %v37 = vld [vmem:[%s0 + $0x30] sm:$0xff]
    %v38 = vld [vmem:[%s1] sm:$0xff]
    %v39 = vld [vmem:[%s1 + $0x8] sm:$0xff]
    %v40 = vld [vmem:[%s1 + $0x10] sm:$0xff]
    %v41 = vld [vmem:[%s1 + $0x18] sm:$0xff]
    %v42 = vld [vmem:[%s1 + $0x20] sm:$0xff]
    %v43 = vld [vmem:[%s1 + $0x28] sm:$0xff]
    %v44 = vld [vmem:[%s1 + $0x30] sm:$0xff]
    %v45 = vld [vmem:[%s1 + $0x38] sm:$0xff]
    %v46 = vld [vmem:[%s1 + $0x40] sm:$0xff]
    %v47 = vld [vmem:[%s1 + $0x48] sm:$0xff]
    %v48 = vld [vmem:[%s1 + $0x50] sm:$0xff]
    %v49 = vld [vmem:[%s1 + $0x58] sm:$0xff]
    %v50 = vld [vmem:[%s1 + $0x60] sm:$0xff]
    %v51 = vld [vmem:[%s1 + $0x68] sm:$0xff]
    %v52 = vld [vmem:[%s1 + $0x70] sm:$0xff]
    %v53 = vld [vmem:[%s1 + $0x78] sm:$0xff]
    %v54 = vld [vmem:[%s1 + $0x80] sm:$0xff]
    %v55 = vld [vmem:[%s1 + $0x88] sm:$0xff]
    %v56 = vld [vmem:[%s1 + $0x90] sm:$0xff]
    %v57 = vld [vmem:[%s1 + $0x98] sm:$0xff]
    %v58 = vld [vmem:[%s1 + $0xa0] sm:$0xff]
    %v59 = vld [vmem:[%s1 + $0xa8] sm:$0xff]
    %v60 = vld [vmem:[%s1 + $0xb0] sm:$0xff]
    %v61 = vld [vmem:[%s1 + $0xb8] sm:$0xff]
    %v62 = vld [vmem:[%s1 + $0xc0] sm:$0xff]
    %v63 = vld [vmem:[%s1 + $0xc8] sm:$0xff]
    %v64 = vld [vmem:[%s1 + $0xd0] sm:$0xff]
    %v65 = vld [vmem:[%s1 + $0xd8] sm:$0xff]
    %v66 = vld [vmem:[%s1 + $0xe0] sm:$0xff]
    %v67 = vld [vmem:[%s1 + $0xe8] sm:$0xff]
    %v68 = vld [vmem:[%s1 + $0xf0] sm:$0xff]
    %v69 = vld [vmem:[%s1 + $0xf8] sm:$0xff]
    %v70 = vld [vmem:[%s1 + $0x100] sm:$0xff]
    %v71 = vld [vmem:[%s1 + $0x108] sm:$0xff]
    %v72 = vld [vmem:[%s1 + $0x110] sm:$0xff]
    %v73 = vld [vmem:[%s1 + $0x118] sm:$0xff]
    %v74 = vld [vmem:[%s1 + $0x120] sm:$0xff]
    %v75 = vld [vmem:[%s1 + $0x128] sm:$0xff]
    %v76 = vld [vmem:[%s1 + $0x130] sm:$0xff]
    %v77 = vld [vmem:[%s1 + $0x138] sm:$0xff]
    %v78 = vld [vmem:[%s1 + $0x140] sm:$0xff]
    %v79 = vld [vmem:[%s1 + $0x148] sm:$0xff]
    %v80 = vld [vmem:[%s1 + $0x150] sm:$0xff]
    %v81 = vld [vmem:[%s1 + $0x158] sm:$0xff]
    %v82 = vld [vmem:[%s1 + $0x160] sm:$0xff]
    %v83 = vld [vmem:[%s1 + $0x168] sm:$0xff]
    %v84 = vld [vmem:[%s1 + $0x170] sm:$0xff]
    %v85 = vld [vmem:[%s1 + $0x178] sm:$0xff]
    %v86 = vld [vmem:[%s1 + $0x180] sm:$0xff]
    %v87 = vld [vmem:[%s1 + $0x188] sm:$0xff]
    %v88 = vld [vmem:[%s1 + $0x190] sm:$0xff]
    %v89 = vld [vmem:[%s1 + $0x198] sm:$0xff]
    %v90 = vld [vmem:[%s1 + $0x1a0] sm:$0xff]
    %v91 = vld [vmem:[%s1 + $0x1a8] sm:$0xff]
    %v92 = vld [vmem:[%s1 + $0x1b0] sm:$0xff]
    %v93 = vld [vmem:[%s1 + $0x1b8] sm:$0xff]
    %v94 = vld [vmem:[%s1 + $0x1c0] sm:$0xff]
    %v95 = vld [vmem:[%s1 + $0x1c8] sm:$0xff]
    %v96 = vld [vmem:[%s1 + $0x1d0] sm:$0xff]
    %v97 = vld [vmem:[%s1 + $0x1d8] sm:$0xff]
    %v98 = vld [vmem:[%s1 + $0x1e0] sm:$0xff]
    %v99 = vld [vmem:[%s1 + $0x1e8] sm:$0xff]
    %v100 = vld [vmem:[%s1 + $0x1f0] sm:$0xff]
    %v101 = vld [vmem:[%s1 + $0x1f8] sm:$0xff]
    %v102 = vld [vmem:[%s1 + $0x200] sm:$0xff]
    %v103 = vld [vmem:[%s1 + $0x208] sm:$0xff]
    %v104 = vld [vmem:[%s1 + $0x210] sm:$0xff]
    %v105 = vld [vmem:[%s1 + $0x218] sm:$0xff]
    %v106 = vld [vmem:[%s1 + $0x220] sm:$0xff]
    %v107 = vld [vmem:[%s1 + $0x228] sm:$0xff]
    %v108 = vld [vmem:[%s1 + $0x230] sm:$0xff]
    %v109 = vld [vmem:[%s1 + $0x238] sm:$0xff]
    %v110 = vld [vmem:[%s1 + $0x240] sm:$0xff]
    %v111 = vld [vmem:[%s1 + $0x248] sm:$0xff]
    %v112 = vld [vmem:[%s1 + $0x250] sm:$0xff]
    %v113 = vld [vmem:[%s1 + $0x258] sm:$0xff]
    %v114 = vld [vmem:[%s1 + $0x260] sm:$0xff]
    %v115 = vld [vmem:[%s1 + $0x268] sm:$0xff]
    %v116 = vld [vmem:[%s1 + $0x270] sm:$0xff]
    %v117 = vld [vmem:[%s1 + $0x278] sm:$0xff]
    %v118 = vld [vmem:[%s1 + $0x280] sm:$0xff]
    %v119 = vld [vmem:[%s1 + $0x288] sm:$0xff]
    %v120 = vld [vmem:[%s1 + $0x290] sm:$0xff]
    %v121 = vld [vmem:[%s1 + $0x298] sm:$0xff]
    %v122 = vld [vmem:[%s1 + $0x2a0] sm:$0xff]
    %v123 = vld [vmem:[%s1 + $0x2a8] sm:$0xff]
    %v124 = vld [vmem:[%s1 + $0x2b0] sm:$0xff]
    %v125 = vld [vmem:[%s1 + $0x2b8] sm:$0xff]
    %v126 = vld [vmem:[%s1 + $0x2c0] sm:$0xff]
    %v127 = vld [vmem:[%s1 + $0x2c8] sm:$0xff]
    %v128 = vld [vmem:[%s1 + $0x2d0] sm:$0xff]
    %v129 = vld [vmem:[%s1 + $0x2d8] sm:$0xff]
    %v130 = vld [vmem:[%s1 + $0x2e0] sm:$0xff]
    %v131 = vld [vmem:[%s1 + $0x2e8] sm:$0xff]
    %v132 = vld [vmem:[%s1 + $0x2f0] sm:$0xff]
    %v133 = vld [vmem:[%s1 + $0x2f8] sm:$0xff]
    %v134 = vld [vmem:[%s1 + $0x300] sm:$0xff]
    %v135 = vld [vmem:[%s1 + $0x308] sm:$0xff]
    %v136 = vld [vmem:[%s1 + $0x310] sm:$0xff]
    %v137 = vld [vmem:[%s1 + $0x318] sm:$0xff]
    %v138 = vld [vmem:[%s1 + $0x320] sm:$0xff]
    %v139 = vld [vmem:[%s1 + $0x328] sm:$0xff]
    %v140 = vld [vmem:[%s1 + $0x330] sm:$0xff]
    %v141 = vld [vmem:[%s1 + $0x338] sm:$0xff]
    %v142 = vld [vmem:[%s1 + $0x340] sm:$0xff]
    %v143 = vld [vmem:[%s1 + $0x348] sm:$0xff]
    %v144 = vld [vmem:[%s1 + $0x350] sm:$0xff]
    %v145 = vld [vmem:[%s1 + $0x358] sm:$0xff]
    %v146 = vld [vmem:[%s1 + $0x360] sm:$0xff]
    %v147 = vld [vmem:[%s1 + $0x368] sm:$0xff]
    %v148 = vld [vmem:[%s1 + $0x370] sm:$0xff]
    %v149 = vld [vmem:[%s1 + $0x378] sm:$0xff]
    %v150 = vld [vmem:[%s1 + $0x380] sm:$0xff]
    %v151 = vld [vmem:[%s1 + $0x388] sm:$0xff]
    %v152 = vld [vmem:[%s1 + $0x390] sm:$0xff]
    %v153 = vld [vmem:[%s1 + $0x398] sm:$0xff]
    %v154 = vld [vmem:[%s1 + $0x3a0] sm:$0xff]
    %v155 = vld [vmem:[%s1 + $0x3a8] sm:$0xff]
    %v156 = vld [vmem:[%s1 + $0x3b0] sm:$0xff]
    %v157 = vld [vmem:[%s1 + $0x3b8] sm:$0xff]
    %v158 = vld [vmem:[%s1 + $0x3c0] sm:$0xff]
    %v159 = vld [vmem:[%s1 + $0x3c8] sm:$0xff]
    %v160 = vld [vmem:[%s1 + $0x3d0] sm:$0xff]
    %v161 = vld [vmem:[%s1 + $0x3d8] sm:$0xff]
    %v162 = vld [vmem:[%s1 + $0x3e0] sm:$0xff]
    %v163 = vld [vmem:[%s1 + $0x3e8] sm:$0xff]
    %v164 = vld [vmem:[%s1 + $0x3f0] sm:$0xff]
    %v165 = vld [vmem:[%s1 + $0x3f8] sm:$0xff]
    %v166 = vld [vmem:[%s1 + $0x400] sm:$0xff]
    %v167 = vld [vmem:[%s1 + $0x408] sm:$0xff]
    %v168 = vld [vmem:[%s1 + $0x410] sm:$0xff]
    %v169 = vld [vmem:[%s1 + $0x418] sm:$0xff]
    %v170 = vld [vmem:[%s1 + $0x420] sm:$0xff]
    %v171 = vld [vmem:[%s1 + $0x428] sm:$0xff]
    %v172 = vld [vmem:[%s1 + $0x430] sm:$0xff]
    %v173 = vld [vmem:[%s1 + $0x438] sm:$0xff]
    %v174 = vld [vmem:[%s1 + $0x440] sm:$0xff]
    %v175 = vld [vmem:[%s1 + $0x448] sm:$0xff]
    %v176 = vld [vmem:[%s1 + $0x450] sm:$0xff]
    %v177 = vld [vmem:[%s1 + $0x458] sm:$0xff]
    %v178 = vld [vmem:[%s1 + $0x460] sm:$0xff]
    %v179 = vld [vmem:[%s1 + $0x468] sm:$0xff]
    %v180 = vld [vmem:[%s1 + $0x470] sm:$0xff]
    %v181 = vld [vmem:[%s1 + $0x478] sm:$0xff]
    %v182 = vld [vmem:[%s1 + $0x480] sm:$0xff]
    %v183 = vld [vmem:[%s1 + $0x488] sm:$0xff]
    %v184 = vld [vmem:[%s1 + $0x490] sm:$0xff]
    %v185 = vld [vmem:[%s1 + $0x498] sm:$0xff]
    %v186 = vld [vmem:[%s1 + $0x4a0] sm:$0xff]
    %v187 = vld [vmem:[%s1 + $0x4a8] sm:$0xff]
    %v188 = vld [vmem:[%s1 + $0x4b0] sm:$0xff]
    %v189 = vld [vmem:[%s1 + $0x4b8] sm:$0xff]
    %v190 = vld [vmem:[%s1 + $0x4c0] sm:$0xff]
    %v191 = vld [vmem:[%s1 + $0x4c8] sm:$0xff]
    %v192 = vld [vmem:[%s1 + $0x4d0] sm:$0xff]
    %v193 = vld [vmem:[%s1 + $0x4d8] sm:$0xff]
    %v194 = vld [vmem:[%s1 + $0x4e0] sm:$0xff]
    %v195 = vld [vmem:[%s1 + $0x4e8] sm:$0xff]
    %v196 = vld [vmem:[%s1 + $0x4f0] sm:$0xff]
    %v197 = vld [vmem:[%s1 + $0x4f8] sm:$0xff]
    %v198 = vld [vmem:[%s1 + $0x500] sm:$0xff]
    %v199 = vld [vmem:[%s1 + $0x508] sm:$0xff]
    %v200 = vld [vmem:[%s1 + $0x510] sm:$0xff]
    %v201 = vld [vmem:[%s1 + $0x518] sm:$0xff]
    %v202 = vld [vmem:[%s1 + $0x520] sm:$0xff]
    %v203 = vld [vmem:[%s1 + $0x528] sm:$0xff]
    %v204 = vld [vmem:[%s1 + $0x530] sm:$0xff]
    %v205 = vld [vmem:[%s1 + $0x538] sm:$0xff]
    %v206 = vld [vmem:[%s1 + $0x540] sm:$0xff]
    %v207 = vld [vmem:[%s1 + $0x548] sm:$0xff]
    %v208 = vld [vmem:[%s1 + $0x550] sm:$0xff]
    %v209 = vld [vmem:[%s1 + $0x558] sm:$0xff]
    %v210 = vld [vmem:[%s1 + $0x560] sm:$0xff]
    %v211 = vld [vmem:[%s1 + $0x568] sm:$0xff]
    %v212 = vld [vmem:[%s1 + $0x570] sm:$0xff]
    %v213 = vld [vmem:[%s1 + $0x578] sm:$0xff]
    %v214 = vld [vmem:[%s1 + $0x580] sm:$0xff]
    %v215 = vld [vmem:[%s1 + $0x588] sm:$0xff]
    %v216 = vld [vmem:[%s1 + $0x590] sm:$0xff]
    %v217 = vld [vmem:[%s1 + $0x598] sm:$0xff]
    %v218 = vld [vmem:[%s1 + $0x5a0] sm:$0xff]
    %v219 = vld [vmem:[%s1 + $0x5a8] sm:$0xff]
    %v220 = vld [vmem:[%s1 + $0x5b0] sm:$0xff]
    %v221 = vld [vmem:[%s1 + $0x5b8] sm:$0xff]
    %v222 = vld [vmem:[%s1 + $0x5c0] sm:$0xff]
    %v223 = vld [vmem:[%s1 + $0x5c8] sm:$0xff]
    %v224 = vld [vmem:[%s1 + $0x5d0] sm:$0xff]
    %v225 = vld [vmem:[%s1 + $0x5d8] sm:$0xff]
    %v226 = vld [vmem:[%s1 + $0x5e0] sm:$0xff]
    %v227 = vld [vmem:[%s1 + $0x5e8] sm:$0xff]
    %v228 = vld [vmem:[%s1 + $0x5f0] sm:$0xff]
    %v229 = vld [vmem:[%s1 + $0x5f8] sm:$0xff]
    %v230 = vld [vmem:[%s1 + $0x600] sm:$0xff]
    %v231 = vld [vmem:[%s1 + $0x608] sm:$0xff]
    %v232 = vld [vmem:[%s1 + $0x610] sm:$0xff]
    %v233 = vld [vmem:[%s1 + $0x618] sm:$0xff]
    %v234 = vld [vmem:[%s1 + $0x620] sm:$0xff]
    %v235 = vld [vmem:[%s1 + $0x628] sm:$0xff]
    %v236 = vld [vmem:[%s1 + $0x630] sm:$0xff]
    %v237 = vld [vmem:[%s1 + $0x638] sm:$0xff]
    %v238 = vld [vmem:[%s1 + $0x640] sm:$0xff]
    %v239 = vld [vmem:[%s1 + $0x648] sm:$0xff]
    %v240 = vld [vmem:[%s1 + $0x650] sm:$0xff]
    %v241 = vld [vmem:[%s1 + $0x658] sm:$0xff]
    %v242 = vld [vmem:[%s1 + $0x660] sm:$0xff]
    %v243 = vld [vmem:[%s1 + $0x668] sm:$0xff]
    %v244 = vld [vmem:[%s1 + $0x670] sm:$0xff]
    %v245 = vld [vmem:[%s1 + $0x678] sm:$0xff]
    %v246 = vld [vmem:[%s1 + $0x680] sm:$0xff]
    %v247 = vld [vmem:[%s1 + $0x688] sm:$0xff]
    %v248 = vld [vmem:[%s1 + $0x690] sm:$0xff]
    %v249 = vld [vmem:[%s1 + $0x698] sm:$0xff]
    %v250 = vld [vmem:[%s1 + $0x6a0] sm:$0xff]
    %v251 = vld [vmem:[%s1 + $0x6a8] sm:$0xff]
    %v252 = vld [vmem:[%s1 + $0x6b0] sm:$0xff]
    %v253 = vld [vmem:[%s1 + $0x6b8] sm:$0xff]
    %v254 = vld [vmem:[%s1 + $0x6c0] sm:$0xff]
    %v255 = vld [vmem:[%s1 + $0x6c8] sm:$0xff]
    %v256 = vld [vmem:[%s1 + $0x6d0] sm:$0xff]
    %v257 = vld [vmem:[%s1 + $0x6d8] sm:$0xff]
    %v258 = vld [vmem:[%s1 + $0x6e0] sm:$0xff]
    %v259 = vld [vmem:[%s1 + $0x6e8] sm:$0xff]
    %v260 = vld [vmem:[%s1 + $0x6f0] sm:$0xff]
    %v261 = vld [vmem:[%s1 + $0x6f8] sm:$0xff]
    %v262 = vld [vmem:[%s1 + $0x700] sm:$0xff]
    %v263 = vld [vmem:[%s1 + $0x708] sm:$0xff]
    %v264 = vld [vmem:[%s1 + $0x710] sm:$0xff]
    %v265 = vld [vmem:[%s1 + $0x718] sm:$0xff]
    %v266 = vld [vmem:[%s1 + $0x720] sm:$0xff]
    %v267 = vld [vmem:[%s1 + $0x728] sm:$0xff]
    %v268 = vld [vmem:[%s1 + $0x730] sm:$0xff]
    %v269 = vld [vmem:[%s1 + $0x738] sm:$0xff]
    %v270 = vld [vmem:[%s1 + $0x740] sm:$0xff]
    %v271 = vld [vmem:[%s1 + $0x748] sm:$0xff]
    %v272 = vld [vmem:[%s1 + $0x750] sm:$0xff]
    %v273 = vld [vmem:[%s1 + $0x758] sm:$0xff]
    %v274 = vld [vmem:[%s1 + $0x760] sm:$0xff]
    %v275 = vld [vmem:[%s1 + $0x768] sm:$0xff]
    %v276 = vld [vmem:[%s1 + $0x770] sm:$0xff]
    %v277 = vld [vmem:[%s1 + $0x778] sm:$0xff]
    %v278 = vld [vmem:[%s1 + $0x780] sm:$0xff]
    %v279 = vld [vmem:[%s1 + $0x788] sm:$0xff]
    %v280 = vld [vmem:[%s1 + $0x790] sm:$0xff]
    %v281 = vld [vmem:[%s1 + $0x798] sm:$0xff]
    %v282 = vld [vmem:[%s1 + $0x7a0] sm:$0xff]
    %v283 = vld [vmem:[%s1 + $0x7a8] sm:$0xff]
    %v284 = vld [vmem:[%s1 + $0x7b0] sm:$0xff]
    %v285 = vld [vmem:[%s1 + $0x7b8] sm:$0xff]
    %v286 = vld [vmem:[%s1 + $0x7c0] sm:$0xff]
    %v287 = vld [vmem:[%s1 + $0x7c8] sm:$0xff]
    %v288 = vld [vmem:[%s1 + $0x7d0] sm:$0xff]
    %v289 = vld [vmem:[%s1 + $0x7d8] sm:$0xff]
    %v290 = vld [vmem:[%s1 + $0x7e0] sm:$0xff]
    %v291 = vld [vmem:[%s1 + $0x7e8] sm:$0xff]
    %v292 = vld [vmem:[%s1 + $0x7f0] sm:$0xff]
    %v293 = vld [vmem:[%s1 + $0x7f8] sm:$0xff]
    %v294 = vld [vmem:[%s1 + $0x800] sm:$0xff]
    %v295 = vld [vmem:[%s1 + $0x808] sm:$0xff]
    %v296 = vld [vmem:[%s1 + $0x810] sm:$0xff]
    %v297 = vld [vmem:[%s1 + $0x818] sm:$0xff]
    %v298 = vld [vmem:[%s1 + $0x820] sm:$0xff]
    %v299 = vld [vmem:[%s1 + $0x828] sm:$0xff]
    %v300 = vld [vmem:[%s1 + $0x830] sm:$0xff]
    %v301 = vld [vmem:[%s1 + $0x838] sm:$0xff]
    %v302 = vld [vmem:[%s1 + $0x840] sm:$0xff]
    %v303 = vld [vmem:[%s1 + $0x848] sm:$0xff]
    %v304 = vld [vmem:[%s1 + $0x850] sm:$0xff]
    %v305 = vld [vmem:[%s1 + $0x858] sm:$0xff]
    %v306 = vld [vmem:[%s1 + $0x860] sm:$0xff]
    %v307 = vld [vmem:[%s1 + $0x868] sm:$0xff]
    %v308 = vld [vmem:[%s1 + $0x870] sm:$0xff]
    %v309 = vld [vmem:[%s1 + $0x878] sm:$0xff]
    %v310 = vld [vmem:[%s1 + $0x880] sm:$0xff]
    %v311 = vld [vmem:[%s1 + $0x888] sm:$0xff]
    %v312 = vld [vmem:[%s1 + $0x890] sm:$0xff]
    %v313 = vld [vmem:[%s1 + $0x898] sm:$0xff]
    %v314 = vld [vmem:[%s1 + $0x8a0] sm:$0xff]
    %v315 = vld [vmem:[%s1 + $0x8a8] sm:$0xff]
    %v316 = vld [vmem:[%s1 + $0x8b0] sm:$0xff]
    %v317 = vld [vmem:[%s1 + $0x8b8] sm:$0xff]
    %v318 = vld [vmem:[%s1 + $0x8c0] sm:$0xff]
    %v319 = vld [vmem:[%s1 + $0x8c8] sm:$0xff]
    %v320 = vld [vmem:[%s1 + $0x8d0] sm:$0xff]
    %v321 = vld [vmem:[%s1 + $0x8d8] sm:$0xff]
    %v322 = vld [vmem:[%s1 + $0x8e0] sm:$0xff]
    %v323 = vld [vmem:[%s1 + $0x8e8] sm:$0xff]
    %v324 = vld [vmem:[%s1 + $0x8f0] sm:$0xff]
    %v325 = vld [vmem:[%s1 + $0x8f8] sm:$0xff]
    %v326 = vld [vmem:[%s1 + $0x900] sm:$0xff]
    %v327 = vld [vmem:[%s1 + $0x908] sm:$0xff]
    %v328 = vld [vmem:[%s1 + $0x910] sm:$0xff]
    %v329 = vld [vmem:[%s1 + $0x918] sm:$0xff]
    %v330 = vld [vmem:[%s1 + $0x920] sm:$0xff]
    %v331 = vld [vmem:[%s1 + $0x928] sm:$0xff]
    %v332 = vld [vmem:[%s1 + $0x930] sm:$0xff]
    %v333 = vld [vmem:[%s1 + $0x938] sm:$0xff]
    %v334 = vld [vmem:[%s1 + $0x940] sm:$0xff]
    %v335 = vld [vmem:[%s1 + $0x948] sm:$0xff]
    %v336 = vld [vmem:[%s1 + $0x950] sm:$0xff]
    %v337 = vld [vmem:[%s1 + $0x958] sm:$0xff]
    %v338 = vld [vmem:[%s1 + $0x960] sm:$0xff]
    %v339 = vld [vmem:[%s1 + $0x968] sm:$0xff]
    %v340 = vld [vmem:[%s1 + $0x970] sm:$0xff]
    %v341 = vld [vmem:[%s1 + $0x978] sm:$0xff]
    %v342 = vld [vmem:[%s1 + $0x980] sm:$0xff]
    %v343 = vld [vmem:[%s1 + $0x988] sm:$0xff]
    %v344 = vld [vmem:[%s1 + $0x990] sm:$0xff]
    %v345 = vld [vmem:[%s1 + $0x998] sm:$0xff]
    %v346 = vld [vmem:[%s1 + $0x9a0] sm:$0xff]
    %v347 = vld [vmem:[%s1 + $0x9a8] sm:$0xff]
    %v348 = vld [vmem:[%s1 + $0x9b0] sm:$0xff]
    %v349 = vld [vmem:[%s1 + $0x9b8] sm:$0xff]
    %v350 = vld [vmem:[%s1 + $0x9c0] sm:$0xff]
    %v351 = vld [vmem:[%s1 + $0x9c8] sm:$0xff]
    %v352 = vld [vmem:[%s1 + $0x9d0] sm:$0xff]
    %v353 = vld [vmem:[%s1 + $0x9d8] sm:$0xff]
    %v354 = vld [vmem:[%s1 + $0x9e0] sm:$0xff]
    %v355 = vld [vmem:[%s1 + $0x9e8] sm:$0xff]
    %v356 = vld [vmem:[%s1 + $0x9f0] sm:$0xff]
    %v357 = vld [vmem:[%s1 + $0x9f8] sm:$0xff]
    %v358 = vld [vmem:[%s1 + $0xa00] sm:$0xff]
    %v359 = vld [vmem:[%s1 + $0xa08] sm:$0xff]
    %v360 = vld [vmem:[%s1 + $0xa10] sm:$0xff]
    %v361 = vld [vmem:[%s1 + $0xa18] sm:$0xff]
    %v362 = vld [vmem:[%s1 + $0xa20] sm:$0xff]
    %v363 = vld [vmem:[%s1 + $0xa28] sm:$0xff]
    %v364 = vld [vmem:[%s1 + $0xa30] sm:$0xff]
    %v365 = vld [vmem:[%s1 + $0xa38] sm:$0xff]
    %v366 = vld [vmem:[%s1 + $0xa40] sm:$0xff]
    %v367 = vld [vmem:[%s1 + $0xa48] sm:$0xff]
    %v368 = vld [vmem:[%s1 + $0xa50] sm:$0xff]
    %v369 = vld [vmem:[%s1 + $0xa58] sm:$0xff]
    %v370 = vld [vmem:[%s1 + $0xa60] sm:$0xff]
    %v371 = vld [vmem:[%s1 + $0xa68] sm:$0xff]
    %v372 = vld [vmem:[%s1 + $0xa70] sm:$0xff]
    %v373 = vld [vmem:[%s1 + $0xa78] sm:$0xff]
    %v374 = vld [vmem:[%s1 + $0xa80] sm:$0xff]
    %v375 = vld [vmem:[%s1 + $0xa88] sm:$0xff]
    %v376 = vld [vmem:[%s1 + $0xa90] sm:$0xff]
    %v377 = vld [vmem:[%s1 + $0xa98] sm:$0xff]
    %v378 = vld [vmem:[%s1 + $0xaa0] sm:$0xff]
    %v379 = vld [vmem:[%s1 + $0xaa8] sm:$0xff]
    %v380 = vld [vmem:[%s1 + $0xab0] sm:$0xff]
    %v381 = vld [vmem:[%s1 + $0xab8] sm:$0xff]
    %v382 = vld [vmem:[%s1 + $0xac0] sm:$0xff]
    %v383 = vld [vmem:[%s1 + $0xac8] sm:$0xff]
    %v384 = vld [vmem:[%s1 + $0xad0] sm:$0xff]
    %v385 = vld [vmem:[%s1 + $0xad8] sm:$0xff]
    %v386 = vld [vmem:[%s1 + $0xae0] sm:$0xff]
    %v387 = vld [vmem:[%s1 + $0xae8] sm:$0xff]
    %v388 = vld [vmem:[%s1 + $0xaf0] sm:$0xff]
    %v389 = vld [vmem:[%s1 + $0xaf8] sm:$0xff]
    %v390 = vld [vmem:[%s1 + $0xb00] sm:$0xff]
    %v391 = vld [vmem:[%s1 + $0xb08] sm:$0xff]
    %v392 = vld [vmem:[%s1 + $0xb10] sm:$0xff]
    %v393 = vld [vmem:[%s1 + $0xb18] sm:$0xff]
    %v394 = vld [vmem:[%s1 + $0xb20] sm:$0xff]
    %v395 = vld [vmem:[%s1 + $0xb28] sm:$0xff]
    %v396 = vld [vmem:[%s1 + $0xb30] sm:$0xff]
    %v397 = vld [vmem:[%s1 + $0xb38] sm:$0xff]
    %v398 = vld [vmem:[%s1 + $0xb40] sm:$0xff]
    %v399 = vld [vmem:[%s1 + $0xb48] sm:$0xff]
    %v400 = vld [vmem:[%s1 + $0xb50] sm:$0xff]
    %v401 = vld [vmem:[%s1 + $0xb58] sm:$0xff]
    %v402 = vld [vmem:[%s1 + $0xb60] sm:$0xff]
    %v403 = vld [vmem:[%s1 + $0xb68] sm:$0xff]
    %v404 = vld [vmem:[%s1 + $0xb70] sm:$0xff]
    %v405 = vld [vmem:[%s1 + $0xb78] sm:$0xff]
    %v406 = vld [vmem:[%s1 + $0xb80] sm:$0xff]
    %v407 = vld [vmem:[%s1 + $0xb88] sm:$0xff]
    %v408 = vld [vmem:[%s1 + $0xb90] sm:$0xff]
    %v409 = vld [vmem:[%s1 + $0xb98] sm:$0xff]
    %v410 = vld [vmem:[%s1 + $0xba0] sm:$0xff]
    %v411 = vld [vmem:[%s1 + $0xba8] sm:$0xff]
    %v412 = vld [vmem:[%s1 + $0xbb0] sm:$0xff]
    %v413 = vld [vmem:[%s1 + $0xbb8] sm:$0xff]
    %v414 = vld [vmem:[%s1 + $0xbc0] sm:$0xff]
    %v415 = vld [vmem:[%s1 + $0xbc8] sm:$0xff]
    %v416 = vld [vmem:[%s1 + $0xbd0] sm:$0xff]
    %v417 = vld [vmem:[%s1 + $0xbd8] sm:$0xff]
    %v418 = vld [vmem:[%s1 + $0xbe0] sm:$0xff]
    %v419 = vld [vmem:[%s1 + $0xbe8] sm:$0xff]
    %v420 = vld [vmem:[%s1 + $0xbf0] sm:$0xff]
    %v421 = vld [vmem:[%s1 + $0xbf8] sm:$0xff]
    %v422 = vld [vmem:[%s1 + $0xc00] sm:$0xff]
    %v423 = vld [vmem:[%s1 + $0xc08] sm:$0xff]
    %v424 = vld [vmem:[%s1 + $0xc10] sm:$0xff]
    %v425 = vld [vmem:[%s1 + $0xc18] sm:$0xff]
    %v426 = vld [vmem:[%s1 + $0xc20] sm:$0xff]
    %v427 = vld [vmem:[%s1 + $0xc28] sm:$0xff]
    %v428 = vld [vmem:[%s1 + $0xc30] sm:$0xff]
    %v429 = vld [vmem:[%s1 + $0xc38] sm:$0xff]
    %v430 = vld [vmem:[%s1 + $0xc40] sm:$0xff]
    %v431 = vld [vmem:[%s1 + $0xc48] sm:$0xff]
    %v432 = vld [vmem:[%s1 + $0xc50] sm:$0xff]
    %v433 = vld [vmem:[%s1 + $0xc58] sm:$0xff]
    %v434 = vld [vmem:[%s1 + $0xc60] sm:$0xff]
    %v435 = vld [vmem:[%s1 + $0xc68] sm:$0xff]
    %v436 = vld [vmem:[%s1 + $0xc70] sm:$0xff]
    %v437 = vld [vmem:[%s1 + $0xc78] sm:$0xff]
    %v438 = vld [vmem:[%s1 + $0xc80] sm:$0xff]
    %v439 = vld [vmem:[%s1 + $0xc88] sm:$0xff]
    %v440 = vld [vmem:[%s1 + $0xc90] sm:$0xff]
    %v441 = vld [vmem:[%s1 + $0xc98] sm:$0xff]
    %v442 = vld [vmem:[%s1 + $0xca0] sm:$0xff]
    %v443 = vld [vmem:[%s1 + $0xca8] sm:$0xff]
    %v444 = vld [vmem:[%s1 + $0xcb0] sm:$0xff]
    %v445 = vld [vmem:[%s1 + $0xcb8] sm:$0xff]
    %v446 = vld [vmem:[%s1 + $0xcc0] sm:$0xff]
    %v447 = vld [vmem:[%s1 + $0xcc8] sm:$0xff]
    %v448 = vld [vmem:[%s1 + $0xcd0] sm:$0xff]
    %v449 = vld [vmem:[%s1 + $0xcd8] sm:$0xff]
    %v450 = vld [vmem:[%s1 + $0xce0] sm:$0xff]
    %v451 = vld [vmem:[%s1 + $0xce8] sm:$0xff]
    %v452 = vld [vmem:[%s1 + $0xcf0] sm:$0xff]
    %v453 = vld [vmem:[%s1 + $0xcf8] sm:$0xff]
    %v454 = vld [vmem:[%s1 + $0xd00] sm:$0xff]
    %v455 = vld [vmem:[%s1 + $0xd08] sm:$0xff]
    %v456 = vld [vmem:[%s1 + $0xd10] sm:$0xff]
    %v457 = vld [vmem:[%s1 + $0xd18] sm:$0xff]
    %v458 = vld [vmem:[%s1 + $0xd20] sm:$0xff]
    %v459 = vld [vmem:[%s1 + $0xd28] sm:$0xff]
    %v460 = vld [vmem:[%s1 + $0xd30] sm:$0xff]
    %v461 = vld [vmem:[%s1 + $0xd38] sm:$0xff]
    %v462 = vld [vmem:[%s1 + $0xd40] sm:$0xff]
    %v463 = vld [vmem:[%s1 + $0xd48] sm:$0xff]
    %v464 = vld [vmem:[%s1 + $0xd50] sm:$0xff]
    %v465 = vld [vmem:[%s1 + $0xd58] sm:$0xff]
    %v466 = vld [vmem:[%s1 + $0xd60] sm:$0xff]
    %v467 = vld [vmem:[%s1 + $0xd68] sm:$0xff]
    %v468 = vld [vmem:[%s1 + $0xd70] sm:$0xff]
    %v469 = vld [vmem:[%s1 + $0xd78] sm:$0xff]
    %v470 = vld [vmem:[%s1 + $0xd80] sm:$0xff]
    %v471 = vld [vmem:[%s1 + $0xd88] sm:$0xff]
    %v472 = vld [vmem:[%s1 + $0xd90] sm:$0xff]
    %v473 = vld [vmem:[%s1 + $0xd98] sm:$0xff]
    %v474 = vld [vmem:[%s1 + $0xda0] sm:$0xff]
    %v475 = vld [vmem:[%s1 + $0xda8] sm:$0xff]
    %v476 = vld [vmem:[%s1 + $0xdb0] sm:$0xff]
    %v477 = vld [vmem:[%s1 + $0xdb8] sm:$0xff]
    %v478 = vld [vmem:[%s1 + $0xdc0] sm:$0xff]
    %v479 = vld [vmem:[%s1 + $0xdc8] sm:$0xff]
    %v480 = vld [vmem:[%s1 + $0xdd0] sm:$0xff]
    %v481 = vld [vmem:[%s1 + $0xdd8] sm:$0xff]
    %v482 = vld [vmem:[%s1 + $0xde0] sm:$0xff]
    %v483 = vld [vmem:[%s1 + $0xde8] sm:$0xff]
    %v484 = vld [vmem:[%s1 + $0xdf0] sm:$0xff]
    %v485 = vld [vmem:[%s1 + $0xdf8] sm:$0xff]
    %v486 = vld [vmem:[%s2] sm:$0xf]
    %v488 = vlaneseq
    %v489 = vshrl.u32 %v488, 7
    %v490 = vsub.s32 0, %v489
    %v491 = vrot.slane %v486, %v490
    %v492 = vlaneseq
    %v493 = vshrl.u32 %v492, 7
    %v494 = vsub.s32 1, %v493
    %v495 = vrot.slane %v486, %v494
    %v496 = vlaneseq
    %v497 = vshrl.u32 %v496, 7
    %v498 = vsub.s32 2, %v497
    %v499 = vrot.slane %v486, %v498
    %v500 = vlaneseq
    %v501 = vshrl.u32 %v500, 7
    %v502 = vsub.s32 3, %v501
    %v503 = vrot.slane %v486, %v502
    %v515 = vunpack.c.l.b16 %v31
    %v516 = vunpack.c.h.b16 %v31
    %v517 = vunpack.c.l.b16 %v32
    %v518 = vunpack.c.h.b16 %v32
    %v519 = vunpack.c.l.b16 %v33
    %v520 = vunpack.c.h.b16 %v33
    %v521 = vunpack.c.l.b16 %v34
    %v522 = vunpack.c.h.b16 %v34
    %v523 = vunpack.c.l.b16 %v35
    %v524 = vunpack.c.h.b16 %v35
    %v525 = vunpack.c.l.b16 %v36
    %v526 = vunpack.c.h.b16 %v36
    %v527 = vunpack.c.l.b16 %v37
    %v528 = vunpack.c.h.b16 %v37
    %v529 = vpack.c.b16 %v515, %v515
    %v530 = vpack.c.b16 %v516, %v516
    %v531 = vpack.c.b16 %v517, %v517
    %v532 = vpack.c.b16 %v518, %v518
    %v533 = vpack.c.b16 %v519, %v519
    %v534 = vpack.c.b16 %v520, %v520
    %v535 = vpack.c.b16 %v521, %v521
    %v536 = vpack.c.b16 %v522, %v522
    %v537 = vpack.c.b16 %v523, %v523
    %v538 = vpack.c.b16 %v524, %v524
    %v539 = vpack.c.b16 %v525, %v525
    %v540 = vpack.c.b16 %v526, %v526
    %v541 = vpack.c.b16 %v527, %v527
    %v542 = vpack.c.b16 %v528, %v528
    %v1005 = vunpack.c.l.b16 %v38
    %v1006 = vunpack.c.h.b16 %v38
    %v1007 = vunpack.c.l.b16 %v39
    %v1008 = vunpack.c.h.b16 %v39
    %v1009 = vunpack.c.l.b16 %v40
    %v1010 = vunpack.c.h.b16 %v40
    %v1011 = vunpack.c.l.b16 %v41
    %v1012 = vunpack.c.h.b16 %v41
    %v1013 = vunpack.c.l.b16 %v42
    %v1014 = vunpack.c.h.b16 %v42
    %v1015 = vunpack.c.l.b16 %v43
    %v1016 = vunpack.c.h.b16 %v43
    %v1017 = vunpack.c.l.b16 %v44
    %v1018 = vunpack.c.h.b16 %v44
    %v1019 = vunpack.c.l.b16 %v45
    %v1020 = vunpack.c.h.b16 %v45
    %v1021 = vunpack.c.l.b16 %v46
    %v1022 = vunpack.c.h.b16 %v46
    %v1023 = vunpack.c.l.b16 %v47
    %v1024 = vunpack.c.h.b16 %v47
    %v1025 = vunpack.c.l.b16 %v48
    %v1026 = vunpack.c.h.b16 %v48
    %v1027 = vunpack.c.l.b16 %v49
    %v1028 = vunpack.c.h.b16 %v49
    %v1029 = vunpack.c.l.b16 %v50
    %v1030 = vunpack.c.h.b16 %v50
    %v1031 = vunpack.c.l.b16 %v51
    %v1032 = vunpack.c.h.b16 %v51
    %v1033 = vunpack.c.l.b16 %v52
    %v1034 = vunpack.c.h.b16 %v52
    %v1035 = vunpack.c.l.b16 %v53
    %v1036 = vunpack.c.h.b16 %v53
    %v1037 = vunpack.c.l.b16 %v54
    %v1038 = vunpack.c.h.b16 %v54
    %v1039 = vunpack.c.l.b16 %v55
    %v1040 = vunpack.c.h.b16 %v55
    %v1041 = vunpack.c.l.b16 %v56
    %v1042 = vunpack.c.h.b16 %v56
    %v1043 = vunpack.c.l.b16 %v57
    %v1044 = vunpack.c.h.b16 %v57
    %v1045 = vunpack.c.l.b16 %v58
    %v1046 = vunpack.c.h.b16 %v58
    %v1047 = vunpack.c.l.b16 %v59
    %v1048 = vunpack.c.h.b16 %v59
    %v1049 = vunpack.c.l.b16 %v60
    %v1050 = vunpack.c.h.b16 %v60
    %v1051 = vunpack.c.l.b16 %v61
    %v1052 = vunpack.c.h.b16 %v61
    %v1053 = vunpack.c.l.b16 %v62
    %v1054 = vunpack.c.h.b16 %v62
    %v1055 = vunpack.c.l.b16 %v63
    %v1056 = vunpack.c.h.b16 %v63
    %v1057 = vunpack.c.l.b16 %v64
    %v1058 = vunpack.c.h.b16 %v64
    %v1059 = vunpack.c.l.b16 %v65
    %v1060 = vunpack.c.h.b16 %v65
    %v1061 = vunpack.c.l.b16 %v66
    %v1062 = vunpack.c.h.b16 %v66
    %v1063 = vunpack.c.l.b16 %v67
    %v1064 = vunpack.c.h.b16 %v67
    %v1065 = vunpack.c.l.b16 %v68
    %v1066 = vunpack.c.h.b16 %v68
    %v1067 = vunpack.c.l.b16 %v69
    %v1068 = vunpack.c.h.b16 %v69
    %v1069 = vunpack.c.l.b16 %v70
    %v1070 = vunpack.c.h.b16 %v70
    %v1071 = vunpack.c.l.b16 %v71
    %v1072 = vunpack.c.h.b16 %v71
    %v1073 = vunpack.c.l.b16 %v72
    %v1074 = vunpack.c.h.b16 %v72
    %v1075 = vunpack.c.l.b16 %v73
    %v1076 = vunpack.c.h.b16 %v73
    %v1077 = vunpack.c.l.b16 %v74
    %v1078 = vunpack.c.h.b16 %v74
    %v1079 = vunpack.c.l.b16 %v75
    %v1080 = vunpack.c.h.b16 %v75
    %v1081 = vunpack.c.l.b16 %v76
    %v1082 = vunpack.c.h.b16 %v76
    %v1083 = vunpack.c.l.b16 %v77
    %v1084 = vunpack.c.h.b16 %v77
    %v1085 = vunpack.c.l.b16 %v78
    %v1086 = vunpack.c.h.b16 %v78
    %v1087 = vunpack.c.l.b16 %v79
    %v1088 = vunpack.c.h.b16 %v79
    %v1089 = vunpack.c.l.b16 %v80
    %v1090 = vunpack.c.h.b16 %v80
    %v1091 = vunpack.c.l.b16 %v81
    %v1092 = vunpack.c.h.b16 %v81
    %v1093 = vunpack.c.l.b16 %v82
    %v1094 = vunpack.c.h.b16 %v82
    %v1095 = vunpack.c.l.b16 %v83
    %v1096 = vunpack.c.h.b16 %v83
    %v1097 = vunpack.c.l.b16 %v84
    %v1098 = vunpack.c.h.b16 %v84
    %v1099 = vunpack.c.l.b16 %v85
    %v1100 = vunpack.c.h.b16 %v85
    %v1101 = vunpack.c.l.b16 %v86
    %v1102 = vunpack.c.h.b16 %v86
    %v1103 = vunpack.c.l.b16 %v87
    %v1104 = vunpack.c.h.b16 %v87
    %v1105 = vunpack.c.l.b16 %v88
    %v1106 = vunpack.c.h.b16 %v88
    %v1107 = vunpack.c.l.b16 %v89
    %v1108 = vunpack.c.h.b16 %v89
    %v1109 = vunpack.c.l.b16 %v90
    %v1110 = vunpack.c.h.b16 %v90
    %v1111 = vunpack.c.l.b16 %v91
    %v1112 = vunpack.c.h.b16 %v91
    %v1113 = vunpack.c.l.b16 %v92
    %v1114 = vunpack.c.h.b16 %v92
    %v1115 = vunpack.c.l.b16 %v93
    %v1116 = vunpack.c.h.b16 %v93
    %v1117 = vunpack.c.l.b16 %v94
    %v1118 = vunpack.c.h.b16 %v94
    %v1119 = vunpack.c.l.b16 %v95
    %v1120 = vunpack.c.h.b16 %v95
    %v1121 = vunpack.c.l.b16 %v96
    %v1122 = vunpack.c.h.b16 %v96
    %v1123 = vunpack.c.l.b16 %v97
    %v1124 = vunpack.c.h.b16 %v97
    %v1125 = vunpack.c.l.b16 %v98
    %v1126 = vunpack.c.h.b16 %v98
    %v1127 = vunpack.c.l.b16 %v99
    %v1128 = vunpack.c.h.b16 %v99
    %v1129 = vunpack.c.l.b16 %v100
    %v1130 = vunpack.c.h.b16 %v100
    %v1131 = vunpack.c.l.b16 %v101
    %v1132 = vunpack.c.h.b16 %v101
    %v1133 = vunpack.c.l.b16 %v102
    %v1134 = vunpack.c.h.b16 %v102
    %v1135 = vunpack.c.l.b16 %v103
    %v1136 = vunpack.c.h.b16 %v103
    %v1137 = vunpack.c.l.b16 %v104
    %v1138 = vunpack.c.h.b16 %v104
    %v1139 = vunpack.c.l.b16 %v105
    %v1140 = vunpack.c.h.b16 %v105
    %v1141 = vunpack.c.l.b16 %v106
    %v1142 = vunpack.c.h.b16 %v106
    %v1143 = vunpack.c.l.b16 %v107
    %v1144 = vunpack.c.h.b16 %v107
    %v1145 = vunpack.c.l.b16 %v108
    %v1146 = vunpack.c.h.b16 %v108
    %v1147 = vunpack.c.l.b16 %v109
    %v1148 = vunpack.c.h.b16 %v109
    %v1149 = vunpack.c.l.b16 %v110
    %v1150 = vunpack.c.h.b16 %v110
    %v1151 = vunpack.c.l.b16 %v111
    %v1152 = vunpack.c.h.b16 %v111
    %v1153 = vunpack.c.l.b16 %v112
    %v1154 = vunpack.c.h.b16 %v112
    %v1155 = vunpack.c.l.b16 %v113
    %v1156 = vunpack.c.h.b16 %v113
    %v1157 = vunpack.c.l.b16 %v114
    %v1158 = vunpack.c.h.b16 %v114
    %v1159 = vunpack.c.l.b16 %v115
    %v1160 = vunpack.c.h.b16 %v115
    %v1161 = vunpack.c.l.b16 %v116
    %v1162 = vunpack.c.h.b16 %v116
    %v1163 = vunpack.c.l.b16 %v117
    %v1164 = vunpack.c.h.b16 %v117
    %v1165 = vunpack.c.l.b16 %v118
    %v1166 = vunpack.c.h.b16 %v118
    %v1167 = vunpack.c.l.b16 %v119
    %v1168 = vunpack.c.h.b16 %v119
    %v1169 = vunpack.c.l.b16 %v120
    %v1170 = vunpack.c.h.b16 %v120
    %v1171 = vunpack.c.l.b16 %v121
    %v1172 = vunpack.c.h.b16 %v121
    %v1173 = vunpack.c.l.b16 %v122
    %v1174 = vunpack.c.h.b16 %v122
    %v1175 = vunpack.c.l.b16 %v123
    %v1176 = vunpack.c.h.b16 %v123
    %v1177 = vunpack.c.l.b16 %v124
    %v1178 = vunpack.c.h.b16 %v124
    %v1179 = vunpack.c.l.b16 %v125
    %v1180 = vunpack.c.h.b16 %v125
    %v1181 = vunpack.c.l.b16 %v126
    %v1182 = vunpack.c.h.b16 %v126
    %v1183 = vunpack.c.l.b16 %v127
    %v1184 = vunpack.c.h.b16 %v127
    %v1185 = vunpack.c.l.b16 %v128
    %v1186 = vunpack.c.h.b16 %v128
    %v1187 = vunpack.c.l.b16 %v129
    %v1188 = vunpack.c.h.b16 %v129
    %v1189 = vunpack.c.l.b16 %v130
    %v1190 = vunpack.c.h.b16 %v130
    %v1191 = vunpack.c.l.b16 %v131
    %v1192 = vunpack.c.h.b16 %v131
    %v1193 = vunpack.c.l.b16 %v132
    %v1194 = vunpack.c.h.b16 %v132
    %v1195 = vunpack.c.l.b16 %v133
    %v1196 = vunpack.c.h.b16 %v133
    %v1197 = vunpack.c.l.b16 %v134
    %v1198 = vunpack.c.h.b16 %v134
    %v1199 = vunpack.c.l.b16 %v135
    %v1200 = vunpack.c.h.b16 %v135
    %v1201 = vunpack.c.l.b16 %v136
    %v1202 = vunpack.c.h.b16 %v136
    %v1203 = vunpack.c.l.b16 %v137
    %v1204 = vunpack.c.h.b16 %v137
    %v1205 = vunpack.c.l.b16 %v138
    %v1206 = vunpack.c.h.b16 %v138
    %v1207 = vunpack.c.l.b16 %v139
    %v1208 = vunpack.c.h.b16 %v139
    %v1209 = vunpack.c.l.b16 %v140
    %v1210 = vunpack.c.h.b16 %v140
    %v1211 = vunpack.c.l.b16 %v141
    %v1212 = vunpack.c.h.b16 %v141
    %v1213 = vunpack.c.l.b16 %v142
    %v1214 = vunpack.c.h.b16 %v142
    %v1215 = vunpack.c.l.b16 %v143
    %v1216 = vunpack.c.h.b16 %v143
    %v1217 = vunpack.c.l.b16 %v144
    %v1218 = vunpack.c.h.b16 %v144
    %v1219 = vunpack.c.l.b16 %v145
    %v1220 = vunpack.c.h.b16 %v145
    %v1221 = vunpack.c.l.b16 %v146
    %v1222 = vunpack.c.h.b16 %v146
    %v1223 = vunpack.c.l.b16 %v147
    %v1224 = vunpack.c.h.b16 %v147
    %v1225 = vunpack.c.l.b16 %v148
    %v1226 = vunpack.c.h.b16 %v148
    %v1227 = vunpack.c.l.b16 %v149
    %v1228 = vunpack.c.h.b16 %v149
    %v1229 = vunpack.c.l.b16 %v150
    %v1230 = vunpack.c.h.b16 %v150
    %v1231 = vunpack.c.l.b16 %v151
    %v1232 = vunpack.c.h.b16 %v151
    %v1233 = vunpack.c.l.b16 %v152
    %v1234 = vunpack.c.h.b16 %v152
    %v1235 = vunpack.c.l.b16 %v153
    %v1236 = vunpack.c.h.b16 %v153
    %v1237 = vunpack.c.l.b16 %v154
    %v1238 = vunpack.c.h.b16 %v154
    %v1239 = vunpack.c.l.b16 %v155
    %v1240 = vunpack.c.h.b16 %v155
    %v1241 = vunpack.c.l.b16 %v156
    %v1242 = vunpack.c.h.b16 %v156
    %v1243 = vunpack.c.l.b16 %v157
    %v1244 = vunpack.c.h.b16 %v157
    %v1245 = vunpack.c.l.b16 %v158
    %v1246 = vunpack.c.h.b16 %v158
    %v1247 = vunpack.c.l.b16 %v159
    %v1248 = vunpack.c.h.b16 %v159
    %v1249 = vunpack.c.l.b16 %v160
    %v1250 = vunpack.c.h.b16 %v160
    %v1251 = vunpack.c.l.b16 %v161
    %v1252 = vunpack.c.h.b16 %v161
    %v1253 = vunpack.c.l.b16 %v162
    %v1254 = vunpack.c.h.b16 %v162
    %v1255 = vunpack.c.l.b16 %v163
    %v1256 = vunpack.c.h.b16 %v163
    %v1257 = vunpack.c.l.b16 %v164
    %v1258 = vunpack.c.h.b16 %v164
    %v1259 = vunpack.c.l.b16 %v165
    %v1260 = vunpack.c.h.b16 %v165
    %v1261 = vunpack.c.l.b16 %v166
    %v1262 = vunpack.c.h.b16 %v166
    %v1263 = vunpack.c.l.b16 %v167
    %v1264 = vunpack.c.h.b16 %v167
    %v1265 = vunpack.c.l.b16 %v168
    %v1266 = vunpack.c.h.b16 %v168
    %v1267 = vunpack.c.l.b16 %v169
    %v1268 = vunpack.c.h.b16 %v169
    %v1269 = vunpack.c.l.b16 %v170
    %v1270 = vunpack.c.h.b16 %v170
    %v1271 = vunpack.c.l.b16 %v171
    %v1272 = vunpack.c.h.b16 %v171
    %v1273 = vunpack.c.l.b16 %v172
    %v1274 = vunpack.c.h.b16 %v172
    %v1275 = vunpack.c.l.b16 %v173
    %v1276 = vunpack.c.h.b16 %v173
    %v1277 = vunpack.c.l.b16 %v174
    %v1278 = vunpack.c.h.b16 %v174
    %v1279 = vunpack.c.l.b16 %v175
    %v1280 = vunpack.c.h.b16 %v175
    %v1281 = vunpack.c.l.b16 %v176
    %v1282 = vunpack.c.h.b16 %v176
    %v1283 = vunpack.c.l.b16 %v177
    %v1284 = vunpack.c.h.b16 %v177
    %v1285 = vunpack.c.l.b16 %v178
    %v1286 = vunpack.c.h.b16 %v178
    %v1287 = vunpack.c.l.b16 %v179
    %v1288 = vunpack.c.h.b16 %v179
    %v1289 = vunpack.c.l.b16 %v180
    %v1290 = vunpack.c.h.b16 %v180
    %v1291 = vunpack.c.l.b16 %v181
    %v1292 = vunpack.c.h.b16 %v181
    %v1293 = vunpack.c.l.b16 %v182
    %v1294 = vunpack.c.h.b16 %v182
    %v1295 = vunpack.c.l.b16 %v183
    %v1296 = vunpack.c.h.b16 %v183
    %v1297 = vunpack.c.l.b16 %v184
    %v1298 = vunpack.c.h.b16 %v184
    %v1299 = vunpack.c.l.b16 %v185
    %v1300 = vunpack.c.h.b16 %v185
    %v1301 = vunpack.c.l.b16 %v186
    %v1302 = vunpack.c.h.b16 %v186
    %v1303 = vunpack.c.l.b16 %v187
    %v1304 = vunpack.c.h.b16 %v187
    %v1305 = vunpack.c.l.b16 %v188
    %v1306 = vunpack.c.h.b16 %v188
    %v1307 = vunpack.c.l.b16 %v189
    %v1308 = vunpack.c.h.b16 %v189
    %v1309 = vunpack.c.l.b16 %v190
    %v1310 = vunpack.c.h.b16 %v190
    %v1311 = vunpack.c.l.b16 %v191
    %v1312 = vunpack.c.h.b16 %v191
    %v1313 = vunpack.c.l.b16 %v192
    %v1314 = vunpack.c.h.b16 %v192
    %v1315 = vunpack.c.l.b16 %v193
    %v1316 = vunpack.c.h.b16 %v193
    %v1317 = vunpack.c.l.b16 %v194
    %v1318 = vunpack.c.h.b16 %v194
    %v1319 = vunpack.c.l.b16 %v195
    %v1320 = vunpack.c.h.b16 %v195
    %v1321 = vunpack.c.l.b16 %v196
    %v1322 = vunpack.c.h.b16 %v196
    %v1323 = vunpack.c.l.b16 %v197
    %v1324 = vunpack.c.h.b16 %v197
    %v1325 = vunpack.c.l.b16 %v198
    %v1326 = vunpack.c.h.b16 %v198
    %v1327 = vunpack.c.l.b16 %v199
    %v1328 = vunpack.c.h.b16 %v199
    %v1329 = vunpack.c.l.b16 %v200
    %v1330 = vunpack.c.h.b16 %v200
    %v1331 = vunpack.c.l.b16 %v201
    %v1332 = vunpack.c.h.b16 %v201
    %v1333 = vunpack.c.l.b16 %v202
    %v1334 = vunpack.c.h.b16 %v202
    %v1335 = vunpack.c.l.b16 %v203
    %v1336 = vunpack.c.h.b16 %v203
    %v1337 = vunpack.c.l.b16 %v204
    %v1338 = vunpack.c.h.b16 %v204
    %v1339 = vunpack.c.l.b16 %v205
    %v1340 = vunpack.c.h.b16 %v205
    %v1341 = vunpack.c.l.b16 %v206
    %v1342 = vunpack.c.h.b16 %v206
    %v1343 = vunpack.c.l.b16 %v207
    %v1344 = vunpack.c.h.b16 %v207
    %v1345 = vunpack.c.l.b16 %v208
    %v1346 = vunpack.c.h.b16 %v208
    %v1347 = vunpack.c.l.b16 %v209
    %v1348 = vunpack.c.h.b16 %v209
    %v1349 = vunpack.c.l.b16 %v210
    %v1350 = vunpack.c.h.b16 %v210
    %v1351 = vunpack.c.l.b16 %v211
    %v1352 = vunpack.c.h.b16 %v211
    %v1353 = vunpack.c.l.b16 %v212
    %v1354 = vunpack.c.h.b16 %v212
    %v1355 = vunpack.c.l.b16 %v213
    %v1356 = vunpack.c.h.b16 %v213
    %v1357 = vunpack.c.l.b16 %v214
    %v1358 = vunpack.c.h.b16 %v214
    %v1359 = vunpack.c.l.b16 %v215
    %v1360 = vunpack.c.h.b16 %v215
    %v1361 = vunpack.c.l.b16 %v216
    %v1362 = vunpack.c.h.b16 %v216
    %v1363 = vunpack.c.l.b16 %v217
    %v1364 = vunpack.c.h.b16 %v217
    %v1365 = vunpack.c.l.b16 %v218
    %v1366 = vunpack.c.h.b16 %v218
    %v1367 = vunpack.c.l.b16 %v219
    %v1368 = vunpack.c.h.b16 %v219
    %v1369 = vunpack.c.l.b16 %v220
    %v1370 = vunpack.c.h.b16 %v220
    %v1371 = vunpack.c.l.b16 %v221
    %v1372 = vunpack.c.h.b16 %v221
    %v1373 = vunpack.c.l.b16 %v222
    %v1374 = vunpack.c.h.b16 %v222
    %v1375 = vunpack.c.l.b16 %v223
    %v1376 = vunpack.c.h.b16 %v223
    %v1377 = vunpack.c.l.b16 %v224
    %v1378 = vunpack.c.h.b16 %v224
    %v1379 = vunpack.c.l.b16 %v225
    %v1380 = vunpack.c.h.b16 %v225
    %v1381 = vunpack.c.l.b16 %v226
    %v1382 = vunpack.c.h.b16 %v226
    %v1383 = vunpack.c.l.b16 %v227
    %v1384 = vunpack.c.h.b16 %v227
    %v1385 = vunpack.c.l.b16 %v228
    %v1386 = vunpack.c.h.b16 %v228
    %v1387 = vunpack.c.l.b16 %v229
    %v1388 = vunpack.c.h.b16 %v229
    %v1389 = vunpack.c.l.b16 %v230
    %v1390 = vunpack.c.h.b16 %v230
    %v1391 = vunpack.c.l.b16 %v231
    %v1392 = vunpack.c.h.b16 %v231
    %v1393 = vunpack.c.l.b16 %v232
    %v1394 = vunpack.c.h.b16 %v232
    %v1395 = vunpack.c.l.b16 %v233
    %v1396 = vunpack.c.h.b16 %v233
    %v1397 = vunpack.c.l.b16 %v234
    %v1398 = vunpack.c.h.b16 %v234
    %v1399 = vunpack.c.l.b16 %v235
    %v1400 = vunpack.c.h.b16 %v235
    %v1401 = vunpack.c.l.b16 %v236
    %v1402 = vunpack.c.h.b16 %v236
    %v1403 = vunpack.c.l.b16 %v237
    %v1404 = vunpack.c.h.b16 %v237
    %v1405 = vunpack.c.l.b16 %v238
    %v1406 = vunpack.c.h.b16 %v238
    %v1407 = vunpack.c.l.b16 %v239
    %v1408 = vunpack.c.h.b16 %v239
    %v1409 = vunpack.c.l.b16 %v240
    %v1410 = vunpack.c.h.b16 %v240
    %v1411 = vunpack.c.l.b16 %v241
    %v1412 = vunpack.c.h.b16 %v241
    %v1413 = vunpack.c.l.b16 %v242
    %v1414 = vunpack.c.h.b16 %v242
    %v1415 = vunpack.c.l.b16 %v243
    %v1416 = vunpack.c.h.b16 %v243
    %v1417 = vunpack.c.l.b16 %v244
    %v1418 = vunpack.c.h.b16 %v244
    %v1419 = vunpack.c.l.b16 %v245
    %v1420 = vunpack.c.h.b16 %v245
    %v1421 = vunpack.c.l.b16 %v246
    %v1422 = vunpack.c.h.b16 %v246
    %v1423 = vunpack.c.l.b16 %v247
    %v1424 = vunpack.c.h.b16 %v247
    %v1425 = vunpack.c.l.b16 %v248
    %v1426 = vunpack.c.h.b16 %v248
    %v1427 = vunpack.c.l.b16 %v249
    %v1428 = vunpack.c.h.b16 %v249
    %v1429 = vunpack.c.l.b16 %v250
    %v1430 = vunpack.c.h.b16 %v250
    %v1431 = vunpack.c.l.b16 %v251
    %v1432 = vunpack.c.h.b16 %v251
    %v1433 = vunpack.c.l.b16 %v252
    %v1434 = vunpack.c.h.b16 %v252
    %v1435 = vunpack.c.l.b16 %v253
    %v1436 = vunpack.c.h.b16 %v253
    %v1437 = vunpack.c.l.b16 %v254
    %v1438 = vunpack.c.h.b16 %v254
    %v1439 = vunpack.c.l.b16 %v255
    %v1440 = vunpack.c.h.b16 %v255
    %v1441 = vunpack.c.l.b16 %v256
    %v1442 = vunpack.c.h.b16 %v256
    %v1443 = vunpack.c.l.b16 %v257
    %v1444 = vunpack.c.h.b16 %v257
    %v1445 = vunpack.c.l.b16 %v258
    %v1446 = vunpack.c.h.b16 %v258
    %v1447 = vunpack.c.l.b16 %v259
    %v1448 = vunpack.c.h.b16 %v259
    %v1449 = vunpack.c.l.b16 %v260
    %v1450 = vunpack.c.h.b16 %v260
    %v1451 = vunpack.c.l.b16 %v261
    %v1452 = vunpack.c.h.b16 %v261
    %v1453 = vunpack.c.l.b16 %v262
    %v1454 = vunpack.c.h.b16 %v262
    %v1455 = vunpack.c.l.b16 %v263
    %v1456 = vunpack.c.h.b16 %v263
    %v1457 = vunpack.c.l.b16 %v264
    %v1458 = vunpack.c.h.b16 %v264
    %v1459 = vunpack.c.l.b16 %v265
    %v1460 = vunpack.c.h.b16 %v265
    %v1461 = vunpack.c.l.b16 %v266
    %v1462 = vunpack.c.h.b16 %v266
    %v1463 = vunpack.c.l.b16 %v267
    %v1464 = vunpack.c.h.b16 %v267
    %v1465 = vunpack.c.l.b16 %v268
    %v1466 = vunpack.c.h.b16 %v268
    %v1467 = vunpack.c.l.b16 %v269
    %v1468 = vunpack.c.h.b16 %v269
    %v1469 = vunpack.c.l.b16 %v270
    %v1470 = vunpack.c.h.b16 %v270
    %v1471 = vunpack.c.l.b16 %v271
    %v1472 = vunpack.c.h.b16 %v271
    %v1473 = vunpack.c.l.b16 %v272
    %v1474 = vunpack.c.h.b16 %v272
    %v1475 = vunpack.c.l.b16 %v273
    %v1476 = vunpack.c.h.b16 %v273
    %v1477 = vunpack.c.l.b16 %v274
    %v1478 = vunpack.c.h.b16 %v274
    %v1479 = vunpack.c.l.b16 %v275
    %v1480 = vunpack.c.h.b16 %v275
    %v1481 = vunpack.c.l.b16 %v276
    %v1482 = vunpack.c.h.b16 %v276
    %v1483 = vunpack.c.l.b16 %v277
    %v1484 = vunpack.c.h.b16 %v277
    %v1485 = vunpack.c.l.b16 %v278
    %v1486 = vunpack.c.h.b16 %v278
    %v1487 = vunpack.c.l.b16 %v279
    %v1488 = vunpack.c.h.b16 %v279
    %v1489 = vunpack.c.l.b16 %v280
    %v1490 = vunpack.c.h.b16 %v280
    %v1491 = vunpack.c.l.b16 %v281
    %v1492 = vunpack.c.h.b16 %v281
    %v1493 = vunpack.c.l.b16 %v282
    %v1494 = vunpack.c.h.b16 %v282
    %v1495 = vunpack.c.l.b16 %v283
    %v1496 = vunpack.c.h.b16 %v283
    %v1497 = vunpack.c.l.b16 %v284
    %v1498 = vunpack.c.h.b16 %v284
    %v1499 = vunpack.c.l.b16 %v285
    %v1500 = vunpack.c.h.b16 %v285
    %v1501 = vunpack.c.l.b16 %v286
    %v1502 = vunpack.c.h.b16 %v286
    %v1503 = vunpack.c.l.b16 %v287
    %v1504 = vunpack.c.h.b16 %v287
    %v1505 = vunpack.c.l.b16 %v288
    %v1506 = vunpack.c.h.b16 %v288
    %v1507 = vunpack.c.l.b16 %v289
    %v1508 = vunpack.c.h.b16 %v289
    %v1509 = vunpack.c.l.b16 %v290
    %v1510 = vunpack.c.h.b16 %v290
    %v1511 = vunpack.c.l.b16 %v291
    %v1512 = vunpack.c.h.b16 %v291
    %v1513 = vunpack.c.l.b16 %v292
    %v1514 = vunpack.c.h.b16 %v292
    %v1515 = vunpack.c.l.b16 %v293
    %v1516 = vunpack.c.h.b16 %v293
    %v1517 = vunpack.c.l.b16 %v294
    %v1518 = vunpack.c.h.b16 %v294
    %v1519 = vunpack.c.l.b16 %v295
    %v1520 = vunpack.c.h.b16 %v295
    %v1521 = vunpack.c.l.b16 %v296
    %v1522 = vunpack.c.h.b16 %v296
    %v1523 = vunpack.c.l.b16 %v297
    %v1524 = vunpack.c.h.b16 %v297
    %v1525 = vunpack.c.l.b16 %v298
    %v1526 = vunpack.c.h.b16 %v298
    %v1527 = vunpack.c.l.b16 %v299
    %v1528 = vunpack.c.h.b16 %v299
    %v1529 = vunpack.c.l.b16 %v300
    %v1530 = vunpack.c.h.b16 %v300
    %v1531 = vunpack.c.l.b16 %v301
    %v1532 = vunpack.c.h.b16 %v301
    %v1533 = vunpack.c.l.b16 %v302
    %v1534 = vunpack.c.h.b16 %v302
    %v1535 = vunpack.c.l.b16 %v303
    %v1536 = vunpack.c.h.b16 %v303
    %v1537 = vunpack.c.l.b16 %v304
    %v1538 = vunpack.c.h.b16 %v304
    %v1539 = vunpack.c.l.b16 %v305
    %v1540 = vunpack.c.h.b16 %v305
    %v1541 = vunpack.c.l.b16 %v306
    %v1542 = vunpack.c.h.b16 %v306
    %v1543 = vunpack.c.l.b16 %v307
    %v1544 = vunpack.c.h.b16 %v307
    %v1545 = vunpack.c.l.b16 %v308
    %v1546 = vunpack.c.h.b16 %v308
    %v1547 = vunpack.c.l.b16 %v309
    %v1548 = vunpack.c.h.b16 %v309
    %v1549 = vunpack.c.l.b16 %v310
    %v1550 = vunpack.c.h.b16 %v310
    %v1551 = vunpack.c.l.b16 %v311
    %v1552 = vunpack.c.h.b16 %v311
    %v1553 = vunpack.c.l.b16 %v312
    %v1554 = vunpack.c.h.b16 %v312
    %v1555 = vunpack.c.l.b16 %v313
    %v1556 = vunpack.c.h.b16 %v313
    %v1557 = vunpack.c.l.b16 %v314
    %v1558 = vunpack.c.h.b16 %v314
    %v1559 = vunpack.c.l.b16 %v315
    %v1560 = vunpack.c.h.b16 %v315
    %v1561 = vunpack.c.l.b16 %v316
    %v1562 = vunpack.c.h.b16 %v316
    %v1563 = vunpack.c.l.b16 %v317
    %v1564 = vunpack.c.h.b16 %v317
    %v1565 = vunpack.c.l.b16 %v318
    %v1566 = vunpack.c.h.b16 %v318
    %v1567 = vunpack.c.l.b16 %v319
    %v1568 = vunpack.c.h.b16 %v319
    %v1569 = vunpack.c.l.b16 %v320
    %v1570 = vunpack.c.h.b16 %v320
    %v1571 = vunpack.c.l.b16 %v321
    %v1572 = vunpack.c.h.b16 %v321
    %v1573 = vunpack.c.l.b16 %v322
    %v1574 = vunpack.c.h.b16 %v322
    %v1575 = vunpack.c.l.b16 %v323
    %v1576 = vunpack.c.h.b16 %v323
    %v1577 = vunpack.c.l.b16 %v324
    %v1578 = vunpack.c.h.b16 %v324
    %v1579 = vunpack.c.l.b16 %v325
    %v1580 = vunpack.c.h.b16 %v325
    %v1581 = vunpack.c.l.b16 %v326
    %v1582 = vunpack.c.h.b16 %v326
    %v1583 = vunpack.c.l.b16 %v327
    %v1584 = vunpack.c.h.b16 %v327
    %v1585 = vunpack.c.l.b16 %v328
    %v1586 = vunpack.c.h.b16 %v328
    %v1587 = vunpack.c.l.b16 %v329
    %v1588 = vunpack.c.h.b16 %v329
    %v1589 = vunpack.c.l.b16 %v330
    %v1590 = vunpack.c.h.b16 %v330
    %v1591 = vunpack.c.l.b16 %v331
    %v1592 = vunpack.c.h.b16 %v331
    %v1593 = vunpack.c.l.b16 %v332
    %v1594 = vunpack.c.h.b16 %v332
    %v1595 = vunpack.c.l.b16 %v333
    %v1596 = vunpack.c.h.b16 %v333
    %v1597 = vunpack.c.l.b16 %v334
    %v1598 = vunpack.c.h.b16 %v334
    %v1599 = vunpack.c.l.b16 %v335
    %v1600 = vunpack.c.h.b16 %v335
    %v1601 = vunpack.c.l.b16 %v336
    %v1602 = vunpack.c.h.b16 %v336
    %v1603 = vunpack.c.l.b16 %v337
    %v1604 = vunpack.c.h.b16 %v337
    %v1605 = vunpack.c.l.b16 %v338
    %v1606 = vunpack.c.h.b16 %v338
    %v1607 = vunpack.c.l.b16 %v339
    %v1608 = vunpack.c.h.b16 %v339
    %v1609 = vunpack.c.l.b16 %v340
    %v1610 = vunpack.c.h.b16 %v340
    %v1611 = vunpack.c.l.b16 %v341
    %v1612 = vunpack.c.h.b16 %v341
    %v1613 = vunpack.c.l.b16 %v342
    %v1614 = vunpack.c.h.b16 %v342
    %v1615 = vunpack.c.l.b16 %v343
    %v1616 = vunpack.c.h.b16 %v343
    %v1617 = vunpack.c.l.b16 %v344
    %v1618 = vunpack.c.h.b16 %v344
    %v1619 = vunpack.c.l.b16 %v345
    %v1620 = vunpack.c.h.b16 %v345
    %v1621 = vunpack.c.l.b16 %v346
    %v1622 = vunpack.c.h.b16 %v346
    %v1623 = vunpack.c.l.b16 %v347
    %v1624 = vunpack.c.h.b16 %v347
    %v1625 = vunpack.c.l.b16 %v348
    %v1626 = vunpack.c.h.b16 %v348
    %v1627 = vunpack.c.l.b16 %v349
    %v1628 = vunpack.c.h.b16 %v349
    %v1629 = vunpack.c.l.b16 %v350
    %v1630 = vunpack.c.h.b16 %v350
    %v1631 = vunpack.c.l.b16 %v351
    %v1632 = vunpack.c.h.b16 %v351
    %v1633 = vunpack.c.l.b16 %v352
    %v1634 = vunpack.c.h.b16 %v352
    %v1635 = vunpack.c.l.b16 %v353
    %v1636 = vunpack.c.h.b16 %v353
    %v1637 = vunpack.c.l.b16 %v354
    %v1638 = vunpack.c.h.b16 %v354
    %v1639 = vunpack.c.l.b16 %v355
    %v1640 = vunpack.c.h.b16 %v355
    %v1641 = vunpack.c.l.b16 %v356
    %v1642 = vunpack.c.h.b16 %v356
    %v1643 = vunpack.c.l.b16 %v357
    %v1644 = vunpack.c.h.b16 %v357
    %v1645 = vunpack.c.l.b16 %v358
    %v1646 = vunpack.c.h.b16 %v358
    %v1647 = vunpack.c.l.b16 %v359
    %v1648 = vunpack.c.h.b16 %v359
    %v1649 = vunpack.c.l.b16 %v360
    %v1650 = vunpack.c.h.b16 %v360
    %v1651 = vunpack.c.l.b16 %v361
    %v1652 = vunpack.c.h.b16 %v361
    %v1653 = vunpack.c.l.b16 %v362
    %v1654 = vunpack.c.h.b16 %v362
    %v1655 = vunpack.c.l.b16 %v363
    %v1656 = vunpack.c.h.b16 %v363
    %v1657 = vunpack.c.l.b16 %v364
    %v1658 = vunpack.c.h.b16 %v364
    %v1659 = vunpack.c.l.b16 %v365
    %v1660 = vunpack.c.h.b16 %v365
    %v1661 = vunpack.c.l.b16 %v366
    %v1662 = vunpack.c.h.b16 %v366
    %v1663 = vunpack.c.l.b16 %v367
    %v1664 = vunpack.c.h.b16 %v367
    %v1665 = vunpack.c.l.b16 %v368
    %v1666 = vunpack.c.h.b16 %v368
    %v1667 = vunpack.c.l.b16 %v369
    %v1668 = vunpack.c.h.b16 %v369
    %v1669 = vunpack.c.l.b16 %v370
    %v1670 = vunpack.c.h.b16 %v370
    %v1671 = vunpack.c.l.b16 %v371
    %v1672 = vunpack.c.h.b16 %v371
    %v1673 = vunpack.c.l.b16 %v372
    %v1674 = vunpack.c.h.b16 %v372
    %v1675 = vunpack.c.l.b16 %v373
    %v1676 = vunpack.c.h.b16 %v373
    %v1677 = vunpack.c.l.b16 %v374
    %v1678 = vunpack.c.h.b16 %v374
    %v1679 = vunpack.c.l.b16 %v375
    %v1680 = vunpack.c.h.b16 %v375
    %v1681 = vunpack.c.l.b16 %v376
    %v1682 = vunpack.c.h.b16 %v376
    %v1683 = vunpack.c.l.b16 %v377
    %v1684 = vunpack.c.h.b16 %v377
    %v1685 = vunpack.c.l.b16 %v378
    %v1686 = vunpack.c.h.b16 %v378
    %v1687 = vunpack.c.l.b16 %v379
    %v1688 = vunpack.c.h.b16 %v379
    %v1689 = vunpack.c.l.b16 %v380
    %v1690 = vunpack.c.h.b16 %v380
    %v1691 = vunpack.c.l.b16 %v381
    %v1692 = vunpack.c.h.b16 %v381
    %v1693 = vunpack.c.l.b16 %v382
    %v1694 = vunpack.c.h.b16 %v382
    %v1695 = vunpack.c.l.b16 %v383
    %v1696 = vunpack.c.h.b16 %v383
    %v1697 = vunpack.c.l.b16 %v384
    %v1698 = vunpack.c.h.b16 %v384
    %v1699 = vunpack.c.l.b16 %v385
    %v1700 = vunpack.c.h.b16 %v385
    %v1701 = vunpack.c.l.b16 %v386
    %v1702 = vunpack.c.h.b16 %v386
    %v1703 = vunpack.c.l.b16 %v387
    %v1704 = vunpack.c.h.b16 %v387
    %v1705 = vunpack.c.l.b16 %v388
    %v1706 = vunpack.c.h.b16 %v388
    %v1707 = vunpack.c.l.b16 %v389
    %v1708 = vunpack.c.h.b16 %v389
    %v1709 = vunpack.c.l.b16 %v390
    %v1710 = vunpack.c.h.b16 %v390
    %v1711 = vunpack.c.l.b16 %v391
    %v1712 = vunpack.c.h.b16 %v391
    %v1713 = vunpack.c.l.b16 %v392
    %v1714 = vunpack.c.h.b16 %v392
    %v1715 = vunpack.c.l.b16 %v393
    %v1716 = vunpack.c.h.b16 %v393
    %v1717 = vunpack.c.l.b16 %v394
    %v1718 = vunpack.c.h.b16 %v394
    %v1719 = vunpack.c.l.b16 %v395
    %v1720 = vunpack.c.h.b16 %v395
    %v1721 = vunpack.c.l.b16 %v396
    %v1722 = vunpack.c.h.b16 %v396
    %v1723 = vunpack.c.l.b16 %v397
    %v1724 = vunpack.c.h.b16 %v397
    %v1725 = vunpack.c.l.b16 %v398
    %v1726 = vunpack.c.h.b16 %v398
    %v1727 = vunpack.c.l.b16 %v399
    %v1728 = vunpack.c.h.b16 %v399
    %v1729 = vunpack.c.l.b16 %v400
    %v1730 = vunpack.c.h.b16 %v400
    %v1731 = vunpack.c.l.b16 %v401
    %v1732 = vunpack.c.h.b16 %v401
    %v1733 = vunpack.c.l.b16 %v402
    %v1734 = vunpack.c.h.b16 %v402
    %v1735 = vunpack.c.l.b16 %v403
    %v1736 = vunpack.c.h.b16 %v403
    %v1737 = vunpack.c.l.b16 %v404
    %v1738 = vunpack.c.h.b16 %v404
    %v1739 = vunpack.c.l.b16 %v405
    %v1740 = vunpack.c.h.b16 %v405
    %v1741 = vunpack.c.l.b16 %v406
    %v1742 = vunpack.c.h.b16 %v406
    %v1743 = vunpack.c.l.b16 %v407
    %v1744 = vunpack.c.h.b16 %v407
    %v1745 = vunpack.c.l.b16 %v408
    %v1746 = vunpack.c.h.b16 %v408
    %v1747 = vunpack.c.l.b16 %v409
    %v1748 = vunpack.c.h.b16 %v409
    %v1749 = vunpack.c.l.b16 %v410
    %v1750 = vunpack.c.h.b16 %v410
    %v1751 = vunpack.c.l.b16 %v411
    %v1752 = vunpack.c.h.b16 %v411
    %v1753 = vunpack.c.l.b16 %v412
    %v1754 = vunpack.c.h.b16 %v412
    %v1755 = vunpack.c.l.b16 %v413
    %v1756 = vunpack.c.h.b16 %v413
    %v1757 = vunpack.c.l.b16 %v414
    %v1758 = vunpack.c.h.b16 %v414
    %v1759 = vunpack.c.l.b16 %v415
    %v1760 = vunpack.c.h.b16 %v415
    %v1761 = vunpack.c.l.b16 %v416
    %v1762 = vunpack.c.h.b16 %v416
    %v1763 = vunpack.c.l.b16 %v417
    %v1764 = vunpack.c.h.b16 %v417
    %v1765 = vunpack.c.l.b16 %v418
    %v1766 = vunpack.c.h.b16 %v418
    %v1767 = vunpack.c.l.b16 %v419
    %v1768 = vunpack.c.h.b16 %v419
    %v1769 = vunpack.c.l.b16 %v420
    %v1770 = vunpack.c.h.b16 %v420
    %v1771 = vunpack.c.l.b16 %v421
    %v1772 = vunpack.c.h.b16 %v421
    %v1773 = vunpack.c.l.b16 %v422
    %v1774 = vunpack.c.h.b16 %v422
    %v1775 = vunpack.c.l.b16 %v423
    %v1776 = vunpack.c.h.b16 %v423
    %v1777 = vunpack.c.l.b16 %v424
    %v1778 = vunpack.c.h.b16 %v424
    %v1779 = vunpack.c.l.b16 %v425
    %v1780 = vunpack.c.h.b16 %v425
    %v1781 = vunpack.c.l.b16 %v426
    %v1782 = vunpack.c.h.b16 %v426
    %v1783 = vunpack.c.l.b16 %v427
    %v1784 = vunpack.c.h.b16 %v427
    %v1785 = vunpack.c.l.b16 %v428
    %v1786 = vunpack.c.h.b16 %v428
    %v1787 = vunpack.c.l.b16 %v429
    %v1788 = vunpack.c.h.b16 %v429
    %v1789 = vunpack.c.l.b16 %v430
    %v1790 = vunpack.c.h.b16 %v430
    %v1791 = vunpack.c.l.b16 %v431
    %v1792 = vunpack.c.h.b16 %v431
    %v1793 = vunpack.c.l.b16 %v432
    %v1794 = vunpack.c.h.b16 %v432
    %v1795 = vunpack.c.l.b16 %v433
    %v1796 = vunpack.c.h.b16 %v433
    %v1797 = vunpack.c.l.b16 %v434
    %v1798 = vunpack.c.h.b16 %v434
    %v1799 = vunpack.c.l.b16 %v435
    %v1800 = vunpack.c.h.b16 %v435
    %v1801 = vunpack.c.l.b16 %v436
    %v1802 = vunpack.c.h.b16 %v436
    %v1803 = vunpack.c.l.b16 %v437
    %v1804 = vunpack.c.h.b16 %v437
    %v1805 = vunpack.c.l.b16 %v438
    %v1806 = vunpack.c.h.b16 %v438
    %v1807 = vunpack.c.l.b16 %v439
    %v1808 = vunpack.c.h.b16 %v439
    %v1809 = vunpack.c.l.b16 %v440
    %v1810 = vunpack.c.h.b16 %v440
    %v1811 = vunpack.c.l.b16 %v441
    %v1812 = vunpack.c.h.b16 %v441
    %v1813 = vunpack.c.l.b16 %v442
    %v1814 = vunpack.c.h.b16 %v442
    %v1815 = vunpack.c.l.b16 %v443
    %v1816 = vunpack.c.h.b16 %v443
    %v1817 = vunpack.c.l.b16 %v444
    %v1818 = vunpack.c.h.b16 %v444
    %v1819 = vunpack.c.l.b16 %v445
    %v1820 = vunpack.c.h.b16 %v445
    %v1821 = vunpack.c.l.b16 %v446
    %v1822 = vunpack.c.h.b16 %v446
    %v1823 = vunpack.c.l.b16 %v447
    %v1824 = vunpack.c.h.b16 %v447
    %v1825 = vunpack.c.l.b16 %v448
    %v1826 = vunpack.c.h.b16 %v448
    %v1827 = vunpack.c.l.b16 %v449
    %v1828 = vunpack.c.h.b16 %v449
    %v1829 = vunpack.c.l.b16 %v450
    %v1830 = vunpack.c.h.b16 %v450
    %v1831 = vunpack.c.l.b16 %v451
    %v1832 = vunpack.c.h.b16 %v451
    %v1833 = vunpack.c.l.b16 %v452
    %v1834 = vunpack.c.h.b16 %v452
    %v1835 = vunpack.c.l.b16 %v453
    %v1836 = vunpack.c.h.b16 %v453
    %v1837 = vunpack.c.l.b16 %v454
    %v1838 = vunpack.c.h.b16 %v454
    %v1839 = vunpack.c.l.b16 %v455
    %v1840 = vunpack.c.h.b16 %v455
    %v1841 = vunpack.c.l.b16 %v456
    %v1842 = vunpack.c.h.b16 %v456
    %v1843 = vunpack.c.l.b16 %v457
    %v1844 = vunpack.c.h.b16 %v457
    %v1845 = vunpack.c.l.b16 %v458
    %v1846 = vunpack.c.h.b16 %v458
    %v1847 = vunpack.c.l.b16 %v459
    %v1848 = vunpack.c.h.b16 %v459
    %v1849 = vunpack.c.l.b16 %v460
    %v1850 = vunpack.c.h.b16 %v460
    %v1851 = vunpack.c.l.b16 %v461
    %v1852 = vunpack.c.h.b16 %v461
    %v1853 = vunpack.c.l.b16 %v462
    %v1854 = vunpack.c.h.b16 %v462
    %v1855 = vunpack.c.l.b16 %v463
    %v1856 = vunpack.c.h.b16 %v463
    %v1857 = vunpack.c.l.b16 %v464
    %v1858 = vunpack.c.h.b16 %v464
    %v1859 = vunpack.c.l.b16 %v465
    %v1860 = vunpack.c.h.b16 %v465
    %v1861 = vunpack.c.l.b16 %v466
    %v1862 = vunpack.c.h.b16 %v466
    %v1863 = vunpack.c.l.b16 %v467
    %v1864 = vunpack.c.h.b16 %v467
    %v1865 = vunpack.c.l.b16 %v468
    %v1866 = vunpack.c.h.b16 %v468
    %v1867 = vunpack.c.l.b16 %v469
    %v1868 = vunpack.c.h.b16 %v469
    %v1869 = vunpack.c.l.b16 %v470
    %v1870 = vunpack.c.h.b16 %v470
    %v1871 = vunpack.c.l.b16 %v471
    %v1872 = vunpack.c.h.b16 %v471
    %v1873 = vunpack.c.l.b16 %v472
    %v1874 = vunpack.c.h.b16 %v472
    %v1875 = vunpack.c.l.b16 %v473
    %v1876 = vunpack.c.h.b16 %v473
    %v1877 = vunpack.c.l.b16 %v474
    %v1878 = vunpack.c.h.b16 %v474
    %v1879 = vunpack.c.l.b16 %v475
    %v1880 = vunpack.c.h.b16 %v475
    %v1881 = vunpack.c.l.b16 %v476
    %v1882 = vunpack.c.h.b16 %v476
    %v1883 = vunpack.c.l.b16 %v477
    %v1884 = vunpack.c.h.b16 %v477
    %v1885 = vunpack.c.l.b16 %v478
    %v1886 = vunpack.c.h.b16 %v478
    %v1887 = vunpack.c.l.b16 %v479
    %v1888 = vunpack.c.h.b16 %v479
    %v1889 = vunpack.c.l.b16 %v480
    %v1890 = vunpack.c.h.b16 %v480
    %v1891 = vunpack.c.l.b16 %v481
    %v1892 = vunpack.c.h.b16 %v481
    %v1893 = vunpack.c.l.b16 %v482
    %v1894 = vunpack.c.h.b16 %v482
    %v1895 = vunpack.c.l.b16 %v483
    %v1896 = vunpack.c.h.b16 %v483
    %v1897 = vunpack.c.l.b16 %v484
    %v1898 = vunpack.c.h.b16 %v484
    %v1899 = vunpack.c.l.b16 %v485
    %v1900 = vunpack.c.h.b16 %v485
    %v1901 = vpack.c.b16 %v1009, %v1005
    %v1902 = vpack.c.b16 %v1010, %v1006
    %v1903 = vpack.c.b16 %v1011, %v1007
    %v1904 = vpack.c.b16 %v1012, %v1008
    %v1905 = vpack.c.b16 %v1017, %v1013
    %v1906 = vpack.c.b16 %v1018, %v1014
    %v1907 = vpack.c.b16 %v1019, %v1015
    %v1908 = vpack.c.b16 %v1020, %v1016
    %v1909 = vpack.c.b16 %v1025, %v1021
    %v1910 = vpack.c.b16 %v1026, %v1022
    %v1911 = vpack.c.b16 %v1027, %v1023
    %v1912 = vpack.c.b16 %v1028, %v1024
    %v1913 = vpack.c.b16 %v1033, %v1029
    %v1914 = vpack.c.b16 %v1034, %v1030
    %v1915 = vpack.c.b16 %v1035, %v1031
    %v1916 = vpack.c.b16 %v1036, %v1032
    %v1917 = vpack.c.b16 %v1041, %v1037
    %v1918 = vpack.c.b16 %v1042, %v1038
    %v1919 = vpack.c.b16 %v1043, %v1039
    %v1920 = vpack.c.b16 %v1044, %v1040
    %v1921 = vpack.c.b16 %v1049, %v1045
    %v1922 = vpack.c.b16 %v1050, %v1046
    %v1923 = vpack.c.b16 %v1051, %v1047
    %v1924 = vpack.c.b16 %v1052, %v1048
    %v1925 = vpack.c.b16 %v1057, %v1053
    %v1926 = vpack.c.b16 %v1058, %v1054
    %v1927 = vpack.c.b16 %v1059, %v1055
    %v1928 = vpack.c.b16 %v1060, %v1056
    %v1929 = vpack.c.b16 %v1065, %v1061
    %v1930 = vpack.c.b16 %v1066, %v1062
    %v1931 = vpack.c.b16 %v1067, %v1063
    %v1932 = vpack.c.b16 %v1068, %v1064
    %v1933 = vpack.c.b16 %v1073, %v1069
    %v1934 = vpack.c.b16 %v1074, %v1070
    %v1935 = vpack.c.b16 %v1075, %v1071
    %v1936 = vpack.c.b16 %v1076, %v1072
    %v1937 = vpack.c.b16 %v1081, %v1077
    %v1938 = vpack.c.b16 %v1082, %v1078
    %v1939 = vpack.c.b16 %v1083, %v1079
    %v1940 = vpack.c.b16 %v1084, %v1080
    %v1941 = vpack.c.b16 %v1089, %v1085
    %v1942 = vpack.c.b16 %v1090, %v1086
    %v1943 = vpack.c.b16 %v1091, %v1087
    %v1944 = vpack.c.b16 %v1092, %v1088
    %v1945 = vpack.c.b16 %v1097, %v1093
    %v1946 = vpack.c.b16 %v1098, %v1094
    %v1947 = vpack.c.b16 %v1099, %v1095
    %v1948 = vpack.c.b16 %v1100, %v1096
    %v1949 = vpack.c.b16 %v1105, %v1101
    %v1950 = vpack.c.b16 %v1106, %v1102
    %v1951 = vpack.c.b16 %v1107, %v1103
    %v1952 = vpack.c.b16 %v1108, %v1104
    %v1953 = vpack.c.b16 %v1113, %v1109
    %v1954 = vpack.c.b16 %v1114, %v1110
    %v1955 = vpack.c.b16 %v1115, %v1111
    %v1956 = vpack.c.b16 %v1116, %v1112
    %v1957 = vpack.c.b16 %v1121, %v1117
    %v1958 = vpack.c.b16 %v1122, %v1118
    %v1959 = vpack.c.b16 %v1123, %v1119
    %v1960 = vpack.c.b16 %v1124, %v1120
    %v1961 = vpack.c.b16 %v1129, %v1125
    %v1962 = vpack.c.b16 %v1130, %v1126
    %v1963 = vpack.c.b16 %v1131, %v1127
    %v1964 = vpack.c.b16 %v1132, %v1128
    %v1965 = vpack.c.b16 %v1137, %v1133
    %v1966 = vpack.c.b16 %v1138, %v1134
    %v1967 = vpack.c.b16 %v1139, %v1135
    %v1968 = vpack.c.b16 %v1140, %v1136
    %v1969 = vpack.c.b16 %v1145, %v1141
    %v1970 = vpack.c.b16 %v1146, %v1142
    %v1971 = vpack.c.b16 %v1147, %v1143
    %v1972 = vpack.c.b16 %v1148, %v1144
    %v1973 = vpack.c.b16 %v1153, %v1149
    %v1974 = vpack.c.b16 %v1154, %v1150
    %v1975 = vpack.c.b16 %v1155, %v1151
    %v1976 = vpack.c.b16 %v1156, %v1152
    %v1977 = vpack.c.b16 %v1161, %v1157
    %v1978 = vpack.c.b16 %v1162, %v1158
    %v1979 = vpack.c.b16 %v1163, %v1159
    %v1980 = vpack.c.b16 %v1164, %v1160
    %v1981 = vpack.c.b16 %v1169, %v1165
    %v1982 = vpack.c.b16 %v1170, %v1166
    %v1983 = vpack.c.b16 %v1171, %v1167
    %v1984 = vpack.c.b16 %v1172, %v1168
    %v1985 = vpack.c.b16 %v1177, %v1173
    %v1986 = vpack.c.b16 %v1178, %v1174
    %v1987 = vpack.c.b16 %v1179, %v1175
    %v1988 = vpack.c.b16 %v1180, %v1176
    %v1989 = vpack.c.b16 %v1185, %v1181
    %v1990 = vpack.c.b16 %v1186, %v1182
    %v1991 = vpack.c.b16 %v1187, %v1183
    %v1992 = vpack.c.b16 %v1188, %v1184
    %v1993 = vpack.c.b16 %v1193, %v1189
    %v1994 = vpack.c.b16 %v1194, %v1190
    %v1995 = vpack.c.b16 %v1195, %v1191
    %v1996 = vpack.c.b16 %v1196, %v1192
    %v1997 = vpack.c.b16 %v1201, %v1197
    %v1998 = vpack.c.b16 %v1202, %v1198
    %v1999 = vpack.c.b16 %v1203, %v1199
    %v2000 = vpack.c.b16 %v1204, %v1200
    %v2001 = vpack.c.b16 %v1209, %v1205
    %v2002 = vpack.c.b16 %v1210, %v1206
    %v2003 = vpack.c.b16 %v1211, %v1207
    %v2004 = vpack.c.b16 %v1212, %v1208
    %v2005 = vpack.c.b16 %v1217, %v1213
    %v2006 = vpack.c.b16 %v1218, %v1214
    %v2007 = vpack.c.b16 %v1219, %v1215
    %v2008 = vpack.c.b16 %v1220, %v1216
    %v2009 = vpack.c.b16 %v1225, %v1221
    %v2010 = vpack.c.b16 %v1226, %v1222
    %v2011 = vpack.c.b16 %v1227, %v1223
    %v2012 = vpack.c.b16 %v1228, %v1224
    %v2013 = vpack.c.b16 %v1233, %v1229
    %v2014 = vpack.c.b16 %v1234, %v1230
    %v2015 = vpack.c.b16 %v1235, %v1231
    %v2016 = vpack.c.b16 %v1236, %v1232
    %v2017 = vpack.c.b16 %v1241, %v1237
    %v2018 = vpack.c.b16 %v1242, %v1238
    %v2019 = vpack.c.b16 %v1243, %v1239
    %v2020 = vpack.c.b16 %v1244, %v1240
    %v2021 = vpack.c.b16 %v1249, %v1245
    %v2022 = vpack.c.b16 %v1250, %v1246
    %v2023 = vpack.c.b16 %v1251, %v1247
    %v2024 = vpack.c.b16 %v1252, %v1248
    %v2025 = vpack.c.b16 %v1257, %v1253
    %v2026 = vpack.c.b16 %v1258, %v1254
    %v2027 = vpack.c.b16 %v1259, %v1255
    %v2028 = vpack.c.b16 %v1260, %v1256
    %v2029 = vpack.c.b16 %v1265, %v1261
    %v2030 = vpack.c.b16 %v1266, %v1262
    %v2031 = vpack.c.b16 %v1267, %v1263
    %v2032 = vpack.c.b16 %v1268, %v1264
    %v2033 = vpack.c.b16 %v1273, %v1269
    %v2034 = vpack.c.b16 %v1274, %v1270
    %v2035 = vpack.c.b16 %v1275, %v1271
    %v2036 = vpack.c.b16 %v1276, %v1272
    %v2037 = vpack.c.b16 %v1281, %v1277
    %v2038 = vpack.c.b16 %v1282, %v1278
    %v2039 = vpack.c.b16 %v1283, %v1279
    %v2040 = vpack.c.b16 %v1284, %v1280
    %v2041 = vpack.c.b16 %v1289, %v1285
    %v2042 = vpack.c.b16 %v1290, %v1286
    %v2043 = vpack.c.b16 %v1291, %v1287
    %v2044 = vpack.c.b16 %v1292, %v1288
    %v2045 = vpack.c.b16 %v1297, %v1293
    %v2046 = vpack.c.b16 %v1298, %v1294
    %v2047 = vpack.c.b16 %v1299, %v1295
    %v2048 = vpack.c.b16 %v1300, %v1296
    %v2049 = vpack.c.b16 %v1305, %v1301
    %v2050 = vpack.c.b16 %v1306, %v1302
    %v2051 = vpack.c.b16 %v1307, %v1303
    %v2052 = vpack.c.b16 %v1308, %v1304
    %v2053 = vpack.c.b16 %v1313, %v1309
    %v2054 = vpack.c.b16 %v1314, %v1310
    %v2055 = vpack.c.b16 %v1315, %v1311
    %v2056 = vpack.c.b16 %v1316, %v1312
    %v2057 = vpack.c.b16 %v1321, %v1317
    %v2058 = vpack.c.b16 %v1322, %v1318
    %v2059 = vpack.c.b16 %v1323, %v1319
    %v2060 = vpack.c.b16 %v1324, %v1320
    %v2061 = vpack.c.b16 %v1329, %v1325
    %v2062 = vpack.c.b16 %v1330, %v1326
    %v2063 = vpack.c.b16 %v1331, %v1327
    %v2064 = vpack.c.b16 %v1332, %v1328
    %v2065 = vpack.c.b16 %v1337, %v1333
    %v2066 = vpack.c.b16 %v1338, %v1334
    %v2067 = vpack.c.b16 %v1339, %v1335
    %v2068 = vpack.c.b16 %v1340, %v1336
    %v2069 = vpack.c.b16 %v1345, %v1341
    %v2070 = vpack.c.b16 %v1346, %v1342
    %v2071 = vpack.c.b16 %v1347, %v1343
    %v2072 = vpack.c.b16 %v1348, %v1344
    %v2073 = vpack.c.b16 %v1353, %v1349
    %v2074 = vpack.c.b16 %v1354, %v1350
    %v2075 = vpack.c.b16 %v1355, %v1351
    %v2076 = vpack.c.b16 %v1356, %v1352
    %v2077 = vpack.c.b16 %v1361, %v1357
    %v2078 = vpack.c.b16 %v1362, %v1358
    %v2079 = vpack.c.b16 %v1363, %v1359
    %v2080 = vpack.c.b16 %v1364, %v1360
    %v2081 = vpack.c.b16 %v1369, %v1365
    %v2082 = vpack.c.b16 %v1370, %v1366
    %v2083 = vpack.c.b16 %v1371, %v1367
    %v2084 = vpack.c.b16 %v1372, %v1368
    %v2085 = vpack.c.b16 %v1377, %v1373
    %v2086 = vpack.c.b16 %v1378, %v1374
    %v2087 = vpack.c.b16 %v1379, %v1375
    %v2088 = vpack.c.b16 %v1380, %v1376
    %v2089 = vpack.c.b16 %v1385, %v1381
    %v2090 = vpack.c.b16 %v1386, %v1382
    %v2091 = vpack.c.b16 %v1387, %v1383
    %v2092 = vpack.c.b16 %v1388, %v1384
    %v2093 = vpack.c.b16 %v1393, %v1389
    %v2094 = vpack.c.b16 %v1394, %v1390
    %v2095 = vpack.c.b16 %v1395, %v1391
    %v2096 = vpack.c.b16 %v1396, %v1392
    %v2097 = vpack.c.b16 %v1401, %v1397
    %v2098 = vpack.c.b16 %v1402, %v1398
    %v2099 = vpack.c.b16 %v1403, %v1399
    %v2100 = vpack.c.b16 %v1404, %v1400
    %v2101 = vpack.c.b16 %v1409, %v1405
    %v2102 = vpack.c.b16 %v1410, %v1406
    %v2103 = vpack.c.b16 %v1411, %v1407
    %v2104 = vpack.c.b16 %v1412, %v1408
    %v2105 = vpack.c.b16 %v1417, %v1413
    %v2106 = vpack.c.b16 %v1418, %v1414
    %v2107 = vpack.c.b16 %v1419, %v1415
    %v2108 = vpack.c.b16 %v1420, %v1416
    %v2109 = vpack.c.b16 %v1425, %v1421
    %v2110 = vpack.c.b16 %v1426, %v1422
    %v2111 = vpack.c.b16 %v1427, %v1423
    %v2112 = vpack.c.b16 %v1428, %v1424
    %v2113 = vpack.c.b16 %v1433, %v1429
    %v2114 = vpack.c.b16 %v1434, %v1430
    %v2115 = vpack.c.b16 %v1435, %v1431
    %v2116 = vpack.c.b16 %v1436, %v1432
    %v2117 = vpack.c.b16 %v1441, %v1437
    %v2118 = vpack.c.b16 %v1442, %v1438
    %v2119 = vpack.c.b16 %v1443, %v1439
    %v2120 = vpack.c.b16 %v1444, %v1440
    %v2121 = vpack.c.b16 %v1449, %v1445
    %v2122 = vpack.c.b16 %v1450, %v1446
    %v2123 = vpack.c.b16 %v1451, %v1447
    %v2124 = vpack.c.b16 %v1452, %v1448
    %v2125 = vpack.c.b16 %v1457, %v1453
    %v2126 = vpack.c.b16 %v1458, %v1454
    %v2127 = vpack.c.b16 %v1459, %v1455
    %v2128 = vpack.c.b16 %v1460, %v1456
    %v2129 = vpack.c.b16 %v1465, %v1461
    %v2130 = vpack.c.b16 %v1466, %v1462
    %v2131 = vpack.c.b16 %v1467, %v1463
    %v2132 = vpack.c.b16 %v1468, %v1464
    %v2133 = vpack.c.b16 %v1473, %v1469
    %v2134 = vpack.c.b16 %v1474, %v1470
    %v2135 = vpack.c.b16 %v1475, %v1471
    %v2136 = vpack.c.b16 %v1476, %v1472
    %v2137 = vpack.c.b16 %v1481, %v1477
    %v2138 = vpack.c.b16 %v1482, %v1478
    %v2139 = vpack.c.b16 %v1483, %v1479
    %v2140 = vpack.c.b16 %v1484, %v1480
    %v2141 = vpack.c.b16 %v1489, %v1485
    %v2142 = vpack.c.b16 %v1490, %v1486
    %v2143 = vpack.c.b16 %v1491, %v1487
    %v2144 = vpack.c.b16 %v1492, %v1488
    %v2145 = vpack.c.b16 %v1497, %v1493
    %v2146 = vpack.c.b16 %v1498, %v1494
    %v2147 = vpack.c.b16 %v1499, %v1495
    %v2148 = vpack.c.b16 %v1500, %v1496
    %v2149 = vpack.c.b16 %v1505, %v1501
    %v2150 = vpack.c.b16 %v1506, %v1502
    %v2151 = vpack.c.b16 %v1507, %v1503
    %v2152 = vpack.c.b16 %v1508, %v1504
    %v2153 = vpack.c.b16 %v1513, %v1509
    %v2154 = vpack.c.b16 %v1514, %v1510
    %v2155 = vpack.c.b16 %v1515, %v1511
    %v2156 = vpack.c.b16 %v1516, %v1512
    %v2157 = vpack.c.b16 %v1521, %v1517
    %v2158 = vpack.c.b16 %v1522, %v1518
    %v2159 = vpack.c.b16 %v1523, %v1519
    %v2160 = vpack.c.b16 %v1524, %v1520
    %v2161 = vpack.c.b16 %v1529, %v1525
    %v2162 = vpack.c.b16 %v1530, %v1526
    %v2163 = vpack.c.b16 %v1531, %v1527
    %v2164 = vpack.c.b16 %v1532, %v1528
    %v2165 = vpack.c.b16 %v1537, %v1533
    %v2166 = vpack.c.b16 %v1538, %v1534
    %v2167 = vpack.c.b16 %v1539, %v1535
    %v2168 = vpack.c.b16 %v1540, %v1536
    %v2169 = vpack.c.b16 %v1545, %v1541
    %v2170 = vpack.c.b16 %v1546, %v1542
    %v2171 = vpack.c.b16 %v1547, %v1543
    %v2172 = vpack.c.b16 %v1548, %v1544
    %v2173 = vpack.c.b16 %v1553, %v1549
    %v2174 = vpack.c.b16 %v1554, %v1550
    %v2175 = vpack.c.b16 %v1555, %v1551
    %v2176 = vpack.c.b16 %v1556, %v1552
    %v2177 = vpack.c.b16 %v1561, %v1557
    %v2178 = vpack.c.b16 %v1562, %v1558
    %v2179 = vpack.c.b16 %v1563, %v1559
    %v2180 = vpack.c.b16 %v1564, %v1560
    %v2181 = vpack.c.b16 %v1569, %v1565
    %v2182 = vpack.c.b16 %v1570, %v1566
    %v2183 = vpack.c.b16 %v1571, %v1567
    %v2184 = vpack.c.b16 %v1572, %v1568
    %v2185 = vpack.c.b16 %v1577, %v1573
    %v2186 = vpack.c.b16 %v1578, %v1574
    %v2187 = vpack.c.b16 %v1579, %v1575
    %v2188 = vpack.c.b16 %v1580, %v1576
    %v2189 = vpack.c.b16 %v1585, %v1581
    %v2190 = vpack.c.b16 %v1586, %v1582
    %v2191 = vpack.c.b16 %v1587, %v1583
    %v2192 = vpack.c.b16 %v1588, %v1584
    %v2193 = vpack.c.b16 %v1593, %v1589
    %v2194 = vpack.c.b16 %v1594, %v1590
    %v2195 = vpack.c.b16 %v1595, %v1591
    %v2196 = vpack.c.b16 %v1596, %v1592
    %v2197 = vpack.c.b16 %v1601, %v1597
    %v2198 = vpack.c.b16 %v1602, %v1598
    %v2199 = vpack.c.b16 %v1603, %v1599
    %v2200 = vpack.c.b16 %v1604, %v1600
    %v2201 = vpack.c.b16 %v1609, %v1605
    %v2202 = vpack.c.b16 %v1610, %v1606
    %v2203 = vpack.c.b16 %v1611, %v1607
    %v2204 = vpack.c.b16 %v1612, %v1608
    %v2205 = vpack.c.b16 %v1617, %v1613
    %v2206 = vpack.c.b16 %v1618, %v1614
    %v2207 = vpack.c.b16 %v1619, %v1615
    %v2208 = vpack.c.b16 %v1620, %v1616
    %v2209 = vpack.c.b16 %v1625, %v1621
    %v2210 = vpack.c.b16 %v1626, %v1622
    %v2211 = vpack.c.b16 %v1627, %v1623
    %v2212 = vpack.c.b16 %v1628, %v1624
    %v2213 = vpack.c.b16 %v1633, %v1629
    %v2214 = vpack.c.b16 %v1634, %v1630
    %v2215 = vpack.c.b16 %v1635, %v1631
    %v2216 = vpack.c.b16 %v1636, %v1632
    %v2217 = vpack.c.b16 %v1641, %v1637
    %v2218 = vpack.c.b16 %v1642, %v1638
    %v2219 = vpack.c.b16 %v1643, %v1639
    %v2220 = vpack.c.b16 %v1644, %v1640
    %v2221 = vpack.c.b16 %v1649, %v1645
    %v2222 = vpack.c.b16 %v1650, %v1646
    %v2223 = vpack.c.b16 %v1651, %v1647
    %v2224 = vpack.c.b16 %v1652, %v1648
    %v2225 = vpack.c.b16 %v1657, %v1653
    %v2226 = vpack.c.b16 %v1658, %v1654
    %v2227 = vpack.c.b16 %v1659, %v1655
    %v2228 = vpack.c.b16 %v1660, %v1656
    %v2229 = vpack.c.b16 %v1665, %v1661
    %v2230 = vpack.c.b16 %v1666, %v1662
    %v2231 = vpack.c.b16 %v1667, %v1663
    %v2232 = vpack.c.b16 %v1668, %v1664
    %v2233 = vpack.c.b16 %v1673, %v1669
    %v2234 = vpack.c.b16 %v1674, %v1670
    %v2235 = vpack.c.b16 %v1675, %v1671
    %v2236 = vpack.c.b16 %v1676, %v1672
    %v2237 = vpack.c.b16 %v1681, %v1677
    %v2238 = vpack.c.b16 %v1682, %v1678
    %v2239 = vpack.c.b16 %v1683, %v1679
    %v2240 = vpack.c.b16 %v1684, %v1680
    %v2241 = vpack.c.b16 %v1689, %v1685
    %v2242 = vpack.c.b16 %v1690, %v1686
    %v2243 = vpack.c.b16 %v1691, %v1687
    %v2244 = vpack.c.b16 %v1692, %v1688
    %v2245 = vpack.c.b16 %v1697, %v1693
    %v2246 = vpack.c.b16 %v1698, %v1694
    %v2247 = vpack.c.b16 %v1699, %v1695
    %v2248 = vpack.c.b16 %v1700, %v1696
    %v2249 = vpack.c.b16 %v1705, %v1701
    %v2250 = vpack.c.b16 %v1706, %v1702
    %v2251 = vpack.c.b16 %v1707, %v1703
    %v2252 = vpack.c.b16 %v1708, %v1704
    %v2253 = vpack.c.b16 %v1713, %v1709
    %v2254 = vpack.c.b16 %v1714, %v1710
    %v2255 = vpack.c.b16 %v1715, %v1711
    %v2256 = vpack.c.b16 %v1716, %v1712
    %v2257 = vpack.c.b16 %v1721, %v1717
    %v2258 = vpack.c.b16 %v1722, %v1718
    %v2259 = vpack.c.b16 %v1723, %v1719
    %v2260 = vpack.c.b16 %v1724, %v1720
    %v2261 = vpack.c.b16 %v1729, %v1725
    %v2262 = vpack.c.b16 %v1730, %v1726
    %v2263 = vpack.c.b16 %v1731, %v1727
    %v2264 = vpack.c.b16 %v1732, %v1728
    %v2265 = vpack.c.b16 %v1737, %v1733
    %v2266 = vpack.c.b16 %v1738, %v1734
    %v2267 = vpack.c.b16 %v1739, %v1735
    %v2268 = vpack.c.b16 %v1740, %v1736
    %v2269 = vpack.c.b16 %v1745, %v1741
    %v2270 = vpack.c.b16 %v1746, %v1742
    %v2271 = vpack.c.b16 %v1747, %v1743
    %v2272 = vpack.c.b16 %v1748, %v1744
    %v2273 = vpack.c.b16 %v1753, %v1749
    %v2274 = vpack.c.b16 %v1754, %v1750
    %v2275 = vpack.c.b16 %v1755, %v1751
    %v2276 = vpack.c.b16 %v1756, %v1752
    %v2277 = vpack.c.b16 %v1761, %v1757
    %v2278 = vpack.c.b16 %v1762, %v1758
    %v2279 = vpack.c.b16 %v1763, %v1759
    %v2280 = vpack.c.b16 %v1764, %v1760
    %v2281 = vpack.c.b16 %v1769, %v1765
    %v2282 = vpack.c.b16 %v1770, %v1766
    %v2283 = vpack.c.b16 %v1771, %v1767
    %v2284 = vpack.c.b16 %v1772, %v1768
    %v2285 = vpack.c.b16 %v1777, %v1773
    %v2286 = vpack.c.b16 %v1778, %v1774
    %v2287 = vpack.c.b16 %v1779, %v1775
    %v2288 = vpack.c.b16 %v1780, %v1776
    %v2289 = vpack.c.b16 %v1785, %v1781
    %v2290 = vpack.c.b16 %v1786, %v1782
    %v2291 = vpack.c.b16 %v1787, %v1783
    %v2292 = vpack.c.b16 %v1788, %v1784
    %v2293 = vpack.c.b16 %v1793, %v1789
    %v2294 = vpack.c.b16 %v1794, %v1790
    %v2295 = vpack.c.b16 %v1795, %v1791
    %v2296 = vpack.c.b16 %v1796, %v1792
    %v2297 = vpack.c.b16 %v1801, %v1797
    %v2298 = vpack.c.b16 %v1802, %v1798
    %v2299 = vpack.c.b16 %v1803, %v1799
    %v2300 = vpack.c.b16 %v1804, %v1800
    %v2301 = vpack.c.b16 %v1809, %v1805
    %v2302 = vpack.c.b16 %v1810, %v1806
    %v2303 = vpack.c.b16 %v1811, %v1807
    %v2304 = vpack.c.b16 %v1812, %v1808
    %v2305 = vpack.c.b16 %v1817, %v1813
    %v2306 = vpack.c.b16 %v1818, %v1814
    %v2307 = vpack.c.b16 %v1819, %v1815
    %v2308 = vpack.c.b16 %v1820, %v1816
    %v2309 = vpack.c.b16 %v1825, %v1821
    %v2310 = vpack.c.b16 %v1826, %v1822
    %v2311 = vpack.c.b16 %v1827, %v1823
    %v2312 = vpack.c.b16 %v1828, %v1824
    %v2313 = vpack.c.b16 %v1833, %v1829
    %v2314 = vpack.c.b16 %v1834, %v1830
    %v2315 = vpack.c.b16 %v1835, %v1831
    %v2316 = vpack.c.b16 %v1836, %v1832
    %v2317 = vpack.c.b16 %v1841, %v1837
    %v2318 = vpack.c.b16 %v1842, %v1838
    %v2319 = vpack.c.b16 %v1843, %v1839
    %v2320 = vpack.c.b16 %v1844, %v1840
    %v2321 = vpack.c.b16 %v1849, %v1845
    %v2322 = vpack.c.b16 %v1850, %v1846
    %v2323 = vpack.c.b16 %v1851, %v1847
    %v2324 = vpack.c.b16 %v1852, %v1848
    %v2325 = vpack.c.b16 %v1857, %v1853
    %v2326 = vpack.c.b16 %v1858, %v1854
    %v2327 = vpack.c.b16 %v1859, %v1855
    %v2328 = vpack.c.b16 %v1860, %v1856
    %v2329 = vpack.c.b16 %v1865, %v1861
    %v2330 = vpack.c.b16 %v1866, %v1862
    %v2331 = vpack.c.b16 %v1867, %v1863
    %v2332 = vpack.c.b16 %v1868, %v1864
    %v2333 = vpack.c.b16 %v1873, %v1869
    %v2334 = vpack.c.b16 %v1874, %v1870
    %v2335 = vpack.c.b16 %v1875, %v1871
    %v2336 = vpack.c.b16 %v1876, %v1872
    %v2337 = vpack.c.b16 %v1881, %v1877
    %v2338 = vpack.c.b16 %v1882, %v1878
    %v2339 = vpack.c.b16 %v1883, %v1879
    %v2340 = vpack.c.b16 %v1884, %v1880
    %v2341 = vpack.c.b16 %v1889, %v1885
    %v2342 = vpack.c.b16 %v1890, %v1886
    %v2343 = vpack.c.b16 %v1891, %v1887
    %v2344 = vpack.c.b16 %v1892, %v1888
    %v2345 = vpack.c.b16 %v1897, %v1893
    %v2346 = vpack.c.b16 %v1898, %v1894
    %v2347 = vpack.c.b16 %v1899, %v1895
    %v2348 = vpack.c.b16 %v1900, %v1896
    %2797 = vmatprep.subr.bf16.mxu0 %v1902
    %2798 = vmatpush1.bf16.msra.mxu0 %v1901
    %2799 = vmatprep.subr.bf16.mxu0 %v1906
    %2800 = vmatpush1.bf16.msra.mxu0 %v1905
    %2801 = vmatprep.subr.bf16.mxu0 %v1910
    %2802 = vmatpush1.bf16.msra.mxu0 %v1909
    %2803 = vmatprep.subr.bf16.mxu0 %v1914
    %2804 = vmatpush1.bf16.msra.mxu0 %v1913
    %2805 = vmatprep.subr.bf16.mxu0 %v1918
    %2806 = vmatpush1.bf16.msra.mxu0 %v1917
    %2807 = vmatprep.subr.bf16.mxu0 %v1922
    %2808 = vmatpush1.bf16.msra.mxu0 %v1921
    %2809 = vmatprep.subr.bf16.mxu0 %v1926
    %2810 = vmatpush1.bf16.msra.mxu0 %v1925
    %2811 = vmatprep.subr.bf16.mxu0 %v1930
    %2812 = vmatpush1.bf16.msra.mxu0 %v1929
    %2813 = vmatprep.subr.bf16.mxu0 %v1934
    %2814 = vmatpush1.bf16.msra.mxu0 %v1933
    %2815 = vmatprep.subr.bf16.mxu0 %v1938
    %2816 = vmatpush1.bf16.msra.mxu0 %v1937
    %2817 = vmatprep.subr.bf16.mxu0 %v1942
    %2818 = vmatpush1.bf16.msra.mxu0 %v1941
    %2819 = vmatprep.subr.bf16.mxu0 %v1946
    %2820 = vmatpush1.bf16.msra.mxu0 %v1945
    %2821 = vmatprep.subr.bf16.mxu0 %v1950
    %2822 = vmatpush1.bf16.msra.mxu0 %v1949
    %2823 = vmatprep.subr.bf16.mxu0 %v1954
    %2824 = vmatpush1.bf16.msra.mxu0 %v1953
    %2825 = vmatprep.subr.bf16.mxu0 %v1958
    %2826 = vmatpush1.bf16.msra.mxu0 %v1957
    %2827 = vmatprep.subr.bf16.mxu0 %v1962
    %2828 = vmatpush1.bf16.msra.mxu0 %v1961
    %2829 = vmatprep.mubr.bf16.mxu0 %v530
    %2830 = vmatmul.mubr.bf16.gmra.mrb[0].mxu0 %v529
    %v2831 = vpop.f32.mrb[0].mxu0
    %v2832 = vadd.f32 %v491, %v2831
    %v2833 = vpop.f32.mrb[0].mxu0
    %v2834 = vadd.f32 %v495, %v2833
    %v2835 = vpop.f32.mrb[0].mxu0
    %v2836 = vpop.f32.mrb[0].mxu0
    %2837 = vdwg.mxu0
    %2838 = vmatprep.subr.bf16.mxu0 %v1966
    %2839 = vmatpush1.bf16.msra.mxu0 %v1965
    %2840 = vmatprep.subr.bf16.mxu0 %v1970
    %2841 = vmatpush1.bf16.msra.mxu0 %v1969
    %2842 = vmatprep.subr.bf16.mxu0 %v1974
    %2843 = vmatpush1.bf16.msra.mxu0 %v1973
    %2844 = vmatprep.subr.bf16.mxu0 %v1978
    %2845 = vmatpush1.bf16.msra.mxu0 %v1977
    %2846 = vmatprep.subr.bf16.mxu0 %v1982
    %2847 = vmatpush1.bf16.msra.mxu0 %v1981
    %2848 = vmatprep.subr.bf16.mxu0 %v1986
    %2849 = vmatpush1.bf16.msra.mxu0 %v1985
    %2850 = vmatprep.subr.bf16.mxu0 %v1990
    %2851 = vmatpush1.bf16.msra.mxu0 %v1989
    %2852 = vmatprep.subr.bf16.mxu0 %v1994
    %2853 = vmatpush1.bf16.msra.mxu0 %v1993
    %2854 = vmatprep.subr.bf16.mxu0 %v1998
    %2855 = vmatpush1.bf16.msra.mxu0 %v1997
    %2856 = vmatprep.subr.bf16.mxu0 %v2002
    %2857 = vmatpush1.bf16.msra.mxu0 %v2001
    %2858 = vmatprep.subr.bf16.mxu0 %v2006
    %2859 = vmatpush1.bf16.msra.mxu0 %v2005
    %2860 = vmatprep.subr.bf16.mxu0 %v2010
    %2861 = vmatpush1.bf16.msra.mxu0 %v2009
    %2862 = vmatprep.subr.bf16.mxu0 %v2014
    %2863 = vmatpush1.bf16.msra.mxu0 %v2013
    %2864 = vmatprep.subr.bf16.mxu0 %v2018
    %2865 = vmatpush1.bf16.msra.mxu0 %v2017
    %2866 = vmatprep.subr.bf16.mxu0 %v2022
    %2867 = vmatpush1.bf16.msra.mxu0 %v2021
    %2868 = vmatprep.subr.bf16.mxu0 %v2026
    %2869 = vmatpush1.bf16.msra.mxu0 %v2025
    %2870 = vmatprep.mubr.bf16.mxu0 %v532
    %2871 = vmatmul.mubr.bf16.gmra.mrb[0].mxu0 %v531
    %v2872 = vpop.f32.mrb[0].mxu0
    %v2873 = vadd.f32 %v2832, %v2872
    %v2874 = vpop.f32.mrb[0].mxu0
    %v2875 = vadd.f32 %v2834, %v2874
    %v2876 = vpop.f32.mrb[0].mxu0
    %v2877 = vpop.f32.mrb[0].mxu0
    %2878 = vdwg.mxu0
    %2879 = vmatprep.subr.bf16.mxu0 %v2030
    %2880 = vmatpush1.bf16.msra.mxu0 %v2029
    %2881 = vmatprep.subr.bf16.mxu0 %v2034
    %2882 = vmatpush1.bf16.msra.mxu0 %v2033
    %2883 = vmatprep.subr.bf16.mxu0 %v2038
    %2884 = vmatpush1.bf16.msra.mxu0 %v2037
    %2885 = vmatprep.subr.bf16.mxu0 %v2042
    %2886 = vmatpush1.bf16.msra.mxu0 %v2041
    %2887 = vmatprep.subr.bf16.mxu0 %v2046
    %2888 = vmatpush1.bf16.msra.mxu0 %v2045
    %2889 = vmatprep.subr.bf16.mxu0 %v2050
    %2890 = vmatpush1.bf16.msra.mxu0 %v2049
    %2891 = vmatprep.subr.bf16.mxu0 %v2054
    %2892 = vmatpush1.bf16.msra.mxu0 %v2053
    %2893 = vmatprep.subr.bf16.mxu0 %v2058
    %2894 = vmatpush1.bf16.msra.mxu0 %v2057
    %2895 = vmatprep.subr.bf16.mxu0 %v2062
    %2896 = vmatpush1.bf16.msra.mxu0 %v2061
    %2897 = vmatprep.subr.bf16.mxu0 %v2066
    %2898 = vmatpush1.bf16.msra.mxu0 %v2065
    %2899 = vmatprep.subr.bf16.mxu0 %v2070
    %2900 = vmatpush1.bf16.msra.mxu0 %v2069
    %2901 = vmatprep.subr.bf16.mxu0 %v2074
    %2902 = vmatpush1.bf16.msra.mxu0 %v2073
    %2903 = vmatprep.subr.bf16.mxu0 %v2078
    %2904 = vmatpush1.bf16.msra.mxu0 %v2077
    %2905 = vmatprep.subr.bf16.mxu0 %v2082
    %2906 = vmatpush1.bf16.msra.mxu0 %v2081
    %2907 = vmatprep.subr.bf16.mxu0 %v2086
    %2908 = vmatpush1.bf16.msra.mxu0 %v2085
    %2909 = vmatprep.subr.bf16.mxu0 %v2090
    %2910 = vmatpush1.bf16.msra.mxu0 %v2089
    %2911 = vmatprep.mubr.bf16.mxu0 %v534
    %2912 = vmatmul.mubr.bf16.gmra.mrb[0].mxu0 %v533
    %v2913 = vpop.f32.mrb[0].mxu0
    %v2914 = vadd.f32 %v2873, %v2913
    %v2915 = vpop.f32.mrb[0].mxu0
    %v2916 = vadd.f32 %v2875, %v2915
    %v2917 = vpop.f32.mrb[0].mxu0
    %v2918 = vpop.f32.mrb[0].mxu0
    %2919 = vdwg.mxu0
    %2920 = vmatprep.subr.bf16.mxu0 %v2094
    %2921 = vmatpush1.bf16.msra.mxu0 %v2093
    %2922 = vmatprep.subr.bf16.mxu0 %v2098
    %2923 = vmatpush1.bf16.msra.mxu0 %v2097
    %2924 = vmatprep.subr.bf16.mxu0 %v2102
    %2925 = vmatpush1.bf16.msra.mxu0 %v2101
    %2926 = vmatprep.subr.bf16.mxu0 %v2106
    %2927 = vmatpush1.bf16.msra.mxu0 %v2105
    %2928 = vmatprep.subr.bf16.mxu0 %v2110
    %2929 = vmatpush1.bf16.msra.mxu0 %v2109
    %2930 = vmatprep.subr.bf16.mxu0 %v2114
    %2931 = vmatpush1.bf16.msra.mxu0 %v2113
    %2932 = vmatprep.subr.bf16.mxu0 %v2118
    %2933 = vmatpush1.bf16.msra.mxu0 %v2117
    %2934 = vmatprep.subr.bf16.mxu0 %v2122
    %2935 = vmatpush1.bf16.msra.mxu0 %v2121
    %2936 = vmatprep.subr.bf16.mxu0 %v2126
    %2937 = vmatpush1.bf16.msra.mxu0 %v2125
    %2938 = vmatprep.subr.bf16.mxu0 %v2130
    %2939 = vmatpush1.bf16.msra.mxu0 %v2129
    %2940 = vmatprep.subr.bf16.mxu0 %v2134
    %2941 = vmatpush1.bf16.msra.mxu0 %v2133
    %2942 = vmatprep.subr.bf16.mxu0 %v2138
    %2943 = vmatpush1.bf16.msra.mxu0 %v2137
    %2944 = vmatprep.subr.bf16.mxu0 %v2142
    %2945 = vmatpush1.bf16.msra.mxu0 %v2141
    %2946 = vmatprep.subr.bf16.mxu0 %v2146
    %2947 = vmatpush1.bf16.msra.mxu0 %v2145
    %2948 = vmatprep.subr.bf16.mxu0 %v2150
    %2949 = vmatpush1.bf16.msra.mxu0 %v2149
    %2950 = vmatprep.subr.bf16.mxu0 %v2154
    %2951 = vmatpush1.bf16.msra.mxu0 %v2153
    %2952 = vmatprep.mubr.bf16.mxu0 %v536
    %2953 = vmatmul.mubr.bf16.gmra.mrb[0].mxu0 %v535
    %v2954 = vpop.f32.mrb[0].mxu0
    %v2955 = vadd.f32 %v2914, %v2954
    %v2956 = vpop.f32.mrb[0].mxu0
    %v2957 = vadd.f32 %v2916, %v2956
    %v2958 = vpop.f32.mrb[0].mxu0
    %v2959 = vpop.f32.mrb[0].mxu0
    %2960 = vdwg.mxu0
    %2961 = vmatprep.subr.bf16.mxu0 %v2158
    %2962 = vmatpush1.bf16.msra.mxu0 %v2157
    %2963 = vmatprep.subr.bf16.mxu0 %v2162
    %2964 = vmatpush1.bf16.msra.mxu0 %v2161
    %2965 = vmatprep.subr.bf16.mxu0 %v2166
    %2966 = vmatpush1.bf16.msra.mxu0 %v2165
    %2967 = vmatprep.subr.bf16.mxu0 %v2170
    %2968 = vmatpush1.bf16.msra.mxu0 %v2169
    %2969 = vmatprep.subr.bf16.mxu0 %v2174
    %2970 = vmatpush1.bf16.msra.mxu0 %v2173
    %2971 = vmatprep.subr.bf16.mxu0 %v2178
    %2972 = vmatpush1.bf16.msra.mxu0 %v2177
    %2973 = vmatprep.subr.bf16.mxu0 %v2182
    %2974 = vmatpush1.bf16.msra.mxu0 %v2181
    %2975 = vmatprep.subr.bf16.mxu0 %v2186
    %2976 = vmatpush1.bf16.msra.mxu0 %v2185
    %2977 = vmatprep.subr.bf16.mxu0 %v2190
    %2978 = vmatpush1.bf16.msra.mxu0 %v2189
    %2979 = vmatprep.subr.bf16.mxu0 %v2194
    %2980 = vmatpush1.bf16.msra.mxu0 %v2193
    %2981 = vmatprep.subr.bf16.mxu0 %v2198
    %2982 = vmatpush1.bf16.msra.mxu0 %v2197
    %2983 = vmatprep.subr.bf16.mxu0 %v2202
    %2984 = vmatpush1.bf16.msra.mxu0 %v2201
    %2985 = vmatprep.subr.bf16.mxu0 %v2206
    %2986 = vmatpush1.bf16.msra.mxu0 %v2205
    %2987 = vmatprep.subr.bf16.mxu0 %v2210
    %2988 = vmatpush1.bf16.msra.mxu0 %v2209
    %2989 = vmatprep.subr.bf16.mxu0 %v2214
    %2990 = vmatpush1.bf16.msra.mxu0 %v2213
    %2991 = vmatprep.subr.bf16.mxu0 %v2218
    %2992 = vmatpush1.bf16.msra.mxu0 %v2217
    %2993 = vmatprep.mubr.bf16.mxu0 %v538
    %2994 = vmatmul.mubr.bf16.gmra.mrb[0].mxu0 %v537
    %v2995 = vpop.f32.mrb[0].mxu0
    %v2996 = vadd.f32 %v2955, %v2995
    %v2997 = vpop.f32.mrb[0].mxu0
    %v2998 = vadd.f32 %v2957, %v2997
    %v2999 = vpop.f32.mrb[0].mxu0
    %v3000 = vpop.f32.mrb[0].mxu0
    %3001 = vdwg.mxu0
    %3002 = vmatprep.subr.bf16.mxu0 %v2222
    %3003 = vmatpush1.bf16.msra.mxu0 %v2221
    %3004 = vmatprep.subr.bf16.mxu0 %v2226
    %3005 = vmatpush1.bf16.msra.mxu0 %v2225
    %3006 = vmatprep.subr.bf16.mxu0 %v2230
    %3007 = vmatpush1.bf16.msra.mxu0 %v2229
    %3008 = vmatprep.subr.bf16.mxu0 %v2234
    %3009 = vmatpush1.bf16.msra.mxu0 %v2233
    %3010 = vmatprep.subr.bf16.mxu0 %v2238
    %3011 = vmatpush1.bf16.msra.mxu0 %v2237
    %3012 = vmatprep.subr.bf16.mxu0 %v2242
    %3013 = vmatpush1.bf16.msra.mxu0 %v2241
    %3014 = vmatprep.subr.bf16.mxu0 %v2246
    %3015 = vmatpush1.bf16.msra.mxu0 %v2245
    %3016 = vmatprep.subr.bf16.mxu0 %v2250
    %3017 = vmatpush1.bf16.msra.mxu0 %v2249
    %3018 = vmatprep.subr.bf16.mxu0 %v2254
    %3019 = vmatpush1.bf16.msra.mxu0 %v2253
    %3020 = vmatprep.subr.bf16.mxu0 %v2258
    %3021 = vmatpush1.bf16.msra.mxu0 %v2257
    %3022 = vmatprep.subr.bf16.mxu0 %v2262
    %3023 = vmatpush1.bf16.msra.mxu0 %v2261
    %3024 = vmatprep.subr.bf16.mxu0 %v2266
    %3025 = vmatpush1.bf16.msra.mxu0 %v2265
    %3026 = vmatprep.subr.bf16.mxu0 %v2270
    %3027 = vmatpush1.bf16.msra.mxu0 %v2269
    %3028 = vmatprep.subr.bf16.mxu0 %v2274
    %3029 = vmatpush1.bf16.msra.mxu0 %v2273
    %3030 = vmatprep.subr.bf16.mxu0 %v2278
    %3031 = vmatpush1.bf16.msra.mxu0 %v2277
    %3032 = vmatprep.subr.bf16.mxu0 %v2282
    %3033 = vmatpush1.bf16.msra.mxu0 %v2281
    %3034 = vmatprep.mubr.bf16.mxu0 %v540
    %3035 = vmatmul.mubr.bf16.gmra.mrb[0].mxu0 %v539
    %v3036 = vpop.f32.mrb[0].mxu0
    %v3037 = vadd.f32 %v2996, %v3036
    %v3038 = vpop.f32.mrb[0].mxu0
    %v3039 = vadd.f32 %v2998, %v3038
    %v3040 = vpop.f32.mrb[0].mxu0
    %v3041 = vpop.f32.mrb[0].mxu0
    %3042 = vdwg.mxu0
    %3043 = vmatprep.subr.bf16.mxu0 %v2286
    %3044 = vmatpush1.bf16.msra.mxu0 %v2285
    %3045 = vmatprep.subr.bf16.mxu0 %v2290
    %3046 = vmatpush1.bf16.msra.mxu0 %v2289
    %3047 = vmatprep.subr.bf16.mxu0 %v2294
    %3048 = vmatpush1.bf16.msra.mxu0 %v2293
    %3049 = vmatprep.subr.bf16.mxu0 %v2298
    %3050 = vmatpush1.bf16.msra.mxu0 %v2297
    %3051 = vmatprep.subr.bf16.mxu0 %v2302
    %3052 = vmatpush1.bf16.msra.mxu0 %v2301
    %3053 = vmatprep.subr.bf16.mxu0 %v2306
    %3054 = vmatpush1.bf16.msra.mxu0 %v2305
    %3055 = vmatprep.subr.bf16.mxu0 %v2310
    %3056 = vmatpush1.bf16.msra.mxu0 %v2309
    %3057 = vmatprep.subr.bf16.mxu0 %v2314
    %3058 = vmatpush1.bf16.msra.mxu0 %v2313
    %3059 = vmatprep.subr.bf16.mxu0 %v2318
    %3060 = vmatpush1.bf16.msra.mxu0 %v2317
    %3061 = vmatprep.subr.bf16.mxu0 %v2322
    %3062 = vmatpush1.bf16.msra.mxu0 %v2321
    %3063 = vmatprep.subr.bf16.mxu0 %v2326
    %3064 = vmatpush1.bf16.msra.mxu0 %v2325
    %3065 = vmatprep.subr.bf16.mxu0 %v2330
    %3066 = vmatpush1.bf16.msra.mxu0 %v2329
    %3067 = vmatprep.subr.bf16.mxu0 %v2334
    %3068 = vmatpush1.bf16.msra.mxu0 %v2333
    %3069 = vmatprep.subr.bf16.mxu0 %v2338
    %3070 = vmatpush1.bf16.msra.mxu0 %v2337
    %3071 = vmatprep.subr.bf16.mxu0 %v2342
    %3072 = vmatpush1.bf16.msra.mxu0 %v2341
    %3073 = vmatprep.subr.bf16.mxu0 %v2346
    %3074 = vmatpush1.bf16.msra.mxu0 %v2345
    %3075 = vmatprep.mubr.bf16.mxu0 %v542
    %3076 = vmatmul.mubr.bf16.gmra.mrb[0].mxu0 %v541
    %v3077 = vpop.f32.mrb[0].mxu0
    %v3078 = vadd.f32 %v3037, %v3077
    %v3079 = vpop.f32.mrb[0].mxu0
    %v3080 = vadd.f32 %v3039, %v3079
    %v3081 = vpop.f32.mrb[0].mxu0
    %v3082 = vpop.f32.mrb[0].mxu0
    %3083 = vdwg.mxu0
    %3084 = vmatprep.subr.bf16.mxu0 %v1904
    %3085 = vmatpush1.bf16.msra.mxu0 %v1903
    %3086 = vmatprep.subr.bf16.mxu0 %v1908
    %3087 = vmatpush1.bf16.msra.mxu0 %v1907
    %3088 = vmatprep.subr.bf16.mxu0 %v1912
    %3089 = vmatpush1.bf16.msra.mxu0 %v1911
    %3090 = vmatprep.subr.bf16.mxu0 %v1916
    %3091 = vmatpush1.bf16.msra.mxu0 %v1915
    %3092 = vmatprep.subr.bf16.mxu0 %v1920
    %3093 = vmatpush1.bf16.msra.mxu0 %v1919
    %3094 = vmatprep.subr.bf16.mxu0 %v1924
    %3095 = vmatpush1.bf16.msra.mxu0 %v1923
    %3096 = vmatprep.subr.bf16.mxu0 %v1928
    %3097 = vmatpush1.bf16.msra.mxu0 %v1927
    %3098 = vmatprep.subr.bf16.mxu0 %v1932
    %3099 = vmatpush1.bf16.msra.mxu0 %v1931
    %3100 = vmatprep.subr.bf16.mxu0 %v1936
    %3101 = vmatpush1.bf16.msra.mxu0 %v1935
    %3102 = vmatprep.subr.bf16.mxu0 %v1940
    %3103 = vmatpush1.bf16.msra.mxu0 %v1939
    %3104 = vmatprep.subr.bf16.mxu0 %v1944
    %3105 = vmatpush1.bf16.msra.mxu0 %v1943
    %3106 = vmatprep.subr.bf16.mxu0 %v1948
    %3107 = vmatpush1.bf16.msra.mxu0 %v1947
    %3108 = vmatprep.subr.bf16.mxu0 %v1952
    %3109 = vmatpush1.bf16.msra.mxu0 %v1951
    %3110 = vmatprep.subr.bf16.mxu0 %v1956
    %3111 = vmatpush1.bf16.msra.mxu0 %v1955
    %3112 = vmatprep.subr.bf16.mxu0 %v1960
    %3113 = vmatpush1.bf16.msra.mxu0 %v1959
    %3114 = vmatprep.subr.bf16.mxu0 %v1964
    %3115 = vmatpush1.bf16.msra.mxu0 %v1963
    %3116 = vmatprep.mubr.bf16.mxu0 %v530
    %3117 = vmatmul.mubr.bf16.gmra.mrb[0].mxu0 %v529
    %v3118 = vpop.f32.mrb[0].mxu0
    %v3119 = vadd.f32 %v499, %v3118
    %v3120 = vpop.f32.mrb[0].mxu0
    %v3121 = vadd.f32 %v503, %v3120
    %v3122 = vpop.f32.mrb[0].mxu0
    %v3123 = vpop.f32.mrb[0].mxu0
    %3124 = vdwg.mxu0
    %3125 = vmatprep.subr.bf16.mxu0 %v1968
    %3126 = vmatpush1.bf16.msra.mxu0 %v1967
    %3127 = vmatprep.subr.bf16.mxu0 %v1972
    %3128 = vmatpush1.bf16.msra.mxu0 %v1971
    %3129 = vmatprep.subr.bf16.mxu0 %v1976
    %3130 = vmatpush1.bf16.msra.mxu0 %v1975
    %3131 = vmatprep.subr.bf16.mxu0 %v1980
    %3132 = vmatpush1.bf16.msra.mxu0 %v1979
    %3133 = vmatprep.subr.bf16.mxu0 %v1984
    %3134 = vmatpush1.bf16.msra.mxu0 %v1983
    %3135 = vmatprep.subr.bf16.mxu0 %v1988
    %3136 = vmatpush1.bf16.msra.mxu0 %v1987
    %3137 = vmatprep.subr.bf16.mxu0 %v1992
    %3138 = vmatpush1.bf16.msra.mxu0 %v1991
    %3139 = vmatprep.subr.bf16.mxu0 %v1996
    %3140 = vmatpush1.bf16.msra.mxu0 %v1995
    %3141 = vmatprep.subr.bf16.mxu0 %v2000
    %3142 = vmatpush1.bf16.msra.mxu0 %v1999
    %3143 = vmatprep.subr.bf16.mxu0 %v2004
    %3144 = vmatpush1.bf16.msra.mxu0 %v2003
    %3145 = vmatprep.subr.bf16.mxu0 %v2008
    %3146 = vmatpush1.bf16.msra.mxu0 %v2007
    %3147 = vmatprep.subr.bf16.mxu0 %v2012
    %3148 = vmatpush1.bf16.msra.mxu0 %v2011
    %3149 = vmatprep.subr.bf16.mxu0 %v2016
    %3150 = vmatpush1.bf16.msra.mxu0 %v2015
    %3151 = vmatprep.subr.bf16.mxu0 %v2020
    %3152 = vmatpush1.bf16.msra.mxu0 %v2019
    %3153 = vmatprep.subr.bf16.mxu0 %v2024
    %3154 = vmatpush1.bf16.msra.mxu0 %v2023
    %3155 = vmatprep.subr.bf16.mxu0 %v2028
    %3156 = vmatpush1.bf16.msra.mxu0 %v2027
    %3157 = vmatprep.mubr.bf16.mxu0 %v532
    %3158 = vmatmul.mubr.bf16.gmra.mrb[0].mxu0 %v531
    %v3159 = vpop.f32.mrb[0].mxu0
    %v3160 = vadd.f32 %v3119, %v3159
    %v3161 = vpop.f32.mrb[0].mxu0
    %v3162 = vadd.f32 %v3121, %v3161
    %v3163 = vpop.f32.mrb[0].mxu0
    %v3164 = vpop.f32.mrb[0].mxu0
    %3165 = vdwg.mxu0
    %3166 = vmatprep.subr.bf16.mxu0 %v2032
    %3167 = vmatpush1.bf16.msra.mxu0 %v2031
    %3168 = vmatprep.subr.bf16.mxu0 %v2036
    %3169 = vmatpush1.bf16.msra.mxu0 %v2035
    %3170 = vmatprep.subr.bf16.mxu0 %v2040
    %3171 = vmatpush1.bf16.msra.mxu0 %v2039
    %3172 = vmatprep.subr.bf16.mxu0 %v2044
    %3173 = vmatpush1.bf16.msra.mxu0 %v2043
    %3174 = vmatprep.subr.bf16.mxu0 %v2048
    %3175 = vmatpush1.bf16.msra.mxu0 %v2047
    %3176 = vmatprep.subr.bf16.mxu0 %v2052
    %3177 = vmatpush1.bf16.msra.mxu0 %v2051
    %3178 = vmatprep.subr.bf16.mxu0 %v2056
    %3179 = vmatpush1.bf16.msra.mxu0 %v2055
    %3180 = vmatprep.subr.bf16.mxu0 %v2060
    %3181 = vmatpush1.bf16.msra.mxu0 %v2059
    %3182 = vmatprep.subr.bf16.mxu0 %v2064
    %3183 = vmatpush1.bf16.msra.mxu0 %v2063
    %3184 = vmatprep.subr.bf16.mxu0 %v2068
    %3185 = vmatpush1.bf16.msra.mxu0 %v2067
    %3186 = vmatprep.subr.bf16.mxu0 %v2072
    %3187 = vmatpush1.bf16.msra.mxu0 %v2071
    %3188 = vmatprep.subr.bf16.mxu0 %v2076
    %3189 = vmatpush1.bf16.msra.mxu0 %v2075
    %3190 = vmatprep.subr.bf16.mxu0 %v2080
    %3191 = vmatpush1.bf16.msra.mxu0 %v2079
    %3192 = vmatprep.subr.bf16.mxu0 %v2084
    %3193 = vmatpush1.bf16.msra.mxu0 %v2083
    %3194 = vmatprep.subr.bf16.mxu0 %v2088
    %3195 = vmatpush1.bf16.msra.mxu0 %v2087
    %3196 = vmatprep.subr.bf16.mxu0 %v2092
    %3197 = vmatpush1.bf16.msra.mxu0 %v2091
    %3198 = vmatprep.mubr.bf16.mxu0 %v534
    %3199 = vmatmul.mubr.bf16.gmra.mrb[0].mxu0 %v533
    %v3200 = vpop.f32.mrb[0].mxu0
    %v3201 = vadd.f32 %v3160, %v3200
    %v3202 = vpop.f32.mrb[0].mxu0
    %v3203 = vadd.f32 %v3162, %v3202
    %v3204 = vpop.f32.mrb[0].mxu0
    %v3205 = vpop.f32.mrb[0].mxu0
    %3206 = vdwg.mxu0
    %3207 = vmatprep.subr.bf16.mxu0 %v2096
    %3208 = vmatpush1.bf16.msra.mxu0 %v2095
    %3209 = vmatprep.subr.bf16.mxu0 %v2100
    %3210 = vmatpush1.bf16.msra.mxu0 %v2099
    %3211 = vmatprep.subr.bf16.mxu0 %v2104
    %3212 = vmatpush1.bf16.msra.mxu0 %v2103
    %3213 = vmatprep.subr.bf16.mxu0 %v2108
    %3214 = vmatpush1.bf16.msra.mxu0 %v2107
    %3215 = vmatprep.subr.bf16.mxu0 %v2112
    %3216 = vmatpush1.bf16.msra.mxu0 %v2111
    %3217 = vmatprep.subr.bf16.mxu0 %v2116
    %3218 = vmatpush1.bf16.msra.mxu0 %v2115
    %3219 = vmatprep.subr.bf16.mxu0 %v2120
    %3220 = vmatpush1.bf16.msra.mxu0 %v2119
    %3221 = vmatprep.subr.bf16.mxu0 %v2124
    %3222 = vmatpush1.bf16.msra.mxu0 %v2123
    %3223 = vmatprep.subr.bf16.mxu0 %v2128
    %3224 = vmatpush1.bf16.msra.mxu0 %v2127
    %3225 = vmatprep.subr.bf16.mxu0 %v2132
    %3226 = vmatpush1.bf16.msra.mxu0 %v2131
    %3227 = vmatprep.subr.bf16.mxu0 %v2136
    %3228 = vmatpush1.bf16.msra.mxu0 %v2135
    %3229 = vmatprep.subr.bf16.mxu0 %v2140
    %3230 = vmatpush1.bf16.msra.mxu0 %v2139
    %3231 = vmatprep.subr.bf16.mxu0 %v2144
    %3232 = vmatpush1.bf16.msra.mxu0 %v2143
    %3233 = vmatprep.subr.bf16.mxu0 %v2148
    %3234 = vmatpush1.bf16.msra.mxu0 %v2147
    %3235 = vmatprep.subr.bf16.mxu0 %v2152
    %3236 = vmatpush1.bf16.msra.mxu0 %v2151
    %3237 = vmatprep.subr.bf16.mxu0 %v2156
    %3238 = vmatpush1.bf16.msra.mxu0 %v2155
    %3239 = vmatprep.mubr.bf16.mxu0 %v536
    %3240 = vmatmul.mubr.bf16.gmra.mrb[0].mxu0 %v535
    %v3241 = vpop.f32.mrb[0].mxu0
    %v3242 = vadd.f32 %v3201, %v3241
    %v3243 = vpop.f32.mrb[0].mxu0
    %v3244 = vadd.f32 %v3203, %v3243
    %v3245 = vpop.f32.mrb[0].mxu0
    %v3246 = vpop.f32.mrb[0].mxu0
    %3247 = vdwg.mxu0
    %3248 = vmatprep.subr.bf16.mxu0 %v2160
    %3249 = vmatpush1.bf16.msra.mxu0 %v2159
    %3250 = vmatprep.subr.bf16.mxu0 %v2164
    %3251 = vmatpush1.bf16.msra.mxu0 %v2163
    %3252 = vmatprep.subr.bf16.mxu0 %v2168
    %3253 = vmatpush1.bf16.msra.mxu0 %v2167
    %3254 = vmatprep.subr.bf16.mxu0 %v2172
    %3255 = vmatpush1.bf16.msra.mxu0 %v2171
    %3256 = vmatprep.subr.bf16.mxu0 %v2176
    %3257 = vmatpush1.bf16.msra.mxu0 %v2175
    %3258 = vmatprep.subr.bf16.mxu0 %v2180
    %3259 = vmatpush1.bf16.msra.mxu0 %v2179
    %3260 = vmatprep.subr.bf16.mxu0 %v2184
    %3261 = vmatpush1.bf16.msra.mxu0 %v2183
    %3262 = vmatprep.subr.bf16.mxu0 %v2188
    %3263 = vmatpush1.bf16.msra.mxu0 %v2187
    %3264 = vmatprep.subr.bf16.mxu0 %v2192
    %3265 = vmatpush1.bf16.msra.mxu0 %v2191
    %3266 = vmatprep.subr.bf16.mxu0 %v2196
    %3267 = vmatpush1.bf16.msra.mxu0 %v2195
    %3268 = vmatprep.subr.bf16.mxu0 %v2200
    %3269 = vmatpush1.bf16.msra.mxu0 %v2199
    %3270 = vmatprep.subr.bf16.mxu0 %v2204
    %3271 = vmatpush1.bf16.msra.mxu0 %v2203
    %3272 = vmatprep.subr.bf16.mxu0 %v2208
    %3273 = vmatpush1.bf16.msra.mxu0 %v2207
    %3274 = vmatprep.subr.bf16.mxu0 %v2212
    %3275 = vmatpush1.bf16.msra.mxu0 %v2211
    %3276 = vmatprep.subr.bf16.mxu0 %v2216
    %3277 = vmatpush1.bf16.msra.mxu0 %v2215
    %3278 = vmatprep.subr.bf16.mxu0 %v2220
    %3279 = vmatpush1.bf16.msra.mxu0 %v2219
    %3280 = vmatprep.mubr.bf16.mxu0 %v538
    %3281 = vmatmul.mubr.bf16.gmra.mrb[0].mxu0 %v537
    %v3282 = vpop.f32.mrb[0].mxu0
    %v3283 = vadd.f32 %v3242, %v3282
    %v3284 = vpop.f32.mrb[0].mxu0
    %v3285 = vadd.f32 %v3244, %v3284
    %v3286 = vpop.f32.mrb[0].mxu0
    %v3287 = vpop.f32.mrb[0].mxu0
    %3288 = vdwg.mxu0
    %3289 = vmatprep.subr.bf16.mxu0 %v2224
    %3290 = vmatpush1.bf16.msra.mxu0 %v2223
    %3291 = vmatprep.subr.bf16.mxu0 %v2228
    %3292 = vmatpush1.bf16.msra.mxu0 %v2227
    %3293 = vmatprep.subr.bf16.mxu0 %v2232
    %3294 = vmatpush1.bf16.msra.mxu0 %v2231
    %3295 = vmatprep.subr.bf16.mxu0 %v2236
    %3296 = vmatpush1.bf16.msra.mxu0 %v2235
    %3297 = vmatprep.subr.bf16.mxu0 %v2240
    %3298 = vmatpush1.bf16.msra.mxu0 %v2239
    %3299 = vmatprep.subr.bf16.mxu0 %v2244
    %3300 = vmatpush1.bf16.msra.mxu0 %v2243
    %3301 = vmatprep.subr.bf16.mxu0 %v2248
    %3302 = vmatpush1.bf16.msra.mxu0 %v2247
    %3303 = vmatprep.subr.bf16.mxu0 %v2252
    %3304 = vmatpush1.bf16.msra.mxu0 %v2251
    %3305 = vmatprep.subr.bf16.mxu0 %v2256
    %3306 = vmatpush1.bf16.msra.mxu0 %v2255
    %3307 = vmatprep.subr.bf16.mxu0 %v2260
    %3308 = vmatpush1.bf16.msra.mxu0 %v2259
    %3309 = vmatprep.subr.bf16.mxu0 %v2264
    %3310 = vmatpush1.bf16.msra.mxu0 %v2263
    %3311 = vmatprep.subr.bf16.mxu0 %v2268
    %3312 = vmatpush1.bf16.msra.mxu0 %v2267
    %3313 = vmatprep.subr.bf16.mxu0 %v2272
    %3314 = vmatpush1.bf16.msra.mxu0 %v2271
    %3315 = vmatprep.subr.bf16.mxu0 %v2276
    %3316 = vmatpush1.bf16.msra.mxu0 %v2275
    %3317 = vmatprep.subr.bf16.mxu0 %v2280
    %3318 = vmatpush1.bf16.msra.mxu0 %v2279
    %3319 = vmatprep.subr.bf16.mxu0 %v2284
    %3320 = vmatpush1.bf16.msra.mxu0 %v2283
    %3321 = vmatprep.mubr.bf16.mxu0 %v540
    %3322 = vmatmul.mubr.bf16.gmra.mrb[0].mxu0 %v539
    %v3323 = vpop.f32.mrb[0].mxu0
    %v3324 = vadd.f32 %v3283, %v3323
    %v3325 = vpop.f32.mrb[0].mxu0
    %v3326 = vadd.f32 %v3285, %v3325
    %v3327 = vpop.f32.mrb[0].mxu0
    %v3328 = vpop.f32.mrb[0].mxu0
    %3329 = vdwg.mxu0
    %3330 = vmatprep.subr.bf16.mxu0 %v2288
    %3331 = vmatpush1.bf16.msra.mxu0 %v2287
    %3332 = vmatprep.subr.bf16.mxu0 %v2292
    %3333 = vmatpush1.bf16.msra.mxu0 %v2291
    %3334 = vmatprep.subr.bf16.mxu0 %v2296
    %3335 = vmatpush1.bf16.msra.mxu0 %v2295
    %3336 = vmatprep.subr.bf16.mxu0 %v2300
    %3337 = vmatpush1.bf16.msra.mxu0 %v2299
    %3338 = vmatprep.subr.bf16.mxu0 %v2304
    %3339 = vmatpush1.bf16.msra.mxu0 %v2303
    %3340 = vmatprep.subr.bf16.mxu0 %v2308
    %3341 = vmatpush1.bf16.msra.mxu0 %v2307
    %3342 = vmatprep.subr.bf16.mxu0 %v2312
    %3343 = vmatpush1.bf16.msra.mxu0 %v2311
    %3344 = vmatprep.subr.bf16.mxu0 %v2316
    %3345 = vmatpush1.bf16.msra.mxu0 %v2315
    %3346 = vmatprep.subr.bf16.mxu0 %v2320
    %3347 = vmatpush1.bf16.msra.mxu0 %v2319
    %3348 = vmatprep.subr.bf16.mxu0 %v2324
    %3349 = vmatpush1.bf16.msra.mxu0 %v2323
    %3350 = vmatprep.subr.bf16.mxu0 %v2328
    %3351 = vmatpush1.bf16.msra.mxu0 %v2327
    %3352 = vmatprep.subr.bf16.mxu0 %v2332
    %3353 = vmatpush1.bf16.msra.mxu0 %v2331
    %3354 = vmatprep.subr.bf16.mxu0 %v2336
    %3355 = vmatpush1.bf16.msra.mxu0 %v2335
    %3356 = vmatprep.subr.bf16.mxu0 %v2340
    %3357 = vmatpush1.bf16.msra.mxu0 %v2339
    %3358 = vmatprep.subr.bf16.mxu0 %v2344
    %3359 = vmatpush1.bf16.msra.mxu0 %v2343
    %3360 = vmatprep.subr.bf16.mxu0 %v2348
    %3361 = vmatpush1.bf16.msra.mxu0 %v2347
    %3362 = vmatprep.mubr.bf16.mxu0 %v542
    %3363 = vmatmul.mubr.bf16.gmra.mrb[0].mxu0 %v541
    %v3364 = vpop.f32.mrb[0].mxu0
    %v3365 = vadd.f32 %v3324, %v3364
    %v3366 = vpop.f32.mrb[0].mxu0
    %v3367 = vadd.f32 %v3326, %v3366
    %v3368 = vpop.f32.mrb[0].mxu0
    %v3369 = vpop.f32.mrb[0].mxu0
    %3370 = vdwg.mxu0
    %v3371 = vmax.f32 %v3078, 0.0
    %v3372 = vmax.f32 %v3080, 0.0
    %v3373 = vmax.f32 %v3365, 0.0
    %v3374 = vmax.f32 %v3367, 0.0
    %v3375 = vld [vmem:[%s5] sm:$0xff]
    %v3376 = vld [vmem:[%s5 + $0x8] sm:$0xff]
    %v3377 = vld [vmem:[%s5 + $0x10] sm:$0xff]
    %v3378 = vld [vmem:[%s5 + $0x18] sm:$0xff]
    %v3379 = vmul.f32 %v3371, %v3375
    %v3380 = vmul.f32 %v3372, %v3376
    %v3381 = vmul.f32 %v3373, %v3377
    %v3382 = vmul.f32 %v3374, %v3378
    %v3383 = vpack.c.bf16 %v3379, %v3379
    %v3384 = vpack.c.bf16 %v3380, %v3380
    %v3385 = vpack.c.bf16 %v3381, %v3381
    %v3386 = vpack.c.bf16 %v3382, %v3382
    %v3387 = vld [vmem:[%s3] sm:$0xff]
    %v3388 = vld [vmem:[%s3 + $0x8] sm:$0xff]
    %v3389 = vld [vmem:[%s3 + $0x10] sm:$0xff]
    %v3390 = vld [vmem:[%s3 + $0x18] sm:$0xff]
    %v3391 = vld [vmem:[%s3 + $0x20] sm:$0xff]
    %v3392 = vld [vmem:[%s3 + $0x28] sm:$0xff]
    %v3393 = vld [vmem:[%s3 + $0x30] sm:$0xff]
    %v3394 = vld [vmem:[%s3 + $0x38] sm:$0xff]
    %v3395 = vld [vmem:[%s3 + $0x40] sm:$0xff]
    %v3396 = vld [vmem:[%s3 + $0x48] sm:$0xff]
    %v3397 = vld [vmem:[%s3 + $0x50] sm:$0xff]
    %v3398 = vld [vmem:[%s3 + $0x58] sm:$0xff]
    %v3399 = vld [vmem:[%s3 + $0x60] sm:$0xff]
    %v3400 = vld [vmem:[%s3 + $0x68] sm:$0xff]
    %v3401 = vld [vmem:[%s3 + $0x70] sm:$0xff]
    %v3402 = vld [vmem:[%s3 + $0x78] sm:$0xff]
    %v3403 = vld [vmem:[%s3 + $0x80] sm:$0xff]
    %v3404 = vld [vmem:[%s3 + $0x88] sm:$0xff]
    %v3405 = vld [vmem:[%s3 + $0x90] sm:$0xff]
    %v3406 = vld [vmem:[%s3 + $0x98] sm:$0xff]
    %v3407 = vld [vmem:[%s3 + $0xa0] sm:$0xff]
    %v3408 = vld [vmem:[%s3 + $0xa8] sm:$0xff]
    %v3409 = vld [vmem:[%s3 + $0xb0] sm:$0xff]
    %v3410 = vld [vmem:[%s3 + $0xb8] sm:$0xff]
    %v3411 = vld [vmem:[%s3 + $0xc0] sm:$0xff]
    %v3412 = vld [vmem:[%s3 + $0xc8] sm:$0xff]
    %v3413 = vld [vmem:[%s3 + $0xd0] sm:$0xff]
    %v3414 = vld [vmem:[%s3 + $0xd8] sm:$0xff]
    %v3415 = vld [vmem:[%s3 + $0xe0] sm:$0xff]
    %v3416 = vld [vmem:[%s3 + $0xe8] sm:$0xff]
    %v3417 = vld [vmem:[%s3 + $0xf0] sm:$0xff]
    %v3418 = vld [vmem:[%s3 + $0xf8] sm:$0xff]
    %v3419 = vld [vmem:[%s3 + $0x100] sm:$0xff]
    %v3420 = vld [vmem:[%s3 + $0x108] sm:$0xff]
    %v3421 = vld [vmem:[%s3 + $0x110] sm:$0xff]
    %v3422 = vld [vmem:[%s3 + $0x118] sm:$0xff]
    %v3423 = vld [vmem:[%s3 + $0x120] sm:$0xff]
    %v3424 = vld [vmem:[%s3 + $0x128] sm:$0xff]
    %v3425 = vld [vmem:[%s3 + $0x130] sm:$0xff]
    %v3426 = vld [vmem:[%s3 + $0x138] sm:$0xff]
    %v3427 = vld [vmem:[%s3 + $0x140] sm:$0xff]
    %v3428 = vld [vmem:[%s3 + $0x148] sm:$0xff]
    %v3429 = vld [vmem:[%s3 + $0x150] sm:$0xff]
    %v3430 = vld [vmem:[%s3 + $0x158] sm:$0xff]
    %v3431 = vld [vmem:[%s3 + $0x160] sm:$0xff]
    %v3432 = vld [vmem:[%s3 + $0x168] sm:$0xff]
    %v3433 = vld [vmem:[%s3 + $0x170] sm:$0xff]
    %v3434 = vld [vmem:[%s3 + $0x178] sm:$0xff]
    %v3435 = vld [vmem:[%s3 + $0x180] sm:$0xff]
    %v3436 = vld [vmem:[%s3 + $0x188] sm:$0xff]
    %v3437 = vld [vmem:[%s3 + $0x190] sm:$0xff]
    %v3438 = vld [vmem:[%s3 + $0x198] sm:$0xff]
    %v3439 = vld [vmem:[%s3 + $0x1a0] sm:$0xff]
    %v3440 = vld [vmem:[%s3 + $0x1a8] sm:$0xff]
    %v3441 = vld [vmem:[%s3 + $0x1b0] sm:$0xff]
    %v3442 = vld [vmem:[%s3 + $0x1b8] sm:$0xff]
    %v3443 = vld [vmem:[%s3 + $0x1c0] sm:$0xff]
    %v3444 = vld [vmem:[%s3 + $0x1c8] sm:$0xff]
    %v3445 = vld [vmem:[%s3 + $0x1d0] sm:$0xff]
    %v3446 = vld [vmem:[%s3 + $0x1d8] sm:$0xff]
    %v3447 = vld [vmem:[%s3 + $0x1e0] sm:$0xff]
    %v3448 = vld [vmem:[%s3 + $0x1e8] sm:$0xff]
    %v3449 = vld [vmem:[%s3 + $0x1f0] sm:$0xff]
    %v3450 = vld [vmem:[%s3 + $0x1f8] sm:$0xff]
    %v3451 = vld [vmem:[%s4] sm:$0x3]
    %v3453 = vlaneseq
    %v3454 = vshrl.u32 %v3453, 7
    %v3455 = vsub.s32 0, %v3454
    %v3456 = vrot.slane %v3451, %v3455
    %v3457 = vlaneseq
    %v3458 = vshrl.u32 %v3457, 7
    %v3459 = vsub.s32 1, %v3458
    %v3460 = vrot.slane %v3451, %v3459
    %v3527 = vunpack.c.l.b16 %v3387
    %v3528 = vunpack.c.h.b16 %v3387
    %v3529 = vunpack.c.l.b16 %v3388
    %v3530 = vunpack.c.h.b16 %v3388
    %v3531 = vunpack.c.l.b16 %v3389
    %v3532 = vunpack.c.h.b16 %v3389
    %v3533 = vunpack.c.l.b16 %v3390
    %v3534 = vunpack.c.h.b16 %v3390
    %v3535 = vunpack.c.l.b16 %v3391
    %v3536 = vunpack.c.h.b16 %v3391
    %v3537 = vunpack.c.l.b16 %v3392
    %v3538 = vunpack.c.h.b16 %v3392
    %v3539 = vunpack.c.l.b16 %v3393
    %v3540 = vunpack.c.h.b16 %v3393
    %v3541 = vunpack.c.l.b16 %v3394
    %v3542 = vunpack.c.h.b16 %v3394
    %v3543 = vunpack.c.l.b16 %v3395
    %v3544 = vunpack.c.h.b16 %v3395
    %v3545 = vunpack.c.l.b16 %v3396
    %v3546 = vunpack.c.h.b16 %v3396
    %v3547 = vunpack.c.l.b16 %v3397
    %v3548 = vunpack.c.h.b16 %v3397
    %v3549 = vunpack.c.l.b16 %v3398
    %v3550 = vunpack.c.h.b16 %v3398
    %v3551 = vunpack.c.l.b16 %v3399
    %v3552 = vunpack.c.h.b16 %v3399
    %v3553 = vunpack.c.l.b16 %v3400
    %v3554 = vunpack.c.h.b16 %v3400
    %v3555 = vunpack.c.l.b16 %v3401
    %v3556 = vunpack.c.h.b16 %v3401
    %v3557 = vunpack.c.l.b16 %v3402
    %v3558 = vunpack.c.h.b16 %v3402
    %v3559 = vunpack.c.l.b16 %v3403
    %v3560 = vunpack.c.h.b16 %v3403
    %v3561 = vunpack.c.l.b16 %v3404
    %v3562 = vunpack.c.h.b16 %v3404
    %v3563 = vunpack.c.l.b16 %v3405
    %v3564 = vunpack.c.h.b16 %v3405
    %v3565 = vunpack.c.l.b16 %v3406
    %v3566 = vunpack.c.h.b16 %v3406
    %v3567 = vunpack.c.l.b16 %v3407
    %v3568 = vunpack.c.h.b16 %v3407
    %v3569 = vunpack.c.l.b16 %v3408
    %v3570 = vunpack.c.h.b16 %v3408
    %v3571 = vunpack.c.l.b16 %v3409
    %v3572 = vunpack.c.h.b16 %v3409
    %v3573 = vunpack.c.l.b16 %v3410
    %v3574 = vunpack.c.h.b16 %v3410
    %v3575 = vunpack.c.l.b16 %v3411
    %v3576 = vunpack.c.h.b16 %v3411
    %v3577 = vunpack.c.l.b16 %v3412
    %v3578 = vunpack.c.h.b16 %v3412
    %v3579 = vunpack.c.l.b16 %v3413
    %v3580 = vunpack.c.h.b16 %v3413
    %v3581 = vunpack.c.l.b16 %v3414
    %v3582 = vunpack.c.h.b16 %v3414
    %v3583 = vunpack.c.l.b16 %v3415
    %v3584 = vunpack.c.h.b16 %v3415
    %v3585 = vunpack.c.l.b16 %v3416
    %v3586 = vunpack.c.h.b16 %v3416
    %v3587 = vunpack.c.l.b16 %v3417
    %v3588 = vunpack.c.h.b16 %v3417
    %v3589 = vunpack.c.l.b16 %v3418
    %v3590 = vunpack.c.h.b16 %v3418
    %v3591 = vunpack.c.l.b16 %v3419
    %v3592 = vunpack.c.h.b16 %v3419
    %v3593 = vunpack.c.l.b16 %v3420
    %v3594 = vunpack.c.h.b16 %v3420
    %v3595 = vunpack.c.l.b16 %v3421
    %v3596 = vunpack.c.h.b16 %v3421
    %v3597 = vunpack.c.l.b16 %v3422
    %v3598 = vunpack.c.h.b16 %v3422
    %v3599 = vunpack.c.l.b16 %v3423
    %v3600 = vunpack.c.h.b16 %v3423
    %v3601 = vunpack.c.l.b16 %v3424
    %v3602 = vunpack.c.h.b16 %v3424
    %v3603 = vunpack.c.l.b16 %v3425
    %v3604 = vunpack.c.h.b16 %v3425
    %v3605 = vunpack.c.l.b16 %v3426
    %v3606 = vunpack.c.h.b16 %v3426
    %v3607 = vunpack.c.l.b16 %v3427
    %v3608 = vunpack.c.h.b16 %v3427
    %v3609 = vunpack.c.l.b16 %v3428
    %v3610 = vunpack.c.h.b16 %v3428
    %v3611 = vunpack.c.l.b16 %v3429
    %v3612 = vunpack.c.h.b16 %v3429
    %v3613 = vunpack.c.l.b16 %v3430
    %v3614 = vunpack.c.h.b16 %v3430
    %v3615 = vunpack.c.l.b16 %v3431
    %v3616 = vunpack.c.h.b16 %v3431
    %v3617 = vunpack.c.l.b16 %v3432
    %v3618 = vunpack.c.h.b16 %v3432
    %v3619 = vunpack.c.l.b16 %v3433
    %v3620 = vunpack.c.h.b16 %v3433
    %v3621 = vunpack.c.l.b16 %v3434
    %v3622 = vunpack.c.h.b16 %v3434
    %v3623 = vunpack.c.l.b16 %v3435
    %v3624 = vunpack.c.h.b16 %v3435
    %v3625 = vunpack.c.l.b16 %v3436
    %v3626 = vunpack.c.h.b16 %v3436
    %v3627 = vunpack.c.l.b16 %v3437
    %v3628 = vunpack.c.h.b16 %v3437
    %v3629 = vunpack.c.l.b16 %v3438
    %v3630 = vunpack.c.h.b16 %v3438
    %v3631 = vunpack.c.l.b16 %v3439
    %v3632 = vunpack.c.h.b16 %v3439
    %v3633 = vunpack.c.l.b16 %v3440
    %v3634 = vunpack.c.h.b16 %v3440
    %v3635 = vunpack.c.l.b16 %v3441
    %v3636 = vunpack.c.h.b16 %v3441
    %v3637 = vunpack.c.l.b16 %v3442
    %v3638 = vunpack.c.h.b16 %v3442
    %v3639 = vunpack.c.l.b16 %v3443
    %v3640 = vunpack.c.h.b16 %v3443
    %v3641 = vunpack.c.l.b16 %v3444
    %v3642 = vunpack.c.h.b16 %v3444
    %v3643 = vunpack.c.l.b16 %v3445
    %v3644 = vunpack.c.h.b16 %v3445
    %v3645 = vunpack.c.l.b16 %v3446
    %v3646 = vunpack.c.h.b16 %v3446
    %v3647 = vunpack.c.l.b16 %v3447
    %v3648 = vunpack.c.h.b16 %v3447
    %v3649 = vunpack.c.l.b16 %v3448
    %v3650 = vunpack.c.h.b16 %v3448
    %v3651 = vunpack.c.l.b16 %v3449
    %v3652 = vunpack.c.h.b16 %v3449
    %v3653 = vunpack.c.l.b16 %v3450
    %v3654 = vunpack.c.h.b16 %v3450
    %v3655 = vpack.c.b16 %v3529, %v3527
    %v3656 = vpack.c.b16 %v3530, %v3528
    %v3657 = vpack.c.b16 %v3533, %v3531
    %v3658 = vpack.c.b16 %v3534, %v3532
    %v3659 = vpack.c.b16 %v3537, %v3535
    %v3660 = vpack.c.b16 %v3538, %v3536
    %v3661 = vpack.c.b16 %v3541, %v3539
    %v3662 = vpack.c.b16 %v3542, %v3540
    %v3663 = vpack.c.b16 %v3545, %v3543
    %v3664 = vpack.c.b16 %v3546, %v3544
    %v3665 = vpack.c.b16 %v3549, %v3547
    %v3666 = vpack.c.b16 %v3550, %v3548
    %v3667 = vpack.c.b16 %v3553, %v3551
    %v3668 = vpack.c.b16 %v3554, %v3552
    %v3669 = vpack.c.b16 %v3557, %v3555
    %v3670 = vpack.c.b16 %v3558, %v3556
    %v3671 = vpack.c.b16 %v3561, %v3559
    %v3672 = vpack.c.b16 %v3562, %v3560
    %v3673 = vpack.c.b16 %v3565, %v3563
    %v3674 = vpack.c.b16 %v3566, %v3564
    %v3675 = vpack.c.b16 %v3569, %v3567
    %v3676 = vpack.c.b16 %v3570, %v3568
    %v3677 = vpack.c.b16 %v3573, %v3571
    %v3678 = vpack.c.b16 %v3574, %v3572
    %v3679 = vpack.c.b16 %v3577, %v3575
    %v3680 = vpack.c.b16 %v3578, %v3576
    %v3681 = vpack.c.b16 %v3581, %v3579
    %v3682 = vpack.c.b16 %v3582, %v3580
    %v3683 = vpack.c.b16 %v3585, %v3583
    %v3684 = vpack.c.b16 %v3586, %v3584
    %v3685 = vpack.c.b16 %v3589, %v3587
    %v3686 = vpack.c.b16 %v3590, %v3588
    %v3687 = vpack.c.b16 %v3593, %v3591
    %v3688 = vpack.c.b16 %v3594, %v3592
    %v3689 = vpack.c.b16 %v3597, %v3595
    %v3690 = vpack.c.b16 %v3598, %v3596
    %v3691 = vpack.c.b16 %v3601, %v3599
    %v3692 = vpack.c.b16 %v3602, %v3600
    %v3693 = vpack.c.b16 %v3605, %v3603
    %v3694 = vpack.c.b16 %v3606, %v3604
    %v3695 = vpack.c.b16 %v3609, %v3607
    %v3696 = vpack.c.b16 %v3610, %v3608
    %v3697 = vpack.c.b16 %v3613, %v3611
    %v3698 = vpack.c.b16 %v3614, %v3612
    %v3699 = vpack.c.b16 %v3617, %v3615
    %v3700 = vpack.c.b16 %v3618, %v3616
    %v3701 = vpack.c.b16 %v3621, %v3619
    %v3702 = vpack.c.b16 %v3622, %v3620
    %v3703 = vpack.c.b16 %v3625, %v3623
    %v3704 = vpack.c.b16 %v3626, %v3624
    %v3705 = vpack.c.b16 %v3629, %v3627
    %v3706 = vpack.c.b16 %v3630, %v3628
    %v3707 = vpack.c.b16 %v3633, %v3631
    %v3708 = vpack.c.b16 %v3634, %v3632
    %v3709 = vpack.c.b16 %v3637, %v3635
    %v3710 = vpack.c.b16 %v3638, %v3636
    %v3711 = vpack.c.b16 %v3641, %v3639
    %v3712 = vpack.c.b16 %v3642, %v3640
    %v3713 = vpack.c.b16 %v3645, %v3643
    %v3714 = vpack.c.b16 %v3646, %v3644
    %v3715 = vpack.c.b16 %v3649, %v3647
    %v3716 = vpack.c.b16 %v3650, %v3648
    %v3717 = vpack.c.b16 %v3653, %v3651
    %v3718 = vpack.c.b16 %v3654, %v3652
    %3783 = vmatprep.subr.bf16.mxu0 %v3656
    %3784 = vmatpush1.bf16.msra.mxu0 %v3655
    %3785 = vmatprep.subr.bf16.mxu0 %v3658
    %3786 = vmatpush1.bf16.msra.mxu0 %v3657
    %3787 = vmatprep.subr.bf16.mxu0 %v3660
    %3788 = vmatpush1.bf16.msra.mxu0 %v3659
    %3789 = vmatprep.subr.bf16.mxu0 %v3662
    %3790 = vmatpush1.bf16.msra.mxu0 %v3661
    %3791 = vmatprep.subr.bf16.mxu0 %v3664
    %3792 = vmatpush1.bf16.msra.mxu0 %v3663
    %3793 = vmatprep.subr.bf16.mxu0 %v3666
    %3794 = vmatpush1.bf16.msra.mxu0 %v3665
    %3795 = vmatprep.subr.bf16.mxu0 %v3668
    %3796 = vmatpush1.bf16.msra.mxu0 %v3667
    %3797 = vmatprep.subr.bf16.mxu0 %v3670
    %3798 = vmatpush1.bf16.msra.mxu0 %v3669
    %3799 = vmatprep.subr.bf16.mxu0 %v3672
    %3800 = vmatpush1.bf16.msra.mxu0 %v3671
    %3801 = vmatprep.subr.bf16.mxu0 %v3674
    %3802 = vmatpush1.bf16.msra.mxu0 %v3673
    %3803 = vmatprep.subr.bf16.mxu0 %v3676
    %3804 = vmatpush1.bf16.msra.mxu0 %v3675
    %3805 = vmatprep.subr.bf16.mxu0 %v3678
    %3806 = vmatpush1.bf16.msra.mxu0 %v3677
    %3807 = vmatprep.subr.bf16.mxu0 %v3680
    %3808 = vmatpush1.bf16.msra.mxu0 %v3679
    %3809 = vmatprep.subr.bf16.mxu0 %v3682
    %3810 = vmatpush1.bf16.msra.mxu0 %v3681
    %3811 = vmatprep.subr.bf16.mxu0 %v3684
    %3812 = vmatpush1.bf16.msra.mxu0 %v3683
    %3813 = vmatprep.subr.bf16.mxu0 %v3686
    %3814 = vmatpush1.bf16.msra.mxu0 %v3685
    %3815 = vmatprep.mubr.bf16.mxu0 %v3384
    %3816 = vmatmul.mubr.bf16.gmra.mrb[0].mxu0 %v3383
    %v3817 = vpop.f32.mrb[0].mxu0
    %v3818 = vadd.f32 %v3456, %v3817
    %v3819 = vpop.f32.mrb[0].mxu0
    %v3820 = vadd.f32 %v3460, %v3819
    %v3821 = vpop.f32.mrb[0].mxu0
    %v3822 = vpop.f32.mrb[0].mxu0
    %3823 = vdwg.mxu0
    %3824 = vmatprep.subr.bf16.mxu0 %v3688
    %3825 = vmatpush1.bf16.msra.mxu0 %v3687
    %3826 = vmatprep.subr.bf16.mxu0 %v3690
    %3827 = vmatpush1.bf16.msra.mxu0 %v3689
    %3828 = vmatprep.subr.bf16.mxu0 %v3692
    %3829 = vmatpush1.bf16.msra.mxu0 %v3691
    %3830 = vmatprep.subr.bf16.mxu0 %v3694
    %3831 = vmatpush1.bf16.msra.mxu0 %v3693
    %3832 = vmatprep.subr.bf16.mxu0 %v3696
    %3833 = vmatpush1.bf16.msra.mxu0 %v3695
    %3834 = vmatprep.subr.bf16.mxu0 %v3698
    %3835 = vmatpush1.bf16.msra.mxu0 %v3697
    %3836 = vmatprep.subr.bf16.mxu0 %v3700
    %3837 = vmatpush1.bf16.msra.mxu0 %v3699
    %3838 = vmatprep.subr.bf16.mxu0 %v3702
    %3839 = vmatpush1.bf16.msra.mxu0 %v3701
    %3840 = vmatprep.subr.bf16.mxu0 %v3704
    %3841 = vmatpush1.bf16.msra.mxu0 %v3703
    %3842 = vmatprep.subr.bf16.mxu0 %v3706
    %3843 = vmatpush1.bf16.msra.mxu0 %v3705
    %3844 = vmatprep.subr.bf16.mxu0 %v3708
    %3845 = vmatpush1.bf16.msra.mxu0 %v3707
    %3846 = vmatprep.subr.bf16.mxu0 %v3710
    %3847 = vmatpush1.bf16.msra.mxu0 %v3709
    %3848 = vmatprep.subr.bf16.mxu0 %v3712
    %3849 = vmatpush1.bf16.msra.mxu0 %v3711
    %3850 = vmatprep.subr.bf16.mxu0 %v3714
    %3851 = vmatpush1.bf16.msra.mxu0 %v3713
    %3852 = vmatprep.subr.bf16.mxu0 %v3716
    %3853 = vmatpush1.bf16.msra.mxu0 %v3715
    %3854 = vmatprep.subr.bf16.mxu0 %v3718
    %3855 = vmatpush1.bf16.msra.mxu0 %v3717
    %3856 = vmatprep.mubr.bf16.mxu0 %v3386
    %3857 = vmatmul.mubr.bf16.gmra.mrb[0].mxu0 %v3385
    %v3858 = vpop.f32.mrb[0].mxu0
    %v3859 = vadd.f32 %v3818, %v3858
    %v3860 = vpop.f32.mrb[0].mxu0
    %v3861 = vadd.f32 %v3820, %v3860
    %v3862 = vpop.f32.mrb[0].mxu0
    %v3863 = vpop.f32.mrb[0].mxu0
    %3864 = vdwg.mxu0
    %3865 = vst [vmem:[#allocation4] sm:$0xff] %v3859
    %3866 = vst [vmem:[#allocation6] sm:$0xff] %v3861
    %v3867 = vmul.f32 %v3861, 0.5
    %v3868 = vmul.f32 %v3867, 1.442695
    %v3869 = vpow.pop %v3868
    %v3870 = vld [vmem:[%s6] sm:$0xff]
    %v3871 = vmul.f32 %v3869, %v3870
    %v3872 = vadd.f32 %v3859, %v3871
    %3873 = vst [vmem:[#allocation2] sm:$0xff] %v3872
    // Predicated region
    $region30: #{vae_encoder.1} parent=1 // pred_check
      _
    $region31: #{vae_encoder.1} parent=1 // pred_check_branch
      %3875 = sbr.rel (0) target = $region33
    $region32: #{vae_encoder.1} parent=1 // pred_region
      %s3877 = ssub.s32 128, 128
      %3878 = vsyncadd [#allocation3], %s3877
      %s3880 = sshll.u32 [#allocation2], 4
      %s3881 = int_to_ptr.vmem [resolvable:$true] %s3880
      %3883 = dma.vmem_to_hbm [thread:$0]  %s3881, 128, %s7, [#allocation3]
    $region33: #{vae_encoder.1} parent=1 // pred_fallthru
      _
    // Predicated region
    $region34: #{vae_encoder.1} parent=1 // pred_check
      _
    $region35: #{vae_encoder.1} parent=1 // pred_check_branch
      %3885 = sbr.rel (0) target = $region37
    $region36: #{vae_encoder.1} parent=1 // pred_region
      %s3887 = ssub.s32 128, 128
      %3888 = vsyncadd [#allocation5], %s3887
      %s3890 = sshll.u32 [#allocation4], 4
      %s3891 = int_to_ptr.vmem [resolvable:$true] %s3890
      %3893 = dma.vmem_to_hbm [thread:$0]  %s3891, 128, %s8, [#allocation5]
    $region37: #{vae_encoder.1} parent=1 // pred_fallthru
      _
    // Predicated region
    $region38: #{vae_encoder.1} parent=1 // pred_check
      _
    $region39: #{vae_encoder.1} parent=1 // pred_check_branch
      %3895 = sbr.rel (0) target = $region41
    $region40: #{vae_encoder.1} parent=1 // pred_region
      %s3897 = ssub.s32 128, 128
      %3898 = vsyncadd [#allocation5], %s3897
      %s3900 = sshll.u32 [#allocation6], 4
      %s3901 = int_to_ptr.vmem [resolvable:$true] %s3900
      %3903 = dma.vmem_to_hbm [thread:$0]  %s3901, 128, %s9, [#allocation5]
    $region41: #{vae_encoder.1} parent=1 // pred_fallthru
      _
    // Predicated region
    $region42: #{vae_encoder.1} parent=1 // pred_check
      _
    $region43: #{vae_encoder.1} parent=1 // pred_check_branch
      %3905 = sbr.rel (0) target = $region45
    $region44: #{vae_encoder.1} parent=1 // pred_region
      %3906 = dma.done [#allocation3], 128
    $region45: #{vae_encoder.1} parent=1 // pred_fallthru
      _
    // Predicated region
    $region46: #{vae_encoder.1} parent=1 // pred_check
      _
    $region47: #{vae_encoder.1} parent=1 // pred_check_branch
      %3908 = sbr.rel (0) target = $region49
    $region48: #{vae_encoder.1} parent=1 // pred_region
      %3909 = dma.done [#allocation5], 128
    $region49: #{vae_encoder.1} parent=1 // pred_fallthru
      _
    // Predicated region
    $region50: #{vae_encoder.1} parent=1 // pred_check
      _
    $region51: #{vae_encoder.1} parent=1 // pred_check_branch
      %3911 = sbr.rel (0) target = $region53
    $region52: #{vae_encoder.1} parent=1 // pred_region
      %3912 = dma.done [#allocation5], 128
    $region53: #{vae_encoder.1} parent=1 // pred_fallthru
      _
    %3913 = vsyncpa [#allocation3], 1
    %3914 = vsyncpa [#allocation5], 1

</llo_original>
